<compile_context>
chip_gen: v7x
topology: tpu7x:2x2x1
jax: 0.10.0
libtpu: 0.0.40
codegen_flags: <defaults>
</compile_context>

<pallas_src>
import math

import jax
import jax.numpy as jnp
from jax.experimental import pallas as pl
from jax.experimental.pallas import tpu as pltpu

K_IN = 28 * 28   # 784
K_PAD = 896      # 7 * 128 : lane-aligned K for layer 1
H = 512
N_OUT = 10
N_PAD = 128      # lane-dense output slab


def mlp_kernel(x_ref, w1_ref, b1_ref, w2_ref, b2_ref, w3_ref, b3_ref, out_ref):
    # Layer 1: bf16 x bf16 -> f32 accum on MXU; bias + ReLU in f32 on VPU.
    h1 = jnp.dot(x_ref[...], w1_ref[...], preferred_element_type=jnp.float32)
    h1 = jnp.maximum(h1 + b1_ref[...], 0.0)
    # Layer 2
    h2 = jnp.dot(h1.astype(jnp.bfloat16), w2_ref[...],
                 preferred_element_type=jnp.float32)
    h2 = jnp.maximum(h2 + b2_ref[...], 0.0)
    # Layer 3 (logits, padded to 128 lanes)
    logits = jnp.dot(h2.astype(jnp.bfloat16), w3_ref[...],
                     preferred_element_type=jnp.float32)
    out_ref[...] = (logits + b3_ref[...]).astype(out_ref.dtype)


def neural_network_forward(x, params):
    """x: [B, 1, 28, 28] (anything flattening to 784 per row). Returns f32 logits [B, 10]."""
    w1, b1, w2, b2, w3, b3 = params   # w: [in, out] f32, b: [1, out] f32
    B = x.shape[0]
    x2d = x.reshape(B, -1)            # nn.Flatten on NCHW
    assert x2d.shape[1] == K_IN

    # Batch tile: multiple of 128 keeps the MXU systolic array full on all chips
    # (128 also matches v5e's 4x128^2 MXU height) and stays far under the 32 MiB
    # scoped VMEM budget on v7x even with double buffering.
    TB = 128 if B <= 128 else 256
    nb = -(-B // TB)
    B_pad = nb * TB

    # Zero-pad batch B -> B_pad and K 784 -> 896; cast matmul operands to bf16.
    x_p = jnp.zeros((B_pad, K_PAD), jnp.bfloat16).at[:B, :K_IN].set(
        x2d.astype(jnp.bfloat16))
    w1_p = jnp.zeros((K_PAD, H), jnp.bfloat16).at[:K_IN, :].set(
        w1.astype(jnp.bfloat16))
    w2_p = w2.astype(jnp.bfloat16)
    # Pad last layer N 10 -> 128 so the output store path is full-lane (no vst.msk).
    w3_p = jnp.zeros((H, N_PAD), jnp.bfloat16).at[:, :N_OUT].set(
        w3.astype(jnp.bfloat16))
    b3_p = jnp.zeros((1, N_PAD), jnp.float32).at[:, :N_OUT].set(b3)

    def resident(shape):
        # Same block index on every grid step -> stays resident in VMEM.
        return pl.BlockSpec(shape, lambda i: (0, 0))

    flops = 2 * B_pad * (K_PAD * H + H * H + H * N_PAD)
    bytes_accessed = (
        x_p.size * 2 + w1_p.size * 2 + w2_p.size * 2 + w3_p.size * 2
        + (b1.size + b2.size + b3_p.size) * 4
        + B_pad * N_PAD * 4
    )

    out_full = pl.pallas_call(
        mlp_kernel,
        out_shape=jax.ShapeDtypeStruct((B_pad, N_PAD), jnp.float32),
        grid=(nb,),
        in_specs=[
            pl.BlockSpec((TB, K_PAD), lambda i: (i, 0)),   # x: batch-tiled, pipelined
            resident((K_PAD, H)),                          # w1
            resident((1, H)),                              # b1
            resident((H, H)),                              # w2
            resident((1, H)),                              # b2
            resident((H, N_PAD)),                          # w3
            resident((1, N_PAD)),                          # b3
        ],
        out_specs=pl.BlockSpec((TB, N_PAD), lambda i: (i, 0)),
        compiler_params=pltpu.CompilerParams(
            # Batch tiles are independent -> shard across v7x's 2 TensorCores.
            dimension_semantics=("parallel",),
            vmem_limit_bytes=32 * 1024 * 1024,
        ),
        cost_estimate=pl.CostEstimate(
            flops=flops, transcendentals=0, bytes_accessed=bytes_accessed),
    )(x_p, w1_p, b1, w2_p, b2, w3_p, b3_p)

    return out_full[:B, :N_OUT]


def init_params(key):
    """Deterministic init mirroring nn.Linear default (uniform +/- 1/sqrt(fan_in)).
    Weights stored as [in_features, out_features] (f32 master copies)."""
    dims = [(K_IN, 512), (512, 512), (512, N_OUT)]
    params = []
    for i, (fan_in, fan_out) in enumerate(dims):
        kw, kb = jax.random.split(jax.random.fold_in(key, i))
        bound = 1.0 / math.sqrt(fan_in)
        w = jax.random.uniform(kw, (fan_in, fan_out), jnp.float32, -bound, bound)
        b = jax.random.uniform(kb, (1, fan_out), jnp.float32, -bound, bound)
        params += [w, b]
    return tuple(params)


if __name__ == "__main__":
    key = jax.random.PRNGKey(0)
    k_x, k_p = jax.random.split(key)

    B = 2
    x = jax.random.normal(k_x, (B, 1, 28, 28), dtype=jnp.float32)  # NCHW
    params = init_params(k_p)

    logits = neural_network_forward(x, params)
    jax.block_until_ready(logits)

    # Pure-JAX f32 reference (kernel uses bf16 matmul operands -> loose tolerance).
    w1, b1, w2, b2, w3, b3 = params
    x2d = x.reshape(B, -1)
    ref = jnp.maximum(x2d @ w1 + b1, 0.0)
    ref = jnp.maximum(ref @ w2 + b2, 0.0)
    ref = ref @ w3 + b3

    assert logits.shape == (B, N_OUT)
    assert bool(jnp.allclose(logits, ref, atol=5e-2, rtol=5e-2)), (
        f"max abs err = {float(jnp.max(jnp.abs(logits - ref)))}")

    print("KERNEL_OK")
</pallas_src>

<mosaic_0001>
module attributes {stable_mosaic.version = 11 : i64} {
  func.func @mlp_kernel(%arg0: i32, %arg1: memref<128x896xbf16, #tpu.memory_space<vmem>>, %arg2: memref<896x512xbf16, #tpu.memory_space<vmem>>, %arg3: memref<1x512xf32, #tpu.memory_space<vmem>>, %arg4: memref<512x512xbf16, #tpu.memory_space<vmem>>, %arg5: memref<1x512xf32, #tpu.memory_space<vmem>>, %arg6: memref<512x128xbf16, #tpu.memory_space<vmem>>, %arg7: memref<1x128xf32, #tpu.memory_space<vmem>>, %arg8: memref<128x128xf32, #tpu.memory_space<vmem>>) attributes {dimension_semantics = [#tpu.dimension_semantics<parallel>], iteration_bounds = array<i64: 1>, scalar_prefetch = 0 : i64, scratch_operands = 0 : i64, tpu.core_type = #tpu.core_type<tc>, window_params = [{transform_indices = @transform_0, window_bounds = array<i64: 128, 896>}, {pipeline_mode = #tpu.pipeline_mode<synchronous>, transform_indices = @transform_1, window_bounds = array<i64: 896, 512>}, {pipeline_mode = #tpu.pipeline_mode<synchronous>, transform_indices = @transform_2, window_bounds = array<i64: 1, 512>}, {pipeline_mode = #tpu.pipeline_mode<synchronous>, transform_indices = @transform_3, window_bounds = array<i64: 512, 512>}, {pipeline_mode = #tpu.pipeline_mode<synchronous>, transform_indices = @transform_4, window_bounds = array<i64: 1, 512>}, {pipeline_mode = #tpu.pipeline_mode<synchronous>, transform_indices = @transform_5, window_bounds = array<i64: 512, 128>}, {pipeline_mode = #tpu.pipeline_mode<synchronous>, transform_indices = @transform_6, window_bounds = array<i64: 1, 128>}, {transform_indices = @transform_7, window_bounds = array<i64: 128, 128>}]} {
    %c0 = arith.constant 0 : index
    %c0_0 = arith.constant 0 : index
    %0 = vector.load %arg1[%c0, %c0_0] : memref<128x896xbf16, #tpu.memory_space<vmem>>, vector<128x896xbf16>
    %c0_1 = arith.constant 0 : index
    %c0_2 = arith.constant 0 : index
    %1 = vector.load %arg2[%c0_1, %c0_2] : memref<896x512xbf16, #tpu.memory_space<vmem>>, vector<896x512xbf16>
    %cst = arith.constant dense<0.000000e+00> : vector<128x512xf32>
    %2 = tpu.matmul %0, %1, %cst {dimension_numbers = #tpu.dot_dimension_numbers<[1], [0], [0], [1], [0, 0, 1, 1], [], []>} : vector<128x896xbf16>, vector<896x512xbf16>, vector<128x512xf32> -> vector<128x512xf32>
    %c0_3 = arith.constant 0 : index
    %c0_4 = arith.constant 0 : index
    %3 = vector.load %arg3[%c0_3, %c0_4] : memref<1x512xf32, #tpu.memory_space<vmem>>, vector<1x512xf32>
    %4 = vector.broadcast %3 : vector<1x512xf32> to vector<128x512xf32>
    %5 = arith.addf %2, %4 : vector<128x512xf32>
    %cst_5 = arith.constant 0.000000e+00 : f32
    %6 = vector.broadcast %cst_5 : f32 to vector<128x512xf32>
    %7 = arith.maximumf %5, %6 : vector<128x512xf32>
    %8 = arith.truncf %7 : vector<128x512xf32> to vector<128x512xbf16>
    %c0_6 = arith.constant 0 : index
    %c0_7 = arith.constant 0 : index
    %9 = vector.load %arg4[%c0_6, %c0_7] : memref<512x512xbf16, #tpu.memory_space<vmem>>, vector<512x512xbf16>
    %cst_8 = arith.constant dense<0.000000e+00> : vector<128x512xf32>
    %10 = tpu.matmul %8, %9, %cst_8 {dimension_numbers = #tpu.dot_dimension_numbers<[1], [0], [0], [1], [0, 0, 1, 1], [], []>} : vector<128x512xbf16>, vector<512x512xbf16>, vector<128x512xf32> -> vector<128x512xf32>
    %c0_9 = arith.constant 0 : index
    %c0_10 = arith.constant 0 : index
    %11 = vector.load %arg5[%c0_9, %c0_10] : memref<1x512xf32, #tpu.memory_space<vmem>>, vector<1x512xf32>
    %12 = vector.broadcast %11 : vector<1x512xf32> to vector<128x512xf32>
    %13 = arith.addf %10, %12 : vector<128x512xf32>
    %cst_11 = arith.constant 0.000000e+00 : f32
    %14 = vector.broadcast %cst_11 : f32 to vector<128x512xf32>
    %15 = arith.maximumf %13, %14 : vector<128x512xf32>
    %16 = arith.truncf %15 : vector<128x512xf32> to vector<128x512xbf16>
    %c0_12 = arith.constant 0 : index
    %c0_13 = arith.constant 0 : index
    %17 = vector.load %arg6[%c0_12, %c0_13] : memref<512x128xbf16, #tpu.memory_space<vmem>>, vector<512x128xbf16>
    %cst_14 = arith.constant dense<0.000000e+00> : vector<128x128xf32>
    %18 = tpu.matmul %16, %17, %cst_14 {dimension_numbers = #tpu.dot_dimension_numbers<[1], [0], [0], [1], [0, 0, 1, 1], [], []>} : vector<128x512xbf16>, vector<512x128xbf16>, vector<128x128xf32> -> vector<128x128xf32>
    %c0_15 = arith.constant 0 : index
    %c0_16 = arith.constant 0 : index
    %19 = vector.load %arg7[%c0_15, %c0_16] : memref<1x128xf32, #tpu.memory_space<vmem>>, vector<1x128xf32>
    %20 = vector.broadcast %19 : vector<1x128xf32> to vector<128x128xf32>
    %21 = arith.addf %18, %20 : vector<128x128xf32>
    %c0_17 = arith.constant 0 : index
    %c0_18 = arith.constant 0 : index
    %22 = vector.load %arg8[%c0_17, %c0_18] : memref<128x128xf32, #tpu.memory_space<vmem>>, vector<128x128xf32>
    tpu.vector_store %arg8[%c0_17, %c0_18], %21 {strides = array<i32>} : memref<128x128xf32, #tpu.memory_space<vmem>>, vector<128x128xf32>,
    return
  }
  func.func @transform_0(%arg0: i32) -> (i32, i32) {
    %c0_i32 = arith.constant 0 : i32
    %c0_i32_0 = arith.constant 0 : i32
    return %arg0, %c0_i32 : i32, i32
  }
  func.func @transform_1(%arg0: i32) -> (i32, i32) {
    %c0_i32 = arith.constant 0 : i32
    %c0_i32_0 = arith.constant 0 : i32
    %c0_i32_1 = arith.constant 0 : i32
    return %c0_i32, %c0_i32_0 : i32, i32
  }
  func.func @transform_2(%arg0: i32) -> (i32, i32) {
    %c0_i32 = arith.constant 0 : i32
    %c0_i32_0 = arith.constant 0 : i32
    %c0_i32_1 = arith.constant 0 : i32
    return %c0_i32, %c0_i32_0 : i32, i32
  }
  func.func @transform_3(%arg0: i32) -> (i32, i32) {
    %c0_i32 = arith.constant 0 : i32
    %c0_i32_0 = arith.constant 0 : i32
    %c0_i32_1 = arith.constant 0 : i32
    return %c0_i32, %c0_i32_0 : i32, i32
  }
  func.func @transform_4(%arg0: i32) -> (i32, i32) {
    %c0_i32 = arith.constant 0 : i32
    %c0_i32_0 = arith.constant 0 : i32
    %c0_i32_1 = arith.constant 0 : i32
    return %c0_i32, %c0_i32_0 : i32, i32
  }
  func.func @transform_5(%arg0: i32) -> (i32, i32) {
    %c0_i32 = arith.constant 0 : i32
    %c0_i32_0 = arith.constant 0 : i32
    %c0_i32_1 = arith.constant 0 : i32
    return %c0_i32, %c0_i32_0 : i32, i32
  }
  func.func @transform_6(%arg0: i32) -> (i32, i32) {
    %c0_i32 = arith.constant 0 : i32
    %c0_i32_0 = arith.constant 0 : i32
    %c0_i32_1 = arith.constant 0 : i32
    return %c0_i32, %c0_i32_0 : i32, i32
  }
  func.func @transform_7(%arg0: i32) -> (i32, i32) {
    %c0_i32 = arith.constant 0 : i32
    %c0_i32_0 = arith.constant 0 : i32
    return %arg0, %c0_i32 : i32, i32
  }
}

</mosaic_0001>

<llo_original>
// kernel: tpu_custom_call.1
$region0: #{tpu_custom_call.1}
  #allocation0 [shape = 'u32[]', space=smem, size = 0x4, offset = 0x4, fixed_abs, tag = 'smem constant byte address 0x4 - core index']
  #allocation1 [shape = 'u32[144,128]{1,0:T(1,128)}', space=vmem, size = 0x12000, scoped, tag = 'internal scratch']
  %s0 = inlined_call_operand.hbm [shape: bf16[128,896], index: 0, kind: input, shape index: {}]
  %s1 = inlined_call_operand.hbm [shape: bf16[896,512], index: 1, kind: input, shape index: {}]
  %s2 = inlined_call_operand.vmem [shape: f32[1,512], index: 2, kind: input, shape index: {}]
  %s3 = inlined_call_operand.hbm [shape: bf16[512,512], index: 3, kind: input, shape index: {}]
  %s4 = inlined_call_operand.vmem [shape: f32[1,512], index: 4, kind: input, shape index: {}]
  %s5 = inlined_call_operand.hbm [shape: bf16[512,128], index: 5, kind: input, shape index: {}]
  %s6 = inlined_call_operand.vmem [shape: f32[1,128], index: 6, kind: input, shape index: {}]
  %s7 = inlined_call_operand.hbm [shape: f32[128,128], index: 7, kind: output, shape index: {}]
  %s8 = sld [smem:[#allocation0]]
  $region54: #{tpu_custom_call.1} parent=0
    _
  %s10 = ssub.s32 1, %s8
  %s11 = scalar_select 0, %s10, %s8
  $region1: #{tpu_custom_call.1} parent=0
    #allocation2 [shape = 'u8[229376]{0}', space=vmem, size = 0x38000, scoped, tag = 'input window, operand 0, single buffered']
    #allocation3 [shape = 's32[1]{0}', space=sflag, size = 0x4, scoped, tag = 'scoped memory for tpu_custom_call.1']
    #allocation4 [shape = 's32[1]{0}', space=sflag, size = 0x4, scoped, tag = 'scoped memory for tpu_custom_call.1']
    #allocation5 [shape = 'u8[917504]{0}', space=vmem, size = 0xe0000, scoped, tag = 'input window, operand 1, single buffered']
    #allocation6 [shape = 's32[1]{0}', space=sflag, size = 0x4, scoped, tag = 'scoped memory for tpu_custom_call.1']
    #allocation7 [shape = 'u8[524288]{0}', space=vmem, size = 0x80000, scoped, tag = 'input window, operand 3, single buffered']
    #allocation8 [shape = 'u8[131072]{0}', space=vmem, size = 0x20000, scoped, tag = 'input window, operand 5, single buffered']
    #allocation9 [shape = 's32[1]{0}', space=sflag, size = 0x4, scoped, tag = 'scoped memory for tpu_custom_call.1']
    #allocation10 [shape = 'u8[65536]{0}', space=vmem, size = 0x10000, scoped, tag = 'output window, operand 0, single buffered']
    %12 = vsyncpa [#allocation3], 0
    %13 = vsyncpa [#allocation6], 0
    %14 = vsyncpa [#allocation9], 0
    %15 = vsyncpa [#allocation4], 0
    // Predicated region
    $region2: #{tpu_custom_call.1} parent=1 // pred_check
      _
    $region3: #{tpu_custom_call.1} parent=1 // pred_check_branch
      %17 = sbr.rel (0) target = $region5
    $region4: #{tpu_custom_call.1} parent=1 // pred_region
      %s19 = ssub.s32 7168, 7168
      %20 = vsyncadd [#allocation3], %s19
      %s21 = sshll.u32 [#allocation2], 4
      %s22 = int_to_ptr.vmem [resolvable:$true] %s21
      %27 = dma.hbm_to_vmem [thread:$0]  %s0, 7168, %s22, [#allocation3], 448, 448, 28
    $region5: #{tpu_custom_call.1} parent=1 // pred_fallthru
      _
    // Predicated region
    $region6: #{tpu_custom_call.1} parent=1 // pred_check
      _
    $region7: #{tpu_custom_call.1} parent=1 // pred_check_branch
      %29 = sbr.rel (0) target = $region9
    $region8: #{tpu_custom_call.1} parent=1 // pred_region
      %s31 = ssub.s32 28672, 28672
      %32 = vsyncadd [#allocation6], %s31
      %s33 = sshll.u32 [#allocation5], 4
      %s34 = int_to_ptr.vmem [resolvable:$true] %s33
      %39 = dma.hbm_to_vmem [thread:$0]  %s1, 28672, %s34, [#allocation6], 256, 256, 16
    $region9: #{tpu_custom_call.1} parent=1 // pred_fallthru
      _
    // Predicated region
    $region10: #{tpu_custom_call.1} parent=1 // pred_check
      _
    $region11: #{tpu_custom_call.1} parent=1 // pred_check_branch
      %41 = sbr.rel (0) target = $region13
    $region12: #{tpu_custom_call.1} parent=1 // pred_region
      _
    $region13: #{tpu_custom_call.1} parent=1 // pred_fallthru
      _
    // Predicated region
    $region14: #{tpu_custom_call.1} parent=1 // pred_check
      _
    $region15: #{tpu_custom_call.1} parent=1 // pred_check_branch
      %43 = sbr.rel (0) target = $region17
    $region16: #{tpu_custom_call.1} parent=1 // pred_region
      %s45 = ssub.s32 16384, 16384
      %46 = vsyncadd [#allocation6], %s45
      %s47 = sshll.u32 [#allocation7], 4
      %s48 = int_to_ptr.vmem [resolvable:$true] %s47
      %53 = dma.hbm_to_vmem [thread:$0]  %s3, 16384, %s48, [#allocation6], 256, 256, 16
    $region17: #{tpu_custom_call.1} parent=1 // pred_fallthru
      _
    // Predicated region
    $region18: #{tpu_custom_call.1} parent=1 // pred_check
      _
    $region19: #{tpu_custom_call.1} parent=1 // pred_check_branch
      %55 = sbr.rel (0) target = $region21
    $region20: #{tpu_custom_call.1} parent=1 // pred_region
      _
    $region21: #{tpu_custom_call.1} parent=1 // pred_fallthru
      _
    // Predicated region
    $region22: #{tpu_custom_call.1} parent=1 // pred_check
      _
    $region23: #{tpu_custom_call.1} parent=1 // pred_check_branch
      %57 = sbr.rel (0) target = $region25
    $region24: #{tpu_custom_call.1} parent=1 // pred_region
      %s59 = ssub.s32 4096, 4096
      %60 = vsyncadd [#allocation9], %s59
      %s61 = sshll.u32 [#allocation8], 4
      %s62 = int_to_ptr.vmem [resolvable:$true] %s61
      %67 = dma.hbm_to_vmem [thread:$0]  %s5, 4096, %s62, [#allocation9], 64, 64, 4
    $region25: #{tpu_custom_call.1} parent=1 // pred_fallthru
      _
    // Predicated region
    $region26: #{tpu_custom_call.1} parent=1 // pred_check
      _
    $region27: #{tpu_custom_call.1} parent=1 // pred_check_branch
      %69 = sbr.rel (0) target = $region29
    $region28: #{tpu_custom_call.1} parent=1 // pred_region
      _
    $region29: #{tpu_custom_call.1} parent=1 // pred_fallthru
      _
    // Predicated region
    $region30: #{tpu_custom_call.1} parent=1 // pred_check
      _
    $region31: #{tpu_custom_call.1} parent=1 // pred_check_branch
      %71 = sbr.rel (0) target = $region33
    $region32: #{tpu_custom_call.1} parent=1 // pred_region
      %72 = dma.done [#allocation3], 7168
    $region33: #{tpu_custom_call.1} parent=1 // pred_fallthru
      _
    // Predicated region
    $region34: #{tpu_custom_call.1} parent=1 // pred_check
      _
    $region35: #{tpu_custom_call.1} parent=1 // pred_check_branch
      %74 = sbr.rel (0) target = $region37
    $region36: #{tpu_custom_call.1} parent=1 // pred_region
      %75 = dma.done [#allocation6], 28672
    $region37: #{tpu_custom_call.1} parent=1 // pred_fallthru
      _
    // Predicated region
    $region38: #{tpu_custom_call.1} parent=1 // pred_check
      _
    $region39: #{tpu_custom_call.1} parent=1 // pred_check_branch
      %77 = sbr.rel (0) target = $region41
    $region40: #{tpu_custom_call.1} parent=1 // pred_region
      %78 = dma.done [#allocation6], 16384
    $region41: #{tpu_custom_call.1} parent=1 // pred_fallthru
      _
    // Predicated region
    $region42: #{tpu_custom_call.1} parent=1 // pred_check
      _
    $region43: #{tpu_custom_call.1} parent=1 // pred_check_branch
      %80 = sbr.rel (0) target = $region45
    $region44: #{tpu_custom_call.1} parent=1 // pred_region
      %81 = dma.done [#allocation9], 4096
    $region45: #{tpu_custom_call.1} parent=1 // pred_fallthru
      _
    %v83 = vld [vmem:[#allocation2] sm:$0xff]
    %v84 = vld [vmem:[#allocation2 + $0x8] sm:$0xff]
    %v85 = vld [vmem:[#allocation2 + $0x10] sm:$0xff]
    %v86 = vld [vmem:[#allocation2 + $0x18] sm:$0xf]
    %v87 = vld [vmem:[#allocation2 + $0x1c] sm:$0xff]
    %v88 = vld [vmem:[#allocation2 + $0x24] sm:$0xff]
    %v89 = vld [vmem:[#allocation2 + $0x2c] sm:$0xff]
    %v90 = vld [vmem:[#allocation2 + $0x34] sm:$0xf]
    %v91 = vld [vmem:[#allocation2 + $0x38] sm:$0xff]
    %v92 = vld [vmem:[#allocation2 + $0x40] sm:$0xff]
    %v93 = vld [vmem:[#allocation2 + $0x48] sm:$0xff]
    %v94 = vld [vmem:[#allocation2 + $0x50] sm:$0xf]
    %v95 = vld [vmem:[#allocation2 + $0x54] sm:$0xff]
    %v96 = vld [vmem:[#allocation2 + $0x5c] sm:$0xff]
    %v97 = vld [vmem:[#allocation2 + $0x64] sm:$0xff]
    %v98 = vld [vmem:[#allocation2 + $0x6c] sm:$0xf]
    %v99 = vld [vmem:[#allocation2 + $0x70] sm:$0xff]
    %v100 = vld [vmem:[#allocation2 + $0x78] sm:$0xff]
    %v101 = vld [vmem:[#allocation2 + $0x80] sm:$0xff]
    %v102 = vld [vmem:[#allocation2 + $0x88] sm:$0xf]
    %v103 = vld [vmem:[#allocation2 + $0x8c] sm:$0xff]
    %v104 = vld [vmem:[#allocation2 + $0x94] sm:$0xff]
    %v105 = vld [vmem:[#allocation2 + $0x9c] sm:$0xff]
    %v106 = vld [vmem:[#allocation2 + $0xa4] sm:$0xf]
    %v107 = vld [vmem:[#allocation2 + $0xa8] sm:$0xff]
    %v108 = vld [vmem:[#allocation2 + $0xb0] sm:$0xff]
    %v109 = vld [vmem:[#allocation2 + $0xb8] sm:$0xff]
    %v110 = vld [vmem:[#allocation2 + $0xc0] sm:$0xf]
    %v111 = vld [vmem:[#allocation2 + $0xc4] sm:$0xff]
    %v112 = vld [vmem:[#allocation2 + $0xcc] sm:$0xff]
    %v113 = vld [vmem:[#allocation2 + $0xd4] sm:$0xff]
    %v114 = vld [vmem:[#allocation2 + $0xdc] sm:$0xf]
    %v115 = vld [vmem:[#allocation2 + $0xe0] sm:$0xff]
    %v116 = vld [vmem:[#allocation2 + $0xe8] sm:$0xff]
    %v117 = vld [vmem:[#allocation2 + $0xf0] sm:$0xff]
    %v118 = vld [vmem:[#allocation2 + $0xf8] sm:$0xf]
    %v119 = vld [vmem:[#allocation2 + $0xfc] sm:$0xff]
    %v120 = vld [vmem:[#allocation2 + $0x104] sm:$0xff]
    %v121 = vld [vmem:[#allocation2 + $0x10c] sm:$0xff]
    %v122 = vld [vmem:[#allocation2 + $0x114] sm:$0xf]
    %v123 = vld [vmem:[#allocation2 + $0x118] sm:$0xff]
    %v124 = vld [vmem:[#allocation2 + $0x120] sm:$0xff]
    %v125 = vld [vmem:[#allocation2 + $0x128] sm:$0xff]
    %v126 = vld [vmem:[#allocation2 + $0x130] sm:$0xf]
    %v127 = vld [vmem:[#allocation2 + $0x134] sm:$0xff]
    %v128 = vld [vmem:[#allocation2 + $0x13c] sm:$0xff]
    %v129 = vld [vmem:[#allocation2 + $0x144] sm:$0xff]
    %v130 = vld [vmem:[#allocation2 + $0x14c] sm:$0xf]
    %v131 = vld [vmem:[#allocation2 + $0x150] sm:$0xff]
    %v132 = vld [vmem:[#allocation2 + $0x158] sm:$0xff]
    %v133 = vld [vmem:[#allocation2 + $0x160] sm:$0xff]
    %v134 = vld [vmem:[#allocation2 + $0x168] sm:$0xf]
    %v135 = vld [vmem:[#allocation2 + $0x16c] sm:$0xff]
    %v136 = vld [vmem:[#allocation2 + $0x174] sm:$0xff]
    %v137 = vld [vmem:[#allocation2 + $0x17c] sm:$0xff]
    %v138 = vld [vmem:[#allocation2 + $0x184] sm:$0xf]
    %v139 = vld [vmem:[#allocation2 + $0x188] sm:$0xff]
    %v140 = vld [vmem:[#allocation2 + $0x190] sm:$0xff]
    %v141 = vld [vmem:[#allocation2 + $0x198] sm:$0xff]
    %v142 = vld [vmem:[#allocation2 + $0x1a0] sm:$0xf]
    %v143 = vld [vmem:[#allocation2 + $0x1a4] sm:$0xff]
    %v144 = vld [vmem:[#allocation2 + $0x1ac] sm:$0xff]
    %v145 = vld [vmem:[#allocation2 + $0x1b4] sm:$0xff]
    %v146 = vld [vmem:[#allocation2 + $0x1bc] sm:$0xf]
    %v147 = vld [vmem:[#allocation5] sm:$0xff]
    %v148 = vld [vmem:[#allocation5 + $0x8] sm:$0xff]
    %v149 = vld [vmem:[#allocation5 + $0x10] sm:$0xff]
    %v150 = vld [vmem:[#allocation5 + $0x18] sm:$0xff]
    %v151 = vld [vmem:[#allocation5 + $0x20] sm:$0xff]
    %v152 = vld [vmem:[#allocation5 + $0x28] sm:$0xff]
    %v153 = vld [vmem:[#allocation5 + $0x30] sm:$0xff]
    %v154 = vld [vmem:[#allocation5 + $0x38] sm:$0xff]
    %v155 = vld [vmem:[#allocation5 + $0x40] sm:$0xff]
    %v156 = vld [vmem:[#allocation5 + $0x48] sm:$0xff]
    %v157 = vld [vmem:[#allocation5 + $0x50] sm:$0xff]
    %v158 = vld [vmem:[#allocation5 + $0x58] sm:$0xff]
    %v159 = vld [vmem:[#allocation5 + $0x60] sm:$0xff]
    %v160 = vld [vmem:[#allocation5 + $0x68] sm:$0xff]
    %v161 = vld [vmem:[#allocation5 + $0x70] sm:$0xff]
    %v162 = vld [vmem:[#allocation5 + $0x78] sm:$0xff]
    %v163 = vld [vmem:[#allocation5 + $0x80] sm:$0xff]
    %v164 = vld [vmem:[#allocation5 + $0x88] sm:$0xff]
    %v165 = vld [vmem:[#allocation5 + $0x90] sm:$0xff]
    %v166 = vld [vmem:[#allocation5 + $0x98] sm:$0xff]
    %v167 = vld [vmem:[#allocation5 + $0xa0] sm:$0xff]
    %v168 = vld [vmem:[#allocation5 + $0xa8] sm:$0xff]
    %v169 = vld [vmem:[#allocation5 + $0xb0] sm:$0xff]
    %v170 = vld [vmem:[#allocation5 + $0xb8] sm:$0xff]
    %v171 = vld [vmem:[#allocation5 + $0xc0] sm:$0xff]
    %v172 = vld [vmem:[#allocation5 + $0xc8] sm:$0xff]
    %v173 = vld [vmem:[#allocation5 + $0xd0] sm:$0xff]
    %v174 = vld [vmem:[#allocation5 + $0xd8] sm:$0xff]
    %v175 = vld [vmem:[#allocation5 + $0xe0] sm:$0xff]
    %v176 = vld [vmem:[#allocation5 + $0xe8] sm:$0xff]
    %v177 = vld [vmem:[#allocation5 + $0xf0] sm:$0xff]
    %v178 = vld [vmem:[#allocation5 + $0xf8] sm:$0xff]
    %v179 = vld [vmem:[#allocation5 + $0x100] sm:$0xff]
    %v180 = vld [vmem:[#allocation5 + $0x108] sm:$0xff]
    %v181 = vld [vmem:[#allocation5 + $0x110] sm:$0xff]
    %v182 = vld [vmem:[#allocation5 + $0x118] sm:$0xff]
    %v183 = vld [vmem:[#allocation5 + $0x120] sm:$0xff]
    %v184 = vld [vmem:[#allocation5 + $0x128] sm:$0xff]
    %v185 = vld [vmem:[#allocation5 + $0x130] sm:$0xff]
    %v186 = vld [vmem:[#allocation5 + $0x138] sm:$0xff]
    %v187 = vld [vmem:[#allocation5 + $0x140] sm:$0xff]
    %v188 = vld [vmem:[#allocation5 + $0x148] sm:$0xff]
    %v189 = vld [vmem:[#allocation5 + $0x150] sm:$0xff]
    %v190 = vld [vmem:[#allocation5 + $0x158] sm:$0xff]
    %v191 = vld [vmem:[#allocation5 + $0x160] sm:$0xff]
    %v192 = vld [vmem:[#allocation5 + $0x168] sm:$0xff]
    %v193 = vld [vmem:[#allocation5 + $0x170] sm:$0xff]
    %v194 = vld [vmem:[#allocation5 + $0x178] sm:$0xff]
    %v195 = vld [vmem:[#allocation5 + $0x180] sm:$0xff]
    %v196 = vld [vmem:[#allocation5 + $0x188] sm:$0xff]
    %v197 = vld [vmem:[#allocation5 + $0x190] sm:$0xff]
    %v198 = vld [vmem:[#allocation5 + $0x198] sm:$0xff]
    %v199 = vld [vmem:[#allocation5 + $0x1a0] sm:$0xff]
    %v200 = vld [vmem:[#allocation5 + $0x1a8] sm:$0xff]
    %v201 = vld [vmem:[#allocation5 + $0x1b0] sm:$0xff]
    %v202 = vld [vmem:[#allocation5 + $0x1b8] sm:$0xff]
    %v203 = vld [vmem:[#allocation5 + $0x1c0] sm:$0xff]
    %v204 = vld [vmem:[#allocation5 + $0x1c8] sm:$0xff]
    %v205 = vld [vmem:[#allocation5 + $0x1d0] sm:$0xff]
    %v206 = vld [vmem:[#allocation5 + $0x1d8] sm:$0xff]
    %v207 = vld [vmem:[#allocation5 + $0x1e0] sm:$0xff]
    %v208 = vld [vmem:[#allocation5 + $0x1e8] sm:$0xff]
    %v209 = vld [vmem:[#allocation5 + $0x1f0] sm:$0xff]
    %v210 = vld [vmem:[#allocation5 + $0x1f8] sm:$0xff]
    %v211 = vld [vmem:[#allocation5 + $0x200] sm:$0xff]
    %v212 = vld [vmem:[#allocation5 + $0x208] sm:$0xff]
    %v213 = vld [vmem:[#allocation5 + $0x210] sm:$0xff]
    %v214 = vld [vmem:[#allocation5 + $0x218] sm:$0xff]
    %v215 = vld [vmem:[#allocation5 + $0x220] sm:$0xff]
    %v216 = vld [vmem:[#allocation5 + $0x228] sm:$0xff]
    %v217 = vld [vmem:[#allocation5 + $0x230] sm:$0xff]
    %v218 = vld [vmem:[#allocation5 + $0x238] sm:$0xff]
    %v219 = vld [vmem:[#allocation5 + $0x240] sm:$0xff]
    %v220 = vld [vmem:[#allocation5 + $0x248] sm:$0xff]
    %v221 = vld [vmem:[#allocation5 + $0x250] sm:$0xff]
    %v222 = vld [vmem:[#allocation5 + $0x258] sm:$0xff]
    %v223 = vld [vmem:[#allocation5 + $0x260] sm:$0xff]
    %v224 = vld [vmem:[#allocation5 + $0x268] sm:$0xff]
    %v225 = vld [vmem:[#allocation5 + $0x270] sm:$0xff]
    %v226 = vld [vmem:[#allocation5 + $0x278] sm:$0xff]
    %v227 = vld [vmem:[#allocation5 + $0x280] sm:$0xff]
    %v228 = vld [vmem:[#allocation5 + $0x288] sm:$0xff]
    %v229 = vld [vmem:[#allocation5 + $0x290] sm:$0xff]
    %v230 = vld [vmem:[#allocation5 + $0x298] sm:$0xff]
    %v231 = vld [vmem:[#allocation5 + $0x2a0] sm:$0xff]
    %v232 = vld [vmem:[#allocation5 + $0x2a8] sm:$0xff]
    %v233 = vld [vmem:[#allocation5 + $0x2b0] sm:$0xff]
    %v234 = vld [vmem:[#allocation5 + $0x2b8] sm:$0xff]
    %v235 = vld [vmem:[#allocation5 + $0x2c0] sm:$0xff]
    %v236 = vld [vmem:[#allocation5 + $0x2c8] sm:$0xff]
    %v237 = vld [vmem:[#allocation5 + $0x2d0] sm:$0xff]
    %v238 = vld [vmem:[#allocation5 + $0x2d8] sm:$0xff]
    %v239 = vld [vmem:[#allocation5 + $0x2e0] sm:$0xff]
    %v240 = vld [vmem:[#allocation5 + $0x2e8] sm:$0xff]
    %v241 = vld [vmem:[#allocation5 + $0x2f0] sm:$0xff]
    %v242 = vld [vmem:[#allocation5 + $0x2f8] sm:$0xff]
    %v243 = vld [vmem:[#allocation5 + $0x300] sm:$0xff]
    %v244 = vld [vmem:[#allocation5 + $0x308] sm:$0xff]
    %v245 = vld [vmem:[#allocation5 + $0x310] sm:$0xff]
    %v246 = vld [vmem:[#allocation5 + $0x318] sm:$0xff]
    %v247 = vld [vmem:[#allocation5 + $0x320] sm:$0xff]
    %v248 = vld [vmem:[#allocation5 + $0x328] sm:$0xff]
    %v249 = vld [vmem:[#allocation5 + $0x330] sm:$0xff]
    %v250 = vld [vmem:[#allocation5 + $0x338] sm:$0xff]
    %v251 = vld [vmem:[#allocation5 + $0x340] sm:$0xff]
    %v252 = vld [vmem:[#allocation5 + $0x348] sm:$0xff]
    %v253 = vld [vmem:[#allocation5 + $0x350] sm:$0xff]
    %v254 = vld [vmem:[#allocation5 + $0x358] sm:$0xff]
    %v255 = vld [vmem:[#allocation5 + $0x360] sm:$0xff]
    %v256 = vld [vmem:[#allocation5 + $0x368] sm:$0xff]
    %v257 = vld [vmem:[#allocation5 + $0x370] sm:$0xff]
    %v258 = vld [vmem:[#allocation5 + $0x378] sm:$0xff]
    %v259 = vld [vmem:[#allocation5 + $0x380] sm:$0xff]
    %v260 = vld [vmem:[#allocation5 + $0x388] sm:$0xff]
    %v261 = vld [vmem:[#allocation5 + $0x390] sm:$0xff]
    %v262 = vld [vmem:[#allocation5 + $0x398] sm:$0xff]
    %v263 = vld [vmem:[#allocation5 + $0x3a0] sm:$0xff]
    %v264 = vld [vmem:[#allocation5 + $0x3a8] sm:$0xff]
    %v265 = vld [vmem:[#allocation5 + $0x3b0] sm:$0xff]
    %v266 = vld [vmem:[#allocation5 + $0x3b8] sm:$0xff]
    %v267 = vld [vmem:[#allocation5 + $0x3c0] sm:$0xff]
    %v268 = vld [vmem:[#allocation5 + $0x3c8] sm:$0xff]
    %v269 = vld [vmem:[#allocation5 + $0x3d0] sm:$0xff]
    %v270 = vld [vmem:[#allocation5 + $0x3d8] sm:$0xff]
    %v271 = vld [vmem:[#allocation5 + $0x3e0] sm:$0xff]
    %v272 = vld [vmem:[#allocation5 + $0x3e8] sm:$0xff]
    %v273 = vld [vmem:[#allocation5 + $0x3f0] sm:$0xff]
    %v274 = vld [vmem:[#allocation5 + $0x3f8] sm:$0xff]
    %v275 = vld [vmem:[#allocation5 + $0x400] sm:$0xff]
    %v276 = vld [vmem:[#allocation5 + $0x408] sm:$0xff]
    %v277 = vld [vmem:[#allocation5 + $0x410] sm:$0xff]
    %v278 = vld [vmem:[#allocation5 + $0x418] sm:$0xff]
    %v279 = vld [vmem:[#allocation5 + $0x420] sm:$0xff]
    %v280 = vld [vmem:[#allocation5 + $0x428] sm:$0xff]
    %v281 = vld [vmem:[#allocation5 + $0x430] sm:$0xff]
    %v282 = vld [vmem:[#allocation5 + $0x438] sm:$0xff]
    %v283 = vld [vmem:[#allocation5 + $0x440] sm:$0xff]
    %v284 = vld [vmem:[#allocation5 + $0x448] sm:$0xff]
    %v285 = vld [vmem:[#allocation5 + $0x450] sm:$0xff]
    %v286 = vld [vmem:[#allocation5 + $0x458] sm:$0xff]
    %v287 = vld [vmem:[#allocation5 + $0x460] sm:$0xff]
    %v288 = vld [vmem:[#allocation5 + $0x468] sm:$0xff]
    %v289 = vld [vmem:[#allocation5 + $0x470] sm:$0xff]
    %v290 = vld [vmem:[#allocation5 + $0x478] sm:$0xff]
    %v291 = vld [vmem:[#allocation5 + $0x480] sm:$0xff]
    %v292 = vld [vmem:[#allocation5 + $0x488] sm:$0xff]
    %v293 = vld [vmem:[#allocation5 + $0x490] sm:$0xff]
    %v294 = vld [vmem:[#allocation5 + $0x498] sm:$0xff]
    %v295 = vld [vmem:[#allocation5 + $0x4a0] sm:$0xff]
    %v296 = vld [vmem:[#allocation5 + $0x4a8] sm:$0xff]
    %v297 = vld [vmem:[#allocation5 + $0x4b0] sm:$0xff]
    %v298 = vld [vmem:[#allocation5 + $0x4b8] sm:$0xff]
    %v299 = vld [vmem:[#allocation5 + $0x4c0] sm:$0xff]
    %v300 = vld [vmem:[#allocation5 + $0x4c8] sm:$0xff]
    %v301 = vld [vmem:[#allocation5 + $0x4d0] sm:$0xff]
    %v302 = vld [vmem:[#allocation5 + $0x4d8] sm:$0xff]
    %v303 = vld [vmem:[#allocation5 + $0x4e0] sm:$0xff]
    %v304 = vld [vmem:[#allocation5 + $0x4e8] sm:$0xff]
    %v305 = vld [vmem:[#allocation5 + $0x4f0] sm:$0xff]
    %v306 = vld [vmem:[#allocation5 + $0x4f8] sm:$0xff]
    %v307 = vld [vmem:[#allocation5 + $0x500] sm:$0xff]
    %v308 = vld [vmem:[#allocation5 + $0x508] sm:$0xff]
    %v309 = vld [vmem:[#allocation5 + $0x510] sm:$0xff]
    %v310 = vld [vmem:[#allocation5 + $0x518] sm:$0xff]
    %v311 = vld [vmem:[#allocation5 + $0x520] sm:$0xff]
    %v312 = vld [vmem:[#allocation5 + $0x528] sm:$0xff]
    %v313 = vld [vmem:[#allocation5 + $0x530] sm:$0xff]
    %v314 = vld [vmem:[#allocation5 + $0x538] sm:$0xff]
    %v315 = vld [vmem:[#allocation5 + $0x540] sm:$0xff]
    %v316 = vld [vmem:[#allocation5 + $0x548] sm:$0xff]
    %v317 = vld [vmem:[#allocation5 + $0x550] sm:$0xff]
    %v318 = vld [vmem:[#allocation5 + $0x558] sm:$0xff]
    %v319 = vld [vmem:[#allocation5 + $0x560] sm:$0xff]
    %v320 = vld [vmem:[#allocation5 + $0x568] sm:$0xff]
    %v321 = vld [vmem:[#allocation5 + $0x570] sm:$0xff]
    %v322 = vld [vmem:[#allocation5 + $0x578] sm:$0xff]
    %v323 = vld [vmem:[#allocation5 + $0x580] sm:$0xff]
    %v324 = vld [vmem:[#allocation5 + $0x588] sm:$0xff]
    %v325 = vld [vmem:[#allocation5 + $0x590] sm:$0xff]
    %v326 = vld [vmem:[#allocation5 + $0x598] sm:$0xff]
    %v327 = vld [vmem:[#allocation5 + $0x5a0] sm:$0xff]
    %v328 = vld [vmem:[#allocation5 + $0x5a8] sm:$0xff]
    %v329 = vld [vmem:[#allocation5 + $0x5b0] sm:$0xff]
    %v330 = vld [vmem:[#allocation5 + $0x5b8] sm:$0xff]
    %v331 = vld [vmem:[#allocation5 + $0x5c0] sm:$0xff]
    %v332 = vld [vmem:[#allocation5 + $0x5c8] sm:$0xff]
    %v333 = vld [vmem:[#allocation5 + $0x5d0] sm:$0xff]
    %v334 = vld [vmem:[#allocation5 + $0x5d8] sm:$0xff]
    %v335 = vld [vmem:[#allocation5 + $0x5e0] sm:$0xff]
    %v336 = vld [vmem:[#allocation5 + $0x5e8] sm:$0xff]
    %v337 = vld [vmem:[#allocation5 + $0x5f0] sm:$0xff]
    %v338 = vld [vmem:[#allocation5 + $0x5f8] sm:$0xff]
    %v339 = vld [vmem:[#allocation5 + $0x600] sm:$0xff]
    %v340 = vld [vmem:[#allocation5 + $0x608] sm:$0xff]
    %v341 = vld [vmem:[#allocation5 + $0x610] sm:$0xff]
    %v342 = vld [vmem:[#allocation5 + $0x618] sm:$0xff]
    %v343 = vld [vmem:[#allocation5 + $0x620] sm:$0xff]
    %v344 = vld [vmem:[#allocation5 + $0x628] sm:$0xff]
    %v345 = vld [vmem:[#allocation5 + $0x630] sm:$0xff]
    %v346 = vld [vmem:[#allocation5 + $0x638] sm:$0xff]
    %v347 = vld [vmem:[#allocation5 + $0x640] sm:$0xff]
    %v348 = vld [vmem:[#allocation5 + $0x648] sm:$0xff]
    %v349 = vld [vmem:[#allocation5 + $0x650] sm:$0xff]
    %v350 = vld [vmem:[#allocation5 + $0x658] sm:$0xff]
    %v351 = vld [vmem:[#allocation5 + $0x660] sm:$0xff]
    %v352 = vld [vmem:[#allocation5 + $0x668] sm:$0xff]
    %v353 = vld [vmem:[#allocation5 + $0x670] sm:$0xff]
    %v354 = vld [vmem:[#allocation5 + $0x678] sm:$0xff]
    %v355 = vld [vmem:[#allocation5 + $0x680] sm:$0xff]
    %v356 = vld [vmem:[#allocation5 + $0x688] sm:$0xff]
    %v357 = vld [vmem:[#allocation5 + $0x690] sm:$0xff]
    %v358 = vld [vmem:[#allocation5 + $0x698] sm:$0xff]
    %v359 = vld [vmem:[#allocation5 + $0x6a0] sm:$0xff]
    %v360 = vld [vmem:[#allocation5 + $0x6a8] sm:$0xff]
    %v361 = vld [vmem:[#allocation5 + $0x6b0] sm:$0xff]
    %v362 = vld [vmem:[#allocation5 + $0x6b8] sm:$0xff]
    %v363 = vld [vmem:[#allocation5 + $0x6c0] sm:$0xff]
    %v364 = vld [vmem:[#allocation5 + $0x6c8] sm:$0xff]
    %v365 = vld [vmem:[#allocation5 + $0x6d0] sm:$0xff]
    %v366 = vld [vmem:[#allocation5 + $0x6d8] sm:$0xff]
    %v367 = vld [vmem:[#allocation5 + $0x6e0] sm:$0xff]
    %v368 = vld [vmem:[#allocation5 + $0x6e8] sm:$0xff]
    %v369 = vld [vmem:[#allocation5 + $0x6f0] sm:$0xff]
    %v370 = vld [vmem:[#allocation5 + $0x6f8] sm:$0xff]
    %v371 = vld [vmem:[%s2] sm:$0xf]
    %v373 = vlaneseq
    %v374 = vshrl.u32 %v373, 7
    %v375 = vsub.s32 0, %v374
    %v376 = vrot.slane %v371, %v375
    %v377 = vlaneseq
    %v378 = vshrl.u32 %v377, 7
    %v379 = vsub.s32 1, %v378
    %v380 = vrot.slane %v371, %v379
    %v381 = vlaneseq
    %v382 = vshrl.u32 %v381, 7
    %v383 = vsub.s32 2, %v382
    %v384 = vrot.slane %v371, %v383
    %v385 = vlaneseq
    %v386 = vshrl.u32 %v385, 7
    %v387 = vsub.s32 3, %v386
    %v388 = vrot.slane %v371, %v387
    %v457 = vunpack.c.l.b16 %v83
    %v458 = vunpack.c.h.b16 %v83
    %v459 = vunpack.c.l.b16 %v84
    %v460 = vunpack.c.h.b16 %v84
    %v461 = vunpack.c.l.b16 %v85
    %v462 = vunpack.c.h.b16 %v85
    %v463 = vunpack.c.l.b16 %v86
    %v464 = vunpack.c.l.b16 %v87
    %v465 = vunpack.c.h.b16 %v87
    %v466 = vunpack.c.l.b16 %v88
    %v467 = vunpack.c.h.b16 %v88
    %v468 = vunpack.c.l.b16 %v89
    %v469 = vunpack.c.h.b16 %v89
    %v470 = vunpack.c.l.b16 %v90
    %v471 = vunpack.c.l.b16 %v91
    %v472 = vunpack.c.h.b16 %v91
    %v473 = vunpack.c.l.b16 %v92
    %v474 = vunpack.c.h.b16 %v92
    %v475 = vunpack.c.l.b16 %v93
    %v476 = vunpack.c.h.b16 %v93
    %v477 = vunpack.c.l.b16 %v94
    %v478 = vunpack.c.l.b16 %v95
    %v479 = vunpack.c.h.b16 %v95
    %v480 = vunpack.c.l.b16 %v96
    %v481 = vunpack.c.h.b16 %v96
    %v482 = vunpack.c.l.b16 %v97
    %v483 = vunpack.c.h.b16 %v97
    %v484 = vunpack.c.l.b16 %v98
    %v485 = vunpack.c.l.b16 %v99
    %v486 = vunpack.c.h.b16 %v99
    %v487 = vunpack.c.l.b16 %v100
    %v488 = vunpack.c.h.b16 %v100
    %v489 = vunpack.c.l.b16 %v101
    %v490 = vunpack.c.h.b16 %v101
    %v491 = vunpack.c.l.b16 %v102
    %v492 = vunpack.c.l.b16 %v103
    %v493 = vunpack.c.h.b16 %v103
    %v494 = vunpack.c.l.b16 %v104
    %v495 = vunpack.c.h.b16 %v104
    %v496 = vunpack.c.l.b16 %v105
    %v497 = vunpack.c.h.b16 %v105
    %v498 = vunpack.c.l.b16 %v106
    %v499 = vunpack.c.l.b16 %v107
    %v500 = vunpack.c.h.b16 %v107
    %v501 = vunpack.c.l.b16 %v108
    %v502 = vunpack.c.h.b16 %v108
    %v503 = vunpack.c.l.b16 %v109
    %v504 = vunpack.c.h.b16 %v109
    %v505 = vunpack.c.l.b16 %v110
    %v506 = vunpack.c.l.b16 %v111
    %v507 = vunpack.c.h.b16 %v111
    %v508 = vunpack.c.l.b16 %v112
    %v509 = vunpack.c.h.b16 %v112
    %v510 = vunpack.c.l.b16 %v113
    %v511 = vunpack.c.h.b16 %v113
    %v512 = vunpack.c.l.b16 %v114
    %v513 = vunpack.c.l.b16 %v115
    %v514 = vunpack.c.h.b16 %v115
    %v515 = vunpack.c.l.b16 %v116
    %v516 = vunpack.c.h.b16 %v116
    %v517 = vunpack.c.l.b16 %v117
    %v518 = vunpack.c.h.b16 %v117
    %v519 = vunpack.c.l.b16 %v118
    %v520 = vunpack.c.l.b16 %v119
    %v521 = vunpack.c.h.b16 %v119
    %v522 = vunpack.c.l.b16 %v120
    %v523 = vunpack.c.h.b16 %v120
    %v524 = vunpack.c.l.b16 %v121
    %v525 = vunpack.c.h.b16 %v121
    %v526 = vunpack.c.l.b16 %v122
    %v527 = vunpack.c.l.b16 %v123
    %v528 = vunpack.c.h.b16 %v123
    %v529 = vunpack.c.l.b16 %v124
    %v530 = vunpack.c.h.b16 %v124
    %v531 = vunpack.c.l.b16 %v125
    %v532 = vunpack.c.h.b16 %v125
    %v533 = vunpack.c.l.b16 %v126
    %v534 = vunpack.c.l.b16 %v127
    %v535 = vunpack.c.h.b16 %v127
    %v536 = vunpack.c.l.b16 %v128
    %v537 = vunpack.c.h.b16 %v128
    %v538 = vunpack.c.l.b16 %v129
    %v539 = vunpack.c.h.b16 %v129
    %v540 = vunpack.c.l.b16 %v130
    %v541 = vunpack.c.l.b16 %v131
    %v542 = vunpack.c.h.b16 %v131
    %v543 = vunpack.c.l.b16 %v132
    %v544 = vunpack.c.h.b16 %v132
    %v545 = vunpack.c.l.b16 %v133
    %v546 = vunpack.c.h.b16 %v133
    %v547 = vunpack.c.l.b16 %v134
    %v548 = vunpack.c.l.b16 %v135
    %v549 = vunpack.c.h.b16 %v135
    %v550 = vunpack.c.l.b16 %v136
    %v551 = vunpack.c.h.b16 %v136
    %v552 = vunpack.c.l.b16 %v137
    %v553 = vunpack.c.h.b16 %v137
    %v554 = vunpack.c.l.b16 %v138
    %v555 = vunpack.c.l.b16 %v139
    %v556 = vunpack.c.h.b16 %v139
    %v557 = vunpack.c.l.b16 %v140
    %v558 = vunpack.c.h.b16 %v140
    %v559 = vunpack.c.l.b16 %v141
    %v560 = vunpack.c.h.b16 %v141
    %v561 = vunpack.c.l.b16 %v142
    %v562 = vunpack.c.l.b16 %v143
    %v563 = vunpack.c.h.b16 %v143
    %v564 = vunpack.c.l.b16 %v144
    %v565 = vunpack.c.h.b16 %v144
    %v566 = vunpack.c.l.b16 %v145
    %v567 = vunpack.c.h.b16 %v145
    %v568 = vunpack.c.l.b16 %v146
    %v569 = vpack.c.b16 %v464, %v457
    %v570 = vpack.c.b16 %v465, %v458
    %v571 = vpack.c.b16 %v466, %v459
    %v572 = vpack.c.b16 %v467, %v460
    %v573 = vpack.c.b16 %v468, %v461
    %v574 = vpack.c.b16 %v469, %v462
    %v575 = vpack.c.b16 %v470, %v463
    %v576 = vpack.c.b16 %v478, %v471
    %v577 = vpack.c.b16 %v479, %v472
    %v578 = vpack.c.b16 %v480, %v473
    %v579 = vpack.c.b16 %v481, %v474
    %v580 = vpack.c.b16 %v482, %v475
    %v581 = vpack.c.b16 %v483, %v476
    %v582 = vpack.c.b16 %v484, %v477
    %v583 = vpack.c.b16 %v492, %v485
    %v584 = vpack.c.b16 %v493, %v486
    %v585 = vpack.c.b16 %v494, %v487
    %v586 = vpack.c.b16 %v495, %v488
    %v587 = vpack.c.b16 %v496, %v489
    %v588 = vpack.c.b16 %v497, %v490
    %v589 = vpack.c.b16 %v498, %v491
    %v590 = vpack.c.b16 %v506, %v499
    %v591 = vpack.c.b16 %v507, %v500
    %v592 = vpack.c.b16 %v508, %v501
    %v593 = vpack.c.b16 %v509, %v502
    %v594 = vpack.c.b16 %v510, %v503
    %v595 = vpack.c.b16 %v511, %v504
    %v596 = vpack.c.b16 %v512, %v505
    %v597 = vpack.c.b16 %v520, %v513
    %v598 = vpack.c.b16 %v521, %v514
    %v599 = vpack.c.b16 %v522, %v515
    %v600 = vpack.c.b16 %v523, %v516
    %v601 = vpack.c.b16 %v524, %v517
    %v602 = vpack.c.b16 %v525, %v518
    %v603 = vpack.c.b16 %v526, %v519
    %v604 = vpack.c.b16 %v534, %v527
    %v605 = vpack.c.b16 %v535, %v528
    %v606 = vpack.c.b16 %v536, %v529
    %v607 = vpack.c.b16 %v537, %v530
    %v608 = vpack.c.b16 %v538, %v531
    %v609 = vpack.c.b16 %v539, %v532
    %v610 = vpack.c.b16 %v540, %v533
    %v611 = vpack.c.b16 %v548, %v541
    %v612 = vpack.c.b16 %v549, %v542
    %v613 = vpack.c.b16 %v550, %v543
    %v614 = vpack.c.b16 %v551, %v544
    %v615 = vpack.c.b16 %v552, %v545
    %v616 = vpack.c.b16 %v553, %v546
    %v617 = vpack.c.b16 %v554, %v547
    %v618 = vpack.c.b16 %v562, %v555
    %v619 = vpack.c.b16 %v563, %v556
    %v620 = vpack.c.b16 %v564, %v557
    %v621 = vpack.c.b16 %v565, %v558
    %v622 = vpack.c.b16 %v566, %v559
    %v623 = vpack.c.b16 %v567, %v560
    %v624 = vpack.c.b16 %v568, %v561
    %v905 = vunpack.c.l.b16 %v147
    %v906 = vunpack.c.h.b16 %v147
    %v907 = vunpack.c.l.b16 %v148
    %v908 = vunpack.c.h.b16 %v148
    %v909 = vunpack.c.l.b16 %v149
    %v910 = vunpack.c.h.b16 %v149
    %v911 = vunpack.c.l.b16 %v150
    %v912 = vunpack.c.h.b16 %v150
    %v913 = vunpack.c.l.b16 %v151
    %v914 = vunpack.c.h.b16 %v151
    %v915 = vunpack.c.l.b16 %v152
    %v916 = vunpack.c.h.b16 %v152
    %v917 = vunpack.c.l.b16 %v153
    %v918 = vunpack.c.h.b16 %v153
    %v919 = vunpack.c.l.b16 %v154
    %v920 = vunpack.c.h.b16 %v154
    %v921 = vunpack.c.l.b16 %v155
    %v922 = vunpack.c.h.b16 %v155
    %v923 = vunpack.c.l.b16 %v156
    %v924 = vunpack.c.h.b16 %v156
    %v925 = vunpack.c.l.b16 %v157
    %v926 = vunpack.c.h.b16 %v157
    %v927 = vunpack.c.l.b16 %v158
    %v928 = vunpack.c.h.b16 %v158
    %v929 = vunpack.c.l.b16 %v159
    %v930 = vunpack.c.h.b16 %v159
    %v931 = vunpack.c.l.b16 %v160
    %v932 = vunpack.c.h.b16 %v160
    %v933 = vunpack.c.l.b16 %v161
    %v934 = vunpack.c.h.b16 %v161
    %v935 = vunpack.c.l.b16 %v162
    %v936 = vunpack.c.h.b16 %v162
    %v937 = vunpack.c.l.b16 %v163
    %v938 = vunpack.c.h.b16 %v163
    %v939 = vunpack.c.l.b16 %v164
    %v940 = vunpack.c.h.b16 %v164
    %v941 = vunpack.c.l.b16 %v165
    %v942 = vunpack.c.h.b16 %v165
    %v943 = vunpack.c.l.b16 %v166
    %v944 = vunpack.c.h.b16 %v166
    %v945 = vunpack.c.l.b16 %v167
    %v946 = vunpack.c.h.b16 %v167
    %v947 = vunpack.c.l.b16 %v168
    %v948 = vunpack.c.h.b16 %v168
    %v949 = vunpack.c.l.b16 %v169
    %v950 = vunpack.c.h.b16 %v169
    %v951 = vunpack.c.l.b16 %v170
    %v952 = vunpack.c.h.b16 %v170
    %v953 = vunpack.c.l.b16 %v171
    %v954 = vunpack.c.h.b16 %v171
    %v955 = vunpack.c.l.b16 %v172
    %v956 = vunpack.c.h.b16 %v172
    %v957 = vunpack.c.l.b16 %v173
    %v958 = vunpack.c.h.b16 %v173
    %v959 = vunpack.c.l.b16 %v174
    %v960 = vunpack.c.h.b16 %v174
    %v961 = vunpack.c.l.b16 %v175
    %v962 = vunpack.c.h.b16 %v175
    %v963 = vunpack.c.l.b16 %v176
    %v964 = vunpack.c.h.b16 %v176
    %v965 = vunpack.c.l.b16 %v177
    %v966 = vunpack.c.h.b16 %v177
    %v967 = vunpack.c.l.b16 %v178
    %v968 = vunpack.c.h.b16 %v178
    %v969 = vunpack.c.l.b16 %v179
    %v970 = vunpack.c.h.b16 %v179
    %v971 = vunpack.c.l.b16 %v180
    %v972 = vunpack.c.h.b16 %v180
    %v973 = vunpack.c.l.b16 %v181
    %v974 = vunpack.c.h.b16 %v181
    %v975 = vunpack.c.l.b16 %v182
    %v976 = vunpack.c.h.b16 %v182
    %v977 = vunpack.c.l.b16 %v183
    %v978 = vunpack.c.h.b16 %v183
    %v979 = vunpack.c.l.b16 %v184
    %v980 = vunpack.c.h.b16 %v184
    %v981 = vunpack.c.l.b16 %v185
    %v982 = vunpack.c.h.b16 %v185
    %v983 = vunpack.c.l.b16 %v186
    %v984 = vunpack.c.h.b16 %v186
    %v985 = vunpack.c.l.b16 %v187
    %v986 = vunpack.c.h.b16 %v187
    %v987 = vunpack.c.l.b16 %v188
    %v988 = vunpack.c.h.b16 %v188
    %v989 = vunpack.c.l.b16 %v189
    %v990 = vunpack.c.h.b16 %v189
    %v991 = vunpack.c.l.b16 %v190
    %v992 = vunpack.c.h.b16 %v190
    %v993 = vunpack.c.l.b16 %v191
    %v994 = vunpack.c.h.b16 %v191
    %v995 = vunpack.c.l.b16 %v192
    %v996 = vunpack.c.h.b16 %v192
    %v997 = vunpack.c.l.b16 %v193
    %v998 = vunpack.c.h.b16 %v193
    %v999 = vunpack.c.l.b16 %v194
    %v1000 = vunpack.c.h.b16 %v194
    %v1001 = vunpack.c.l.b16 %v195
    %v1002 = vunpack.c.h.b16 %v195
    %v1003 = vunpack.c.l.b16 %v196
    %v1004 = vunpack.c.h.b16 %v196
    %v1005 = vunpack.c.l.b16 %v197
    %v1006 = vunpack.c.h.b16 %v197
    %v1007 = vunpack.c.l.b16 %v198
    %v1008 = vunpack.c.h.b16 %v198
    %v1009 = vunpack.c.l.b16 %v199
    %v1010 = vunpack.c.h.b16 %v199
    %v1011 = vunpack.c.l.b16 %v200
    %v1012 = vunpack.c.h.b16 %v200
    %v1013 = vunpack.c.l.b16 %v201
    %v1014 = vunpack.c.h.b16 %v201
    %v1015 = vunpack.c.l.b16 %v202
    %v1016 = vunpack.c.h.b16 %v202
    %v1017 = vunpack.c.l.b16 %v203
    %v1018 = vunpack.c.h.b16 %v203
    %v1019 = vunpack.c.l.b16 %v204
    %v1020 = vunpack.c.h.b16 %v204
    %v1021 = vunpack.c.l.b16 %v205
    %v1022 = vunpack.c.h.b16 %v205
    %v1023 = vunpack.c.l.b16 %v206
    %v1024 = vunpack.c.h.b16 %v206
    %v1025 = vunpack.c.l.b16 %v207
    %v1026 = vunpack.c.h.b16 %v207
    %v1027 = vunpack.c.l.b16 %v208
    %v1028 = vunpack.c.h.b16 %v208
    %v1029 = vunpack.c.l.b16 %v209
    %v1030 = vunpack.c.h.b16 %v209
    %v1031 = vunpack.c.l.b16 %v210
    %v1032 = vunpack.c.h.b16 %v210
    %v1033 = vunpack.c.l.b16 %v211
    %v1034 = vunpack.c.h.b16 %v211
    %v1035 = vunpack.c.l.b16 %v212
    %v1036 = vunpack.c.h.b16 %v212
    %v1037 = vunpack.c.l.b16 %v213
    %v1038 = vunpack.c.h.b16 %v213
    %v1039 = vunpack.c.l.b16 %v214
    %v1040 = vunpack.c.h.b16 %v214
    %v1041 = vunpack.c.l.b16 %v215
    %v1042 = vunpack.c.h.b16 %v215
    %v1043 = vunpack.c.l.b16 %v216
    %v1044 = vunpack.c.h.b16 %v216
    %v1045 = vunpack.c.l.b16 %v217
    %v1046 = vunpack.c.h.b16 %v217
    %v1047 = vunpack.c.l.b16 %v218
    %v1048 = vunpack.c.h.b16 %v218
    %v1049 = vunpack.c.l.b16 %v219
    %v1050 = vunpack.c.h.b16 %v219
    %v1051 = vunpack.c.l.b16 %v220
    %v1052 = vunpack.c.h.b16 %v220
    %v1053 = vunpack.c.l.b16 %v221
    %v1054 = vunpack.c.h.b16 %v221
    %v1055 = vunpack.c.l.b16 %v222
    %v1056 = vunpack.c.h.b16 %v222
    %v1057 = vunpack.c.l.b16 %v223
    %v1058 = vunpack.c.h.b16 %v223
    %v1059 = vunpack.c.l.b16 %v224
    %v1060 = vunpack.c.h.b16 %v224
    %v1061 = vunpack.c.l.b16 %v225
    %v1062 = vunpack.c.h.b16 %v225
    %v1063 = vunpack.c.l.b16 %v226
    %v1064 = vunpack.c.h.b16 %v226
    %v1065 = vunpack.c.l.b16 %v227
    %v1066 = vunpack.c.h.b16 %v227
    %v1067 = vunpack.c.l.b16 %v228
    %v1068 = vunpack.c.h.b16 %v228
    %v1069 = vunpack.c.l.b16 %v229
    %v1070 = vunpack.c.h.b16 %v229
    %v1071 = vunpack.c.l.b16 %v230
    %v1072 = vunpack.c.h.b16 %v230
    %v1073 = vunpack.c.l.b16 %v231
    %v1074 = vunpack.c.h.b16 %v231
    %v1075 = vunpack.c.l.b16 %v232
    %v1076 = vunpack.c.h.b16 %v232
    %v1077 = vunpack.c.l.b16 %v233
    %v1078 = vunpack.c.h.b16 %v233
    %v1079 = vunpack.c.l.b16 %v234
    %v1080 = vunpack.c.h.b16 %v234
    %v1081 = vunpack.c.l.b16 %v235
    %v1082 = vunpack.c.h.b16 %v235
    %v1083 = vunpack.c.l.b16 %v236
    %v1084 = vunpack.c.h.b16 %v236
    %v1085 = vunpack.c.l.b16 %v237
    %v1086 = vunpack.c.h.b16 %v237
    %v1087 = vunpack.c.l.b16 %v238
    %v1088 = vunpack.c.h.b16 %v238
    %v1089 = vunpack.c.l.b16 %v239
    %v1090 = vunpack.c.h.b16 %v239
    %v1091 = vunpack.c.l.b16 %v240
    %v1092 = vunpack.c.h.b16 %v240
    %v1093 = vunpack.c.l.b16 %v241
    %v1094 = vunpack.c.h.b16 %v241
    %v1095 = vunpack.c.l.b16 %v242
    %v1096 = vunpack.c.h.b16 %v242
    %v1097 = vunpack.c.l.b16 %v243
    %v1098 = vunpack.c.h.b16 %v243
    %v1099 = vunpack.c.l.b16 %v244
    %v1100 = vunpack.c.h.b16 %v244
    %v1101 = vunpack.c.l.b16 %v245
    %v1102 = vunpack.c.h.b16 %v245
    %v1103 = vunpack.c.l.b16 %v246
    %v1104 = vunpack.c.h.b16 %v246
    %v1105 = vunpack.c.l.b16 %v247
    %v1106 = vunpack.c.h.b16 %v247
    %v1107 = vunpack.c.l.b16 %v248
    %v1108 = vunpack.c.h.b16 %v248
    %v1109 = vunpack.c.l.b16 %v249
    %v1110 = vunpack.c.h.b16 %v249
    %v1111 = vunpack.c.l.b16 %v250
    %v1112 = vunpack.c.h.b16 %v250
    %v1113 = vunpack.c.l.b16 %v251
    %v1114 = vunpack.c.h.b16 %v251
    %v1115 = vunpack.c.l.b16 %v252
    %v1116 = vunpack.c.h.b16 %v252
    %v1117 = vunpack.c.l.b16 %v253
    %v1118 = vunpack.c.h.b16 %v253
    %v1119 = vunpack.c.l.b16 %v254
    %v1120 = vunpack.c.h.b16 %v254
    %v1121 = vunpack.c.l.b16 %v255
    %v1122 = vunpack.c.h.b16 %v255
    %v1123 = vunpack.c.l.b16 %v256
    %v1124 = vunpack.c.h.b16 %v256
    %v1125 = vunpack.c.l.b16 %v257
    %v1126 = vunpack.c.h.b16 %v257
    %v1127 = vunpack.c.l.b16 %v258
    %v1128 = vunpack.c.h.b16 %v258
    %v1129 = vunpack.c.l.b16 %v259
    %v1130 = vunpack.c.h.b16 %v259
    %v1131 = vunpack.c.l.b16 %v260
    %v1132 = vunpack.c.h.b16 %v260
    %v1133 = vunpack.c.l.b16 %v261
    %v1134 = vunpack.c.h.b16 %v261
    %v1135 = vunpack.c.l.b16 %v262
    %v1136 = vunpack.c.h.b16 %v262
    %v1137 = vunpack.c.l.b16 %v263
    %v1138 = vunpack.c.h.b16 %v263
    %v1139 = vunpack.c.l.b16 %v264
    %v1140 = vunpack.c.h.b16 %v264
    %v1141 = vunpack.c.l.b16 %v265
    %v1142 = vunpack.c.h.b16 %v265
    %v1143 = vunpack.c.l.b16 %v266
    %v1144 = vunpack.c.h.b16 %v266
    %v1145 = vunpack.c.l.b16 %v267
    %v1146 = vunpack.c.h.b16 %v267
    %v1147 = vunpack.c.l.b16 %v268
    %v1148 = vunpack.c.h.b16 %v268
    %v1149 = vunpack.c.l.b16 %v269
    %v1150 = vunpack.c.h.b16 %v269
    %v1151 = vunpack.c.l.b16 %v270
    %v1152 = vunpack.c.h.b16 %v270
    %v1153 = vunpack.c.l.b16 %v271
    %v1154 = vunpack.c.h.b16 %v271
    %v1155 = vunpack.c.l.b16 %v272
    %v1156 = vunpack.c.h.b16 %v272
    %v1157 = vunpack.c.l.b16 %v273
    %v1158 = vunpack.c.h.b16 %v273
    %v1159 = vunpack.c.l.b16 %v274
    %v1160 = vunpack.c.h.b16 %v274
    %v1161 = vunpack.c.l.b16 %v275
    %v1162 = vunpack.c.h.b16 %v275
    %v1163 = vunpack.c.l.b16 %v276
    %v1164 = vunpack.c.h.b16 %v276
    %v1165 = vunpack.c.l.b16 %v277
    %v1166 = vunpack.c.h.b16 %v277
    %v1167 = vunpack.c.l.b16 %v278
    %v1168 = vunpack.c.h.b16 %v278
    %v1169 = vunpack.c.l.b16 %v279
    %v1170 = vunpack.c.h.b16 %v279
    %v1171 = vunpack.c.l.b16 %v280
    %v1172 = vunpack.c.h.b16 %v280
    %v1173 = vunpack.c.l.b16 %v281
    %v1174 = vunpack.c.h.b16 %v281
    %v1175 = vunpack.c.l.b16 %v282
    %v1176 = vunpack.c.h.b16 %v282
    %v1177 = vunpack.c.l.b16 %v283
    %v1178 = vunpack.c.h.b16 %v283
    %v1179 = vunpack.c.l.b16 %v284
    %v1180 = vunpack.c.h.b16 %v284
    %v1181 = vunpack.c.l.b16 %v285
    %v1182 = vunpack.c.h.b16 %v285
    %v1183 = vunpack.c.l.b16 %v286
    %v1184 = vunpack.c.h.b16 %v286
    %v1185 = vunpack.c.l.b16 %v287
    %v1186 = vunpack.c.h.b16 %v287
    %v1187 = vunpack.c.l.b16 %v288
    %v1188 = vunpack.c.h.b16 %v288
    %v1189 = vunpack.c.l.b16 %v289
    %v1190 = vunpack.c.h.b16 %v289
    %v1191 = vunpack.c.l.b16 %v290
    %v1192 = vunpack.c.h.b16 %v290
    %v1193 = vunpack.c.l.b16 %v291
    %v1194 = vunpack.c.h.b16 %v291
    %v1195 = vunpack.c.l.b16 %v292
    %v1196 = vunpack.c.h.b16 %v292
    %v1197 = vunpack.c.l.b16 %v293
    %v1198 = vunpack.c.h.b16 %v293
    %v1199 = vunpack.c.l.b16 %v294
    %v1200 = vunpack.c.h.b16 %v294
    %v1201 = vunpack.c.l.b16 %v295
    %v1202 = vunpack.c.h.b16 %v295
    %v1203 = vunpack.c.l.b16 %v296
    %v1204 = vunpack.c.h.b16 %v296
    %v1205 = vunpack.c.l.b16 %v297
    %v1206 = vunpack.c.h.b16 %v297
    %v1207 = vunpack.c.l.b16 %v298
    %v1208 = vunpack.c.h.b16 %v298
    %v1209 = vunpack.c.l.b16 %v299
    %v1210 = vunpack.c.h.b16 %v299
    %v1211 = vunpack.c.l.b16 %v300
    %v1212 = vunpack.c.h.b16 %v300
    %v1213 = vunpack.c.l.b16 %v301
    %v1214 = vunpack.c.h.b16 %v301
    %v1215 = vunpack.c.l.b16 %v302
    %v1216 = vunpack.c.h.b16 %v302
    %v1217 = vunpack.c.l.b16 %v303
    %v1218 = vunpack.c.h.b16 %v303
    %v1219 = vunpack.c.l.b16 %v304
    %v1220 = vunpack.c.h.b16 %v304
    %v1221 = vunpack.c.l.b16 %v305
    %v1222 = vunpack.c.h.b16 %v305
    %v1223 = vunpack.c.l.b16 %v306
    %v1224 = vunpack.c.h.b16 %v306
    %v1225 = vunpack.c.l.b16 %v307
    %v1226 = vunpack.c.h.b16 %v307
    %v1227 = vunpack.c.l.b16 %v308
    %v1228 = vunpack.c.h.b16 %v308
    %v1229 = vunpack.c.l.b16 %v309
    %v1230 = vunpack.c.h.b16 %v309
    %v1231 = vunpack.c.l.b16 %v310
    %v1232 = vunpack.c.h.b16 %v310
    %v1233 = vunpack.c.l.b16 %v311
    %v1234 = vunpack.c.h.b16 %v311
    %v1235 = vunpack.c.l.b16 %v312
    %v1236 = vunpack.c.h.b16 %v312
    %v1237 = vunpack.c.l.b16 %v313
    %v1238 = vunpack.c.h.b16 %v313
    %v1239 = vunpack.c.l.b16 %v314
    %v1240 = vunpack.c.h.b16 %v314
    %v1241 = vunpack.c.l.b16 %v315
    %v1242 = vunpack.c.h.b16 %v315
    %v1243 = vunpack.c.l.b16 %v316
    %v1244 = vunpack.c.h.b16 %v316
    %v1245 = vunpack.c.l.b16 %v317
    %v1246 = vunpack.c.h.b16 %v317
    %v1247 = vunpack.c.l.b16 %v318
    %v1248 = vunpack.c.h.b16 %v318
    %v1249 = vunpack.c.l.b16 %v319
    %v1250 = vunpack.c.h.b16 %v319
    %v1251 = vunpack.c.l.b16 %v320
    %v1252 = vunpack.c.h.b16 %v320
    %v1253 = vunpack.c.l.b16 %v321
    %v1254 = vunpack.c.h.b16 %v321
    %v1255 = vunpack.c.l.b16 %v322
    %v1256 = vunpack.c.h.b16 %v322
    %v1257 = vunpack.c.l.b16 %v323
    %v1258 = vunpack.c.h.b16 %v323
    %v1259 = vunpack.c.l.b16 %v324
    %v1260 = vunpack.c.h.b16 %v324
    %v1261 = vunpack.c.l.b16 %v325
    %v1262 = vunpack.c.h.b16 %v325
    %v1263 = vunpack.c.l.b16 %v326
    %v1264 = vunpack.c.h.b16 %v326
    %v1265 = vunpack.c.l.b16 %v327
    %v1266 = vunpack.c.h.b16 %v327
    %v1267 = vunpack.c.l.b16 %v328
    %v1268 = vunpack.c.h.b16 %v328
    %v1269 = vunpack.c.l.b16 %v329
    %v1270 = vunpack.c.h.b16 %v329
    %v1271 = vunpack.c.l.b16 %v330
    %v1272 = vunpack.c.h.b16 %v330
    %v1273 = vunpack.c.l.b16 %v331
    %v1274 = vunpack.c.h.b16 %v331
    %v1275 = vunpack.c.l.b16 %v332
    %v1276 = vunpack.c.h.b16 %v332
    %v1277 = vunpack.c.l.b16 %v333
    %v1278 = vunpack.c.h.b16 %v333
    %v1279 = vunpack.c.l.b16 %v334
    %v1280 = vunpack.c.h.b16 %v334
    %v1281 = vunpack.c.l.b16 %v335
    %v1282 = vunpack.c.h.b16 %v335
    %v1283 = vunpack.c.l.b16 %v336
    %v1284 = vunpack.c.h.b16 %v336
    %v1285 = vunpack.c.l.b16 %v337
    %v1286 = vunpack.c.h.b16 %v337
    %v1287 = vunpack.c.l.b16 %v338
    %v1288 = vunpack.c.h.b16 %v338
    %v1289 = vunpack.c.l.b16 %v339
    %v1290 = vunpack.c.h.b16 %v339
    %v1291 = vunpack.c.l.b16 %v340
    %v1292 = vunpack.c.h.b16 %v340
    %v1293 = vunpack.c.l.b16 %v341
    %v1294 = vunpack.c.h.b16 %v341
    %v1295 = vunpack.c.l.b16 %v342
    %v1296 = vunpack.c.h.b16 %v342
    %v1297 = vunpack.c.l.b16 %v343
    %v1298 = vunpack.c.h.b16 %v343
    %v1299 = vunpack.c.l.b16 %v344
    %v1300 = vunpack.c.h.b16 %v344
    %v1301 = vunpack.c.l.b16 %v345
    %v1302 = vunpack.c.h.b16 %v345
    %v1303 = vunpack.c.l.b16 %v346
    %v1304 = vunpack.c.h.b16 %v346
    %v1305 = vunpack.c.l.b16 %v347
    %v1306 = vunpack.c.h.b16 %v347
    %v1307 = vunpack.c.l.b16 %v348
    %v1308 = vunpack.c.h.b16 %v348
    %v1309 = vunpack.c.l.b16 %v349
    %v1310 = vunpack.c.h.b16 %v349
    %v1311 = vunpack.c.l.b16 %v350
    %v1312 = vunpack.c.h.b16 %v350
    %v1313 = vunpack.c.l.b16 %v351
    %v1314 = vunpack.c.h.b16 %v351
    %v1315 = vunpack.c.l.b16 %v352
    %v1316 = vunpack.c.h.b16 %v352
    %v1317 = vunpack.c.l.b16 %v353
    %v1318 = vunpack.c.h.b16 %v353
    %v1319 = vunpack.c.l.b16 %v354
    %v1320 = vunpack.c.h.b16 %v354
    %v1321 = vunpack.c.l.b16 %v355
    %v1322 = vunpack.c.h.b16 %v355
    %v1323 = vunpack.c.l.b16 %v356
    %v1324 = vunpack.c.h.b16 %v356
    %v1325 = vunpack.c.l.b16 %v357
    %v1326 = vunpack.c.h.b16 %v357
    %v1327 = vunpack.c.l.b16 %v358
    %v1328 = vunpack.c.h.b16 %v358
    %v1329 = vunpack.c.l.b16 %v359
    %v1330 = vunpack.c.h.b16 %v359
    %v1331 = vunpack.c.l.b16 %v360
    %v1332 = vunpack.c.h.b16 %v360
    %v1333 = vunpack.c.l.b16 %v361
    %v1334 = vunpack.c.h.b16 %v361
    %v1335 = vunpack.c.l.b16 %v362
    %v1336 = vunpack.c.h.b16 %v362
    %v1337 = vunpack.c.l.b16 %v363
    %v1338 = vunpack.c.h.b16 %v363
    %v1339 = vunpack.c.l.b16 %v364
    %v1340 = vunpack.c.h.b16 %v364
    %v1341 = vunpack.c.l.b16 %v365
    %v1342 = vunpack.c.h.b16 %v365
    %v1343 = vunpack.c.l.b16 %v366
    %v1344 = vunpack.c.h.b16 %v366
    %v1345 = vunpack.c.l.b16 %v367
    %v1346 = vunpack.c.h.b16 %v367
    %v1347 = vunpack.c.l.b16 %v368
    %v1348 = vunpack.c.h.b16 %v368
    %v1349 = vunpack.c.l.b16 %v369
    %v1350 = vunpack.c.h.b16 %v369
    %v1351 = vunpack.c.l.b16 %v370
    %v1352 = vunpack.c.h.b16 %v370
    %v1353 = vpack.c.b16 %v909, %v905
    %v1354 = vpack.c.b16 %v910, %v906
    %v1355 = vpack.c.b16 %v911, %v907
    %v1356 = vpack.c.b16 %v912, %v908
    %v1357 = vpack.c.b16 %v917, %v913
    %v1358 = vpack.c.b16 %v918, %v914
    %v1359 = vpack.c.b16 %v919, %v915
    %v1360 = vpack.c.b16 %v920, %v916
    %v1361 = vpack.c.b16 %v925, %v921
    %v1362 = vpack.c.b16 %v926, %v922
    %v1363 = vpack.c.b16 %v927, %v923
    %v1364 = vpack.c.b16 %v928, %v924
    %v1365 = vpack.c.b16 %v933, %v929
    %v1366 = vpack.c.b16 %v934, %v930
    %v1367 = vpack.c.b16 %v935, %v931
    %v1368 = vpack.c.b16 %v936, %v932
    %v1369 = vpack.c.b16 %v941, %v937
    %v1370 = vpack.c.b16 %v942, %v938
    %v1371 = vpack.c.b16 %v943, %v939
    %v1372 = vpack.c.b16 %v944, %v940
    %v1373 = vpack.c.b16 %v949, %v945
    %v1374 = vpack.c.b16 %v950, %v946
    %v1375 = vpack.c.b16 %v951, %v947
    %v1376 = vpack.c.b16 %v952, %v948
    %v1377 = vpack.c.b16 %v957, %v953
    %v1378 = vpack.c.b16 %v958, %v954
    %v1379 = vpack.c.b16 %v959, %v955
    %v1380 = vpack.c.b16 %v960, %v956
    %v1381 = vpack.c.b16 %v965, %v961
    %v1382 = vpack.c.b16 %v966, %v962
    %v1383 = vpack.c.b16 %v967, %v963
    %v1384 = vpack.c.b16 %v968, %v964
    %v1385 = vpack.c.b16 %v973, %v969
    %v1386 = vpack.c.b16 %v974, %v970
    %v1387 = vpack.c.b16 %v975, %v971
    %v1388 = vpack.c.b16 %v976, %v972
    %v1389 = vpack.c.b16 %v981, %v977
    %v1390 = vpack.c.b16 %v982, %v978
    %v1391 = vpack.c.b16 %v983, %v979
    %v1392 = vpack.c.b16 %v984, %v980
    %v1393 = vpack.c.b16 %v989, %v985
    %v1394 = vpack.c.b16 %v990, %v986
    %v1395 = vpack.c.b16 %v991, %v987
    %v1396 = vpack.c.b16 %v992, %v988
    %v1397 = vpack.c.b16 %v997, %v993
    %v1398 = vpack.c.b16 %v998, %v994
    %v1399 = vpack.c.b16 %v999, %v995
    %v1400 = vpack.c.b16 %v1000, %v996
    %v1401 = vpack.c.b16 %v1005, %v1001
    %v1402 = vpack.c.b16 %v1006, %v1002
    %v1403 = vpack.c.b16 %v1007, %v1003
    %v1404 = vpack.c.b16 %v1008, %v1004
    %v1405 = vpack.c.b16 %v1013, %v1009
    %v1406 = vpack.c.b16 %v1014, %v1010
    %v1407 = vpack.c.b16 %v1015, %v1011
    %v1408 = vpack.c.b16 %v1016, %v1012
    %v1409 = vpack.c.b16 %v1021, %v1017
    %v1410 = vpack.c.b16 %v1022, %v1018
    %v1411 = vpack.c.b16 %v1023, %v1019
    %v1412 = vpack.c.b16 %v1024, %v1020
    %v1413 = vpack.c.b16 %v1029, %v1025
    %v1414 = vpack.c.b16 %v1030, %v1026
    %v1415 = vpack.c.b16 %v1031, %v1027
    %v1416 = vpack.c.b16 %v1032, %v1028
    %v1417 = vpack.c.b16 %v1037, %v1033
    %v1418 = vpack.c.b16 %v1038, %v1034
    %v1419 = vpack.c.b16 %v1039, %v1035
    %v1420 = vpack.c.b16 %v1040, %v1036
    %v1421 = vpack.c.b16 %v1045, %v1041
    %v1422 = vpack.c.b16 %v1046, %v1042
    %v1423 = vpack.c.b16 %v1047, %v1043
    %v1424 = vpack.c.b16 %v1048, %v1044
    %v1425 = vpack.c.b16 %v1053, %v1049
    %v1426 = vpack.c.b16 %v1054, %v1050
    %v1427 = vpack.c.b16 %v1055, %v1051
    %v1428 = vpack.c.b16 %v1056, %v1052
    %v1429 = vpack.c.b16 %v1061, %v1057
    %v1430 = vpack.c.b16 %v1062, %v1058
    %v1431 = vpack.c.b16 %v1063, %v1059
    %v1432 = vpack.c.b16 %v1064, %v1060
    %v1433 = vpack.c.b16 %v1069, %v1065
    %v1434 = vpack.c.b16 %v1070, %v1066
    %v1435 = vpack.c.b16 %v1071, %v1067
    %v1436 = vpack.c.b16 %v1072, %v1068
    %v1437 = vpack.c.b16 %v1077, %v1073
    %v1438 = vpack.c.b16 %v1078, %v1074
    %v1439 = vpack.c.b16 %v1079, %v1075
    %v1440 = vpack.c.b16 %v1080, %v1076
    %v1441 = vpack.c.b16 %v1085, %v1081
    %v1442 = vpack.c.b16 %v1086, %v1082
    %v1443 = vpack.c.b16 %v1087, %v1083
    %v1444 = vpack.c.b16 %v1088, %v1084
    %v1445 = vpack.c.b16 %v1093, %v1089
    %v1446 = vpack.c.b16 %v1094, %v1090
    %v1447 = vpack.c.b16 %v1095, %v1091
    %v1448 = vpack.c.b16 %v1096, %v1092
    %v1449 = vpack.c.b16 %v1101, %v1097
    %v1450 = vpack.c.b16 %v1102, %v1098
    %v1451 = vpack.c.b16 %v1103, %v1099
    %v1452 = vpack.c.b16 %v1104, %v1100
    %v1453 = vpack.c.b16 %v1109, %v1105
    %v1454 = vpack.c.b16 %v1110, %v1106
    %v1455 = vpack.c.b16 %v1111, %v1107
    %v1456 = vpack.c.b16 %v1112, %v1108
    %v1457 = vpack.c.b16 %v1117, %v1113
    %v1458 = vpack.c.b16 %v1118, %v1114
    %v1459 = vpack.c.b16 %v1119, %v1115
    %v1460 = vpack.c.b16 %v1120, %v1116
    %v1461 = vpack.c.b16 %v1125, %v1121
    %v1462 = vpack.c.b16 %v1126, %v1122
    %v1463 = vpack.c.b16 %v1127, %v1123
    %v1464 = vpack.c.b16 %v1128, %v1124
    %v1465 = vpack.c.b16 %v1133, %v1129
    %v1466 = vpack.c.b16 %v1134, %v1130
    %v1467 = vpack.c.b16 %v1135, %v1131
    %v1468 = vpack.c.b16 %v1136, %v1132
    %v1469 = vpack.c.b16 %v1141, %v1137
    %v1470 = vpack.c.b16 %v1142, %v1138
    %v1471 = vpack.c.b16 %v1143, %v1139
    %v1472 = vpack.c.b16 %v1144, %v1140
    %v1473 = vpack.c.b16 %v1149, %v1145
    %v1474 = vpack.c.b16 %v1150, %v1146
    %v1475 = vpack.c.b16 %v1151, %v1147
    %v1476 = vpack.c.b16 %v1152, %v1148
    %v1477 = vpack.c.b16 %v1157, %v1153
    %v1478 = vpack.c.b16 %v1158, %v1154
    %v1479 = vpack.c.b16 %v1159, %v1155
    %v1480 = vpack.c.b16 %v1160, %v1156
    %v1481 = vpack.c.b16 %v1165, %v1161
    %v1482 = vpack.c.b16 %v1166, %v1162
    %v1483 = vpack.c.b16 %v1167, %v1163
    %v1484 = vpack.c.b16 %v1168, %v1164
    %v1485 = vpack.c.b16 %v1173, %v1169
    %v1486 = vpack.c.b16 %v1174, %v1170
    %v1487 = vpack.c.b16 %v1175, %v1171
    %v1488 = vpack.c.b16 %v1176, %v1172
    %v1489 = vpack.c.b16 %v1181, %v1177
    %v1490 = vpack.c.b16 %v1182, %v1178
    %v1491 = vpack.c.b16 %v1183, %v1179
    %v1492 = vpack.c.b16 %v1184, %v1180
    %v1493 = vpack.c.b16 %v1189, %v1185
    %v1494 = vpack.c.b16 %v1190, %v1186
    %v1495 = vpack.c.b16 %v1191, %v1187
    %v1496 = vpack.c.b16 %v1192, %v1188
    %v1497 = vpack.c.b16 %v1197, %v1193
    %v1498 = vpack.c.b16 %v1198, %v1194
    %v1499 = vpack.c.b16 %v1199, %v1195
    %v1500 = vpack.c.b16 %v1200, %v1196
    %v1501 = vpack.c.b16 %v1205, %v1201
    %v1502 = vpack.c.b16 %v1206, %v1202
    %v1503 = vpack.c.b16 %v1207, %v1203
    %v1504 = vpack.c.b16 %v1208, %v1204
    %v1505 = vpack.c.b16 %v1213, %v1209
    %v1506 = vpack.c.b16 %v1214, %v1210
    %v1507 = vpack.c.b16 %v1215, %v1211
    %v1508 = vpack.c.b16 %v1216, %v1212
    %v1509 = vpack.c.b16 %v1221, %v1217
    %v1510 = vpack.c.b16 %v1222, %v1218
    %v1511 = vpack.c.b16 %v1223, %v1219
    %v1512 = vpack.c.b16 %v1224, %v1220
    %v1513 = vpack.c.b16 %v1229, %v1225
    %v1514 = vpack.c.b16 %v1230, %v1226
    %v1515 = vpack.c.b16 %v1231, %v1227
    %v1516 = vpack.c.b16 %v1232, %v1228
    %v1517 = vpack.c.b16 %v1237, %v1233
    %v1518 = vpack.c.b16 %v1238, %v1234
    %v1519 = vpack.c.b16 %v1239, %v1235
    %v1520 = vpack.c.b16 %v1240, %v1236
    %v1521 = vpack.c.b16 %v1245, %v1241
    %v1522 = vpack.c.b16 %v1246, %v1242
    %v1523 = vpack.c.b16 %v1247, %v1243
    %v1524 = vpack.c.b16 %v1248, %v1244
    %v1525 = vpack.c.b16 %v1253, %v1249
    %v1526 = vpack.c.b16 %v1254, %v1250
    %v1527 = vpack.c.b16 %v1255, %v1251
    %v1528 = vpack.c.b16 %v1256, %v1252
    %v1529 = vpack.c.b16 %v1261, %v1257
    %v1530 = vpack.c.b16 %v1262, %v1258
    %v1531 = vpack.c.b16 %v1263, %v1259
    %v1532 = vpack.c.b16 %v1264, %v1260
    %v1533 = vpack.c.b16 %v1269, %v1265
    %v1534 = vpack.c.b16 %v1270, %v1266
    %v1535 = vpack.c.b16 %v1271, %v1267
    %v1536 = vpack.c.b16 %v1272, %v1268
    %v1537 = vpack.c.b16 %v1277, %v1273
    %v1538 = vpack.c.b16 %v1278, %v1274
    %v1539 = vpack.c.b16 %v1279, %v1275
    %v1540 = vpack.c.b16 %v1280, %v1276
    %v1541 = vpack.c.b16 %v1285, %v1281
    %v1542 = vpack.c.b16 %v1286, %v1282
    %v1543 = vpack.c.b16 %v1287, %v1283
    %v1544 = vpack.c.b16 %v1288, %v1284
    %v1545 = vpack.c.b16 %v1293, %v1289
    %v1546 = vpack.c.b16 %v1294, %v1290
    %v1547 = vpack.c.b16 %v1295, %v1291
    %v1548 = vpack.c.b16 %v1296, %v1292
    %v1549 = vpack.c.b16 %v1301, %v1297
    %v1550 = vpack.c.b16 %v1302, %v1298
    %v1551 = vpack.c.b16 %v1303, %v1299
    %v1552 = vpack.c.b16 %v1304, %v1300
    %v1553 = vpack.c.b16 %v1309, %v1305
    %v1554 = vpack.c.b16 %v1310, %v1306
    %v1555 = vpack.c.b16 %v1311, %v1307
    %v1556 = vpack.c.b16 %v1312, %v1308
    %v1557 = vpack.c.b16 %v1317, %v1313
    %v1558 = vpack.c.b16 %v1318, %v1314
    %v1559 = vpack.c.b16 %v1319, %v1315
    %v1560 = vpack.c.b16 %v1320, %v1316
    %v1561 = vpack.c.b16 %v1325, %v1321
    %v1562 = vpack.c.b16 %v1326, %v1322
    %v1563 = vpack.c.b16 %v1327, %v1323
    %v1564 = vpack.c.b16 %v1328, %v1324
    %v1565 = vpack.c.b16 %v1333, %v1329
    %v1566 = vpack.c.b16 %v1334, %v1330
    %v1567 = vpack.c.b16 %v1335, %v1331
    %v1568 = vpack.c.b16 %v1336, %v1332
    %v1569 = vpack.c.b16 %v1341, %v1337
    %v1570 = vpack.c.b16 %v1342, %v1338
    %v1571 = vpack.c.b16 %v1343, %v1339
    %v1572 = vpack.c.b16 %v1344, %v1340
    %v1573 = vpack.c.b16 %v1349, %v1345
    %v1574 = vpack.c.b16 %v1350, %v1346
    %v1575 = vpack.c.b16 %v1351, %v1347
    %v1576 = vpack.c.b16 %v1352, %v1348
    %1801 = vmatprep.subr.bf16.mxu0 %v1354
    %1802 = vmatpush1.bf16.msra.mxu0 %v1353
    %1803 = vmatprep.subr.bf16.mxu0 %v1358
    %1804 = vmatpush1.bf16.msra.mxu0 %v1357
    %1805 = vmatprep.subr.bf16.mxu0 %v1362
    %1806 = vmatpush1.bf16.msra.mxu0 %v1361
    %1807 = vmatprep.subr.bf16.mxu0 %v1366
    %1808 = vmatpush1.bf16.msra.mxu0 %v1365
    %1809 = vmatprep.subr.bf16.mxu0 %v1370
    %1810 = vmatpush1.bf16.msra.mxu0 %v1369
    %1811 = vmatprep.subr.bf16.mxu0 %v1374
    %1812 = vmatpush1.bf16.msra.mxu0 %v1373
    %1813 = vmatprep.subr.bf16.mxu0 %v1378
    %1814 = vmatpush1.bf16.msra.mxu0 %v1377
    %1815 = vmatprep.subr.bf16.mxu0 %v1382
    %1816 = vmatpush1.bf16.msra.mxu0 %v1381
    %1817 = vmatprep.subr.bf16.mxu0 %v1386
    %1818 = vmatpush1.bf16.msra.mxu0 %v1385
    %1819 = vmatprep.subr.bf16.mxu0 %v1390
    %1820 = vmatpush1.bf16.msra.mxu0 %v1389
    %1821 = vmatprep.subr.bf16.mxu0 %v1394
    %1822 = vmatpush1.bf16.msra.mxu0 %v1393
    %1823 = vmatprep.subr.bf16.mxu0 %v1398
    %1824 = vmatpush1.bf16.msra.mxu0 %v1397
    %1825 = vmatprep.subr.bf16.mxu0 %v1402
    %1826 = vmatpush1.bf16.msra.mxu0 %v1401
    %1827 = vmatprep.subr.bf16.mxu0 %v1406
    %1828 = vmatpush1.bf16.msra.mxu0 %v1405
    %1829 = vmatprep.subr.bf16.mxu0 %v1410
    %1830 = vmatpush1.bf16.msra.mxu0 %v1409
    %1831 = vmatprep.subr.bf16.mxu0 %v1414
    %1832 = vmatpush1.bf16.msra.mxu0 %v1413
    %1833 = vmatprep.mubr.bf16.mxu0 %v570
    %1834 = vmatmul.mubr.bf16.gmra.mrb[0].mxu0 %v569
    %v1835 = vpop.f32.mrb[0].mxu0
    %v1836 = vadd.f32 %v376, %v1835
    %v1837 = vpop.f32.mrb[0].mxu0
    %v1838 = vadd.f32 %v380, %v1837
    %v1839 = vpop.f32.mrb[0].mxu0
    %v1840 = vadd.f32 %v376, %v1839
    %v1841 = vpop.f32.mrb[0].mxu0
    %v1842 = vadd.f32 %v380, %v1841
    %1843 = vmatprep.mubr.bf16.mxu0 %v577
    %1844 = vmatmul.mubr.bf16.gmra.mrb[0].mxu0 %v576
    %v1845 = vpop.f32.mrb[0].mxu0
    %v1846 = vadd.f32 %v376, %v1845
    %v1847 = vpop.f32.mrb[0].mxu0
    %v1848 = vadd.f32 %v380, %v1847
    %v1849 = vpop.f32.mrb[0].mxu0
    %v1850 = vadd.f32 %v376, %v1849
    %v1851 = vpop.f32.mrb[0].mxu0
    %v1852 = vadd.f32 %v380, %v1851
    %1853 = vmatprep.mubr.bf16.mxu0 %v584
    %1854 = vmatmul.mubr.bf16.gmra.mrb[0].mxu0 %v583
    %v1855 = vpop.f32.mrb[0].mxu0
    %v1856 = vadd.f32 %v376, %v1855
    %v1857 = vpop.f32.mrb[0].mxu0
    %v1858 = vadd.f32 %v380, %v1857
    %v1859 = vpop.f32.mrb[0].mxu0
    %v1860 = vadd.f32 %v376, %v1859
    %v1861 = vpop.f32.mrb[0].mxu0
    %v1862 = vadd.f32 %v380, %v1861
    %1863 = vmatprep.mubr.bf16.mxu0 %v591
    %1864 = vmatmul.mubr.bf16.gmra.mrb[0].mxu0 %v590
    %v1865 = vpop.f32.mrb[0].mxu0
    %v1866 = vadd.f32 %v376, %v1865
    %v1867 = vpop.f32.mrb[0].mxu0
    %v1868 = vadd.f32 %v380, %v1867
    %v1869 = vpop.f32.mrb[0].mxu0
    %v1870 = vadd.f32 %v376, %v1869
    %v1871 = vpop.f32.mrb[0].mxu0
    %v1872 = vadd.f32 %v380, %v1871
    %1873 = vmatprep.mubr.bf16.mxu0 %v598
    %1874 = vmatmul.mubr.bf16.gmra.mrb[0].mxu0 %v597
    %v1875 = vpop.f32.mrb[0].mxu0
    %v1876 = vadd.f32 %v376, %v1875
    %v1877 = vpop.f32.mrb[0].mxu0
    %v1878 = vadd.f32 %v380, %v1877
    %v1879 = vpop.f32.mrb[0].mxu0
    %v1880 = vadd.f32 %v376, %v1879
    %v1881 = vpop.f32.mrb[0].mxu0
    %v1882 = vadd.f32 %v380, %v1881
    %1883 = vmatprep.mubr.bf16.mxu0 %v605
    %1884 = vmatmul.mubr.bf16.gmra.mrb[0].mxu0 %v604
    %v1885 = vpop.f32.mrb[0].mxu0
    %v1886 = vadd.f32 %v376, %v1885
    %v1887 = vpop.f32.mrb[0].mxu0
    %v1888 = vadd.f32 %v380, %v1887
    %v1889 = vpop.f32.mrb[0].mxu0
    %v1890 = vadd.f32 %v376, %v1889
    %v1891 = vpop.f32.mrb[0].mxu0
    %v1892 = vadd.f32 %v380, %v1891
    %1893 = vmatprep.mubr.bf16.mxu0 %v612
    %1894 = vmatmul.mubr.bf16.gmra.mrb[0].mxu0 %v611
    %v1895 = vpop.f32.mrb[0].mxu0
    %v1896 = vadd.f32 %v376, %v1895
    %v1897 = vpop.f32.mrb[0].mxu0
    %v1898 = vadd.f32 %v380, %v1897
    %v1899 = vpop.f32.mrb[0].mxu0
    %v1900 = vadd.f32 %v376, %v1899
    %v1901 = vpop.f32.mrb[0].mxu0
    %v1902 = vadd.f32 %v380, %v1901
    %1903 = vmatprep.mubr.bf16.mxu0 %v619
    %1904 = vmatmul.mubr.bf16.gmra.mrb[0].mxu0 %v618
    %v1905 = vpop.f32.mrb[0].mxu0
    %v1906 = vadd.f32 %v376, %v1905
    %v1907 = vpop.f32.mrb[0].mxu0
    %v1908 = vadd.f32 %v380, %v1907
    %v1909 = vpop.f32.mrb[0].mxu0
    %v1910 = vadd.f32 %v376, %v1909
    %v1911 = vpop.f32.mrb[0].mxu0
    %v1912 = vadd.f32 %v380, %v1911
    %1913 = vdwg.mxu0
    %1914 = vmatprep.subr.bf16.mxu0 %v1418
    %1915 = vmatpush1.bf16.msra.mxu0 %v1417
    %1916 = vmatprep.subr.bf16.mxu0 %v1422
    %1917 = vmatpush1.bf16.msra.mxu0 %v1421
    %1918 = vmatprep.subr.bf16.mxu0 %v1426
    %1919 = vmatpush1.bf16.msra.mxu0 %v1425
    %1920 = vmatprep.subr.bf16.mxu0 %v1430
    %1921 = vmatpush1.bf16.msra.mxu0 %v1429
    %1922 = vmatprep.subr.bf16.mxu0 %v1434
    %1923 = vmatpush1.bf16.msra.mxu0 %v1433
    %1924 = vmatprep.subr.bf16.mxu0 %v1438
    %1925 = vmatpush1.bf16.msra.mxu0 %v1437
    %1926 = vmatprep.subr.bf16.mxu0 %v1442
    %1927 = vmatpush1.bf16.msra.mxu0 %v1441
    %1928 = vmatprep.subr.bf16.mxu0 %v1446
    %1929 = vmatpush1.bf16.msra.mxu0 %v1445
    %1930 = vmatprep.subr.bf16.mxu0 %v1450
    %1931 = vmatpush1.bf16.msra.mxu0 %v1449
    %1932 = vmatprep.subr.bf16.mxu0 %v1454
    %1933 = vmatpush1.bf16.msra.mxu0 %v1453
    %1934 = vmatprep.subr.bf16.mxu0 %v1458
    %1935 = vmatpush1.bf16.msra.mxu0 %v1457
    %1936 = vmatprep.subr.bf16.mxu0 %v1462
    %1937 = vmatpush1.bf16.msra.mxu0 %v1461
    %1938 = vmatprep.subr.bf16.mxu0 %v1466
    %1939 = vmatpush1.bf16.msra.mxu0 %v1465
    %1940 = vmatprep.subr.bf16.mxu0 %v1470
    %1941 = vmatpush1.bf16.msra.mxu0 %v1469
    %1942 = vmatprep.subr.bf16.mxu0 %v1474
    %1943 = vmatpush1.bf16.msra.mxu0 %v1473
    %1944 = vmatprep.subr.bf16.mxu0 %v1478
    %1945 = vmatpush1.bf16.msra.mxu0 %v1477
    %1946 = vmatprep.mubr.bf16.mxu0 %v572
    %1947 = vmatmul.mubr.bf16.gmra.mrb[0].mxu0 %v571
    %v1948 = vpop.f32.mrb[0].mxu0
    %v1949 = vadd.f32 %v1836, %v1948
    %v1950 = vpop.f32.mrb[0].mxu0
    %v1951 = vadd.f32 %v1838, %v1950
    %v1952 = vpop.f32.mrb[0].mxu0
    %v1953 = vadd.f32 %v1840, %v1952
    %v1954 = vpop.f32.mrb[0].mxu0
    %v1955 = vadd.f32 %v1842, %v1954
    %1956 = vmatprep.mubr.bf16.mxu0 %v579
    %1957 = vmatmul.mubr.bf16.gmra.mrb[0].mxu0 %v578
    %v1958 = vpop.f32.mrb[0].mxu0
    %v1959 = vadd.f32 %v1846, %v1958
    %v1960 = vpop.f32.mrb[0].mxu0
    %v1961 = vadd.f32 %v1848, %v1960
    %v1962 = vpop.f32.mrb[0].mxu0
    %v1963 = vadd.f32 %v1850, %v1962
    %v1964 = vpop.f32.mrb[0].mxu0
    %v1965 = vadd.f32 %v1852, %v1964
    %1966 = vmatprep.mubr.bf16.mxu0 %v586
    %1967 = vmatmul.mubr.bf16.gmra.mrb[0].mxu0 %v585
    %v1968 = vpop.f32.mrb[0].mxu0
    %v1969 = vadd.f32 %v1856, %v1968
    %v1970 = vpop.f32.mrb[0].mxu0
    %v1971 = vadd.f32 %v1858, %v1970
    %v1972 = vpop.f32.mrb[0].mxu0
    %v1973 = vadd.f32 %v1860, %v1972
    %v1974 = vpop.f32.mrb[0].mxu0
    %v1975 = vadd.f32 %v1862, %v1974
    %1976 = vmatprep.mubr.bf16.mxu0 %v593
    %1977 = vmatmul.mubr.bf16.gmra.mrb[0].mxu0 %v592
    %v1978 = vpop.f32.mrb[0].mxu0
    %v1979 = vadd.f32 %v1866, %v1978
    %v1980 = vpop.f32.mrb[0].mxu0
    %v1981 = vadd.f32 %v1868, %v1980
    %v1982 = vpop.f32.mrb[0].mxu0
    %v1983 = vadd.f32 %v1870, %v1982
    %v1984 = vpop.f32.mrb[0].mxu0
    %v1985 = vadd.f32 %v1872, %v1984
    %1986 = vmatprep.mubr.bf16.mxu0 %v600
    %1987 = vmatmul.mubr.bf16.gmra.mrb[0].mxu0 %v599
    %v1988 = vpop.f32.mrb[0].mxu0
    %v1989 = vadd.f32 %v1876, %v1988
    %v1990 = vpop.f32.mrb[0].mxu0
    %v1991 = vadd.f32 %v1878, %v1990
    %v1992 = vpop.f32.mrb[0].mxu0
    %v1993 = vadd.f32 %v1880, %v1992
    %v1994 = vpop.f32.mrb[0].mxu0
    %v1995 = vadd.f32 %v1882, %v1994
    %1996 = vmatprep.mubr.bf16.mxu0 %v607
    %1997 = vmatmul.mubr.bf16.gmra.mrb[0].mxu0 %v606
    %v1998 = vpop.f32.mrb[0].mxu0
    %v1999 = vadd.f32 %v1886, %v1998
    %v2000 = vpop.f32.mrb[0].mxu0
    %v2001 = vadd.f32 %v1888, %v2000
    %v2002 = vpop.f32.mrb[0].mxu0
    %v2003 = vadd.f32 %v1890, %v2002
    %v2004 = vpop.f32.mrb[0].mxu0
    %v2005 = vadd.f32 %v1892, %v2004
    %2006 = vmatprep.mubr.bf16.mxu0 %v614
    %2007 = vmatmul.mubr.bf16.gmra.mrb[0].mxu0 %v613
    %v2008 = vpop.f32.mrb[0].mxu0
    %v2009 = vadd.f32 %v1896, %v2008
    %v2010 = vpop.f32.mrb[0].mxu0
    %v2011 = vadd.f32 %v1898, %v2010
    %v2012 = vpop.f32.mrb[0].mxu0
    %v2013 = vadd.f32 %v1900, %v2012
    %v2014 = vpop.f32.mrb[0].mxu0
    %v2015 = vadd.f32 %v1902, %v2014
    %2016 = vmatprep.mubr.bf16.mxu0 %v621
    %2017 = vmatmul.mubr.bf16.gmra.mrb[0].mxu0 %v620
    %v2018 = vpop.f32.mrb[0].mxu0
    %v2019 = vadd.f32 %v1906, %v2018
    %v2020 = vpop.f32.mrb[0].mxu0
    %v2021 = vadd.f32 %v1908, %v2020
    %v2022 = vpop.f32.mrb[0].mxu0
    %v2023 = vadd.f32 %v1910, %v2022
    %v2024 = vpop.f32.mrb[0].mxu0
    %v2025 = vadd.f32 %v1912, %v2024
    %2026 = vdwg.mxu0
    %2027 = vmatprep.subr.bf16.mxu0 %v1482
    %2028 = vmatpush1.bf16.msra.mxu0 %v1481
    %2029 = vmatprep.subr.bf16.mxu0 %v1486
    %2030 = vmatpush1.bf16.msra.mxu0 %v1485
    %2031 = vmatprep.subr.bf16.mxu0 %v1490
    %2032 = vmatpush1.bf16.msra.mxu0 %v1489
    %2033 = vmatprep.subr.bf16.mxu0 %v1494
    %2034 = vmatpush1.bf16.msra.mxu0 %v1493
    %2035 = vmatprep.subr.bf16.mxu0 %v1498
    %2036 = vmatpush1.bf16.msra.mxu0 %v1497
    %2037 = vmatprep.subr.bf16.mxu0 %v1502
    %2038 = vmatpush1.bf16.msra.mxu0 %v1501
    %2039 = vmatprep.subr.bf16.mxu0 %v1506
    %2040 = vmatpush1.bf16.msra.mxu0 %v1505
    %2041 = vmatprep.subr.bf16.mxu0 %v1510
    %2042 = vmatpush1.bf16.msra.mxu0 %v1509
    %2043 = vmatprep.subr.bf16.mxu0 %v1514
    %2044 = vmatpush1.bf16.msra.mxu0 %v1513
    %2045 = vmatprep.subr.bf16.mxu0 %v1518
    %2046 = vmatpush1.bf16.msra.mxu0 %v1517
    %2047 = vmatprep.subr.bf16.mxu0 %v1522
    %2048 = vmatpush1.bf16.msra.mxu0 %v1521
    %2049 = vmatprep.subr.bf16.mxu0 %v1526
    %2050 = vmatpush1.bf16.msra.mxu0 %v1525
    %2051 = vmatprep.subr.bf16.mxu0 %v1530
    %2052 = vmatpush1.bf16.msra.mxu0 %v1529
    %2053 = vmatprep.subr.bf16.mxu0 %v1534
    %2054 = vmatpush1.bf16.msra.mxu0 %v1533
    %2055 = vmatprep.subr.bf16.mxu0 %v1538
    %2056 = vmatpush1.bf16.msra.mxu0 %v1537
    %2057 = vmatprep.subr.bf16.mxu0 %v1542
    %2058 = vmatpush1.bf16.msra.mxu0 %v1541
    %2059 = vmatprep.mubr.bf16.mxu0 %v574
    %2060 = vmatmul.mubr.bf16.gmra.mrb[0].mxu0 %v573
    %v2061 = vpop.f32.mrb[0].mxu0
    %v2062 = vadd.f32 %v1949, %v2061
    %v2063 = vpop.f32.mrb[0].mxu0
    %v2064 = vadd.f32 %v1951, %v2063
    %v2065 = vpop.f32.mrb[0].mxu0
    %v2066 = vadd.f32 %v1953, %v2065
    %v2067 = vpop.f32.mrb[0].mxu0
    %v2068 = vadd.f32 %v1955, %v2067
    %2069 = vmatprep.mubr.bf16.mxu0 %v581
    %2070 = vmatmul.mubr.bf16.gmra.mrb[0].mxu0 %v580
    %v2071 = vpop.f32.mrb[0].mxu0
    %v2072 = vadd.f32 %v1959, %v2071
    %v2073 = vpop.f32.mrb[0].mxu0
    %v2074 = vadd.f32 %v1961, %v2073
    %v2075 = vpop.f32.mrb[0].mxu0
    %v2076 = vadd.f32 %v1963, %v2075
    %v2077 = vpop.f32.mrb[0].mxu0
    %v2078 = vadd.f32 %v1965, %v2077
    %2079 = vmatprep.mubr.bf16.mxu0 %v588
    %2080 = vmatmul.mubr.bf16.gmra.mrb[0].mxu0 %v587
    %v2081 = vpop.f32.mrb[0].mxu0
    %v2082 = vadd.f32 %v1969, %v2081
    %v2083 = vpop.f32.mrb[0].mxu0
    %v2084 = vadd.f32 %v1971, %v2083
    %v2085 = vpop.f32.mrb[0].mxu0
    %v2086 = vadd.f32 %v1973, %v2085
    %v2087 = vpop.f32.mrb[0].mxu0
    %v2088 = vadd.f32 %v1975, %v2087
    %2089 = vmatprep.mubr.bf16.mxu0 %v595
    %2090 = vmatmul.mubr.bf16.gmra.mrb[0].mxu0 %v594
    %v2091 = vpop.f32.mrb[0].mxu0
    %v2092 = vadd.f32 %v1979, %v2091
    %v2093 = vpop.f32.mrb[0].mxu0
    %v2094 = vadd.f32 %v1981, %v2093
    %v2095 = vpop.f32.mrb[0].mxu0
    %v2096 = vadd.f32 %v1983, %v2095
    %v2097 = vpop.f32.mrb[0].mxu0
    %v2098 = vadd.f32 %v1985, %v2097
    %2099 = vmatprep.mubr.bf16.mxu0 %v602
    %2100 = vmatmul.mubr.bf16.gmra.mrb[0].mxu0 %v601
    %v2101 = vpop.f32.mrb[0].mxu0
    %v2102 = vadd.f32 %v1989, %v2101
    %v2103 = vpop.f32.mrb[0].mxu0
    %v2104 = vadd.f32 %v1991, %v2103
    %v2105 = vpop.f32.mrb[0].mxu0
    %v2106 = vadd.f32 %v1993, %v2105
    %v2107 = vpop.f32.mrb[0].mxu0
    %v2108 = vadd.f32 %v1995, %v2107
    %2109 = vmatprep.mubr.bf16.mxu0 %v609
    %2110 = vmatmul.mubr.bf16.gmra.mrb[0].mxu0 %v608
    %v2111 = vpop.f32.mrb[0].mxu0
    %v2112 = vadd.f32 %v1999, %v2111
    %v2113 = vpop.f32.mrb[0].mxu0
    %v2114 = vadd.f32 %v2001, %v2113
    %v2115 = vpop.f32.mrb[0].mxu0
    %v2116 = vadd.f32 %v2003, %v2115
    %v2117 = vpop.f32.mrb[0].mxu0
    %v2118 = vadd.f32 %v2005, %v2117
    %2119 = vmatprep.mubr.bf16.mxu0 %v616
    %2120 = vmatmul.mubr.bf16.gmra.mrb[0].mxu0 %v615
    %v2121 = vpop.f32.mrb[0].mxu0
    %v2122 = vadd.f32 %v2009, %v2121
    %v2123 = vpop.f32.mrb[0].mxu0
    %v2124 = vadd.f32 %v2011, %v2123
    %v2125 = vpop.f32.mrb[0].mxu0
    %v2126 = vadd.f32 %v2013, %v2125
    %v2127 = vpop.f32.mrb[0].mxu0
    %v2128 = vadd.f32 %v2015, %v2127
    %2129 = vmatprep.mubr.bf16.mxu0 %v623
    %2130 = vmatmul.mubr.bf16.gmra.mrb[0].mxu0 %v622
    %v2131 = vpop.f32.mrb[0].mxu0
    %v2132 = vadd.f32 %v2019, %v2131
    %v2133 = vpop.f32.mrb[0].mxu0
    %v2134 = vadd.f32 %v2021, %v2133
    %v2135 = vpop.f32.mrb[0].mxu0
    %v2136 = vadd.f32 %v2023, %v2135
    %v2137 = vpop.f32.mrb[0].mxu0
    %v2138 = vadd.f32 %v2025, %v2137
    %2139 = vdwg.mxu0
    %2140 = vmatprep.subr.bf16.mxu0 %v1546
    %2141 = vmatpush1.bf16.msra.mxu0 %v1545
    %2142 = vmatprep.subr.bf16.mxu0 %v1550
    %2143 = vmatpush1.bf16.msra.mxu0 %v1549
    %2144 = vmatprep.subr.bf16.mxu0 %v1554
    %2145 = vmatpush1.bf16.msra.mxu0 %v1553
    %2146 = vmatprep.subr.bf16.mxu0 %v1558
    %2147 = vmatpush1.bf16.msra.mxu0 %v1557
    %2148 = vmatprep.subr.bf16.mxu0 %v1562
    %2149 = vmatpush1.bf16.msra.mxu0 %v1561
    %2150 = vmatprep.subr.bf16.mxu0 %v1566
    %2151 = vmatpush1.bf16.msra.mxu0 %v1565
    %2152 = vmatprep.subr.bf16.mxu0 %v1570
    %2153 = vmatpush1.bf16.msra.mxu0 %v1569
    %2154 = vmatprep.subr.bf16.mxu0 %v1574
    %2155 = vmatpush1.bf16.msra.mxu0 %v1573
    %2156 = vmatprep.subr.bf16.mxu0 0
    %2157 = vmatpush1.bf16.msra.mxu0 0
    %2158 = vmatprep.subr.bf16.mxu0 0
    %2159 = vmatpush1.bf16.msra.mxu0 0
    %2160 = vmatprep.subr.bf16.mxu0 0
    %2161 = vmatpush1.bf16.msra.mxu0 0
    %2162 = vmatprep.subr.bf16.mxu0 0
    %2163 = vmatpush1.bf16.msra.mxu0 0
    %2164 = vmatprep.subr.bf16.mxu0 0
    %2165 = vmatpush1.bf16.msra.mxu0 0
    %2166 = vmatprep.subr.bf16.mxu0 0
    %2167 = vmatpush1.bf16.msra.mxu0 0
    %2168 = vmatprep.subr.bf16.mxu0 0
    %2169 = vmatpush1.bf16.msra.mxu0 0
    %2170 = vmatprep.subr.bf16.mxu0 0
    %2171 = vmatpush1.bf16.msra.mxu0 0
    %2172 = vmatprep.mubr.bf16.mxu0 0
    %2173 = vmatmul.mubr.bf16.gmra.mrb[0].mxu0 %v575
    %v2174 = vpop.f32.mrb[0].mxu0
    %v2175 = vadd.f32 %v2062, %v2174
    %v2176 = vpop.f32.mrb[0].mxu0
    %v2177 = vadd.f32 %v2064, %v2176
    %v2178 = vpop.f32.mrb[0].mxu0
    %v2179 = vadd.f32 %v2066, %v2178
    %v2180 = vpop.f32.mrb[0].mxu0
    %v2181 = vadd.f32 %v2068, %v2180
    %2182 = vmatprep.mubr.bf16.mxu0 0
    %2183 = vmatmul.mubr.bf16.gmra.mrb[0].mxu0 %v582
    %v2184 = vpop.f32.mrb[0].mxu0
    %v2185 = vadd.f32 %v2072, %v2184
    %v2186 = vpop.f32.mrb[0].mxu0
    %v2187 = vadd.f32 %v2074, %v2186
    %v2188 = vpop.f32.mrb[0].mxu0
    %v2189 = vadd.f32 %v2076, %v2188
    %v2190 = vpop.f32.mrb[0].mxu0
    %v2191 = vadd.f32 %v2078, %v2190
    %2192 = vmatprep.mubr.bf16.mxu0 0
    %2193 = vmatmul.mubr.bf16.gmra.mrb[0].mxu0 %v589
    %v2194 = vpop.f32.mrb[0].mxu0
    %v2195 = vadd.f32 %v2082, %v2194
    %v2196 = vpop.f32.mrb[0].mxu0
    %v2197 = vadd.f32 %v2084, %v2196
    %v2198 = vpop.f32.mrb[0].mxu0
    %v2199 = vadd.f32 %v2086, %v2198
    %v2200 = vpop.f32.mrb[0].mxu0
    %v2201 = vadd.f32 %v2088, %v2200
    %2202 = vmatprep.mubr.bf16.mxu0 0
    %2203 = vmatmul.mubr.bf16.gmra.mrb[0].mxu0 %v596
    %v2204 = vpop.f32.mrb[0].mxu0
    %v2205 = vadd.f32 %v2092, %v2204
    %v2206 = vpop.f32.mrb[0].mxu0
    %v2207 = vadd.f32 %v2094, %v2206
    %v2208 = vpop.f32.mrb[0].mxu0
    %v2209 = vadd.f32 %v2096, %v2208
    %v2210 = vpop.f32.mrb[0].mxu0
    %v2211 = vadd.f32 %v2098, %v2210
    %2212 = vmatprep.mubr.bf16.mxu0 0
    %2213 = vmatmul.mubr.bf16.gmra.mrb[0].mxu0 %v603
    %v2214 = vpop.f32.mrb[0].mxu0
    %v2215 = vadd.f32 %v2102, %v2214
    %v2216 = vpop.f32.mrb[0].mxu0
    %v2217 = vadd.f32 %v2104, %v2216
    %v2218 = vpop.f32.mrb[0].mxu0
    %v2219 = vadd.f32 %v2106, %v2218
    %v2220 = vpop.f32.mrb[0].mxu0
    %v2221 = vadd.f32 %v2108, %v2220
    %2222 = vmatprep.mubr.bf16.mxu0 0
    %2223 = vmatmul.mubr.bf16.gmra.mrb[0].mxu0 %v610
    %v2224 = vpop.f32.mrb[0].mxu0
    %v2225 = vadd.f32 %v2112, %v2224
    %v2226 = vpop.f32.mrb[0].mxu0
    %v2227 = vadd.f32 %v2114, %v2226
    %v2228 = vpop.f32.mrb[0].mxu0
    %v2229 = vadd.f32 %v2116, %v2228
    %v2230 = vpop.f32.mrb[0].mxu0
    %v2231 = vadd.f32 %v2118, %v2230
    %2232 = vmatprep.mubr.bf16.mxu0 0
    %2233 = vmatmul.mubr.bf16.gmra.mrb[0].mxu0 %v617
    %v2234 = vpop.f32.mrb[0].mxu0
    %v2235 = vadd.f32 %v2122, %v2234
    %v2236 = vpop.f32.mrb[0].mxu0
    %v2237 = vadd.f32 %v2124, %v2236
    %v2238 = vpop.f32.mrb[0].mxu0
    %v2239 = vadd.f32 %v2126, %v2238
    %v2240 = vpop.f32.mrb[0].mxu0
    %v2241 = vadd.f32 %v2128, %v2240
    %2242 = vmatprep.mubr.bf16.mxu0 0
    %2243 = vmatmul.mubr.bf16.gmra.mrb[0].mxu0 %v624
    %v2244 = vpop.f32.mrb[0].mxu0
    %v2245 = vadd.f32 %v2132, %v2244
    %v2246 = vpop.f32.mrb[0].mxu0
    %v2247 = vadd.f32 %v2134, %v2246
    %v2248 = vpop.f32.mrb[0].mxu0
    %v2249 = vadd.f32 %v2136, %v2248
    %v2250 = vpop.f32.mrb[0].mxu0
    %v2251 = vadd.f32 %v2138, %v2250
    %2252 = vdwg.mxu0
    %2253 = vmatprep.subr.bf16.mxu0 %v1356
    %2254 = vmatpush1.bf16.msra.mxu0 %v1355
    %2255 = vmatprep.subr.bf16.mxu0 %v1360
    %2256 = vmatpush1.bf16.msra.mxu0 %v1359
    %2257 = vmatprep.subr.bf16.mxu0 %v1364
    %2258 = vmatpush1.bf16.msra.mxu0 %v1363
    %2259 = vmatprep.subr.bf16.mxu0 %v1368
    %2260 = vmatpush1.bf16.msra.mxu0 %v1367
    %2261 = vmatprep.subr.bf16.mxu0 %v1372
    %2262 = vmatpush1.bf16.msra.mxu0 %v1371
    %2263 = vmatprep.subr.bf16.mxu0 %v1376
    %2264 = vmatpush1.bf16.msra.mxu0 %v1375
    %2265 = vmatprep.subr.bf16.mxu0 %v1380
    %2266 = vmatpush1.bf16.msra.mxu0 %v1379
    %2267 = vmatprep.subr.bf16.mxu0 %v1384
    %2268 = vmatpush1.bf16.msra.mxu0 %v1383
    %2269 = vmatprep.subr.bf16.mxu0 %v1388
    %2270 = vmatpush1.bf16.msra.mxu0 %v1387
    %2271 = vmatprep.subr.bf16.mxu0 %v1392
    %2272 = vmatpush1.bf16.msra.mxu0 %v1391
    %2273 = vmatprep.subr.bf16.mxu0 %v1396
    %2274 = vmatpush1.bf16.msra.mxu0 %v1395
    %2275 = vmatprep.subr.bf16.mxu0 %v1400
    %2276 = vmatpush1.bf16.msra.mxu0 %v1399
    %2277 = vmatprep.subr.bf16.mxu0 %v1404
    %2278 = vmatpush1.bf16.msra.mxu0 %v1403
    %2279 = vmatprep.subr.bf16.mxu0 %v1408
    %2280 = vmatpush1.bf16.msra.mxu0 %v1407
    %2281 = vmatprep.subr.bf16.mxu0 %v1412
    %2282 = vmatpush1.bf16.msra.mxu0 %v1411
    %2283 = vmatprep.subr.bf16.mxu0 %v1416
    %2284 = vmatpush1.bf16.msra.mxu0 %v1415
    %2285 = vmatprep.mubr.bf16.mxu0 %v570
    %2286 = vmatmul.mubr.bf16.gmra.mrb[0].mxu0 %v569
    %v2287 = vpop.f32.mrb[0].mxu0
    %v2288 = vadd.f32 %v384, %v2287
    %v2289 = vpop.f32.mrb[0].mxu0
    %v2290 = vadd.f32 %v388, %v2289
    %v2291 = vpop.f32.mrb[0].mxu0
    %v2292 = vadd.f32 %v384, %v2291
    %v2293 = vpop.f32.mrb[0].mxu0
    %v2294 = vadd.f32 %v388, %v2293
    %2295 = vmatprep.mubr.bf16.mxu0 %v577
    %2296 = vmatmul.mubr.bf16.gmra.mrb[0].mxu0 %v576
    %v2297 = vpop.f32.mrb[0].mxu0
    %v2298 = vadd.f32 %v384, %v2297
    %v2299 = vpop.f32.mrb[0].mxu0
    %v2300 = vadd.f32 %v388, %v2299
    %v2301 = vpop.f32.mrb[0].mxu0
    %v2302 = vadd.f32 %v384, %v2301
    %v2303 = vpop.f32.mrb[0].mxu0
    %v2304 = vadd.f32 %v388, %v2303
    %2305 = vmatprep.mubr.bf16.mxu0 %v584
    %2306 = vmatmul.mubr.bf16.gmra.mrb[0].mxu0 %v583
    %v2307 = vpop.f32.mrb[0].mxu0
    %v2308 = vadd.f32 %v384, %v2307
    %v2309 = vpop.f32.mrb[0].mxu0
    %v2310 = vadd.f32 %v388, %v2309
    %v2311 = vpop.f32.mrb[0].mxu0
    %v2312 = vadd.f32 %v384, %v2311
    %v2313 = vpop.f32.mrb[0].mxu0
    %v2314 = vadd.f32 %v388, %v2313
    %2315 = vmatprep.mubr.bf16.mxu0 %v591
    %2316 = vmatmul.mubr.bf16.gmra.mrb[0].mxu0 %v590
    %v2317 = vpop.f32.mrb[0].mxu0
    %v2318 = vadd.f32 %v384, %v2317
    %v2319 = vpop.f32.mrb[0].mxu0
    %v2320 = vadd.f32 %v388, %v2319
    %v2321 = vpop.f32.mrb[0].mxu0
    %v2322 = vadd.f32 %v384, %v2321
    %v2323 = vpop.f32.mrb[0].mxu0
    %v2324 = vadd.f32 %v388, %v2323
    %2325 = vmatprep.mubr.bf16.mxu0 %v598
    %2326 = vmatmul.mubr.bf16.gmra.mrb[0].mxu0 %v597
    %v2327 = vpop.f32.mrb[0].mxu0
    %v2328 = vadd.f32 %v384, %v2327
    %v2329 = vpop.f32.mrb[0].mxu0
    %v2330 = vadd.f32 %v388, %v2329
    %v2331 = vpop.f32.mrb[0].mxu0
    %v2332 = vadd.f32 %v384, %v2331
    %v2333 = vpop.f32.mrb[0].mxu0
    %v2334 = vadd.f32 %v388, %v2333
    %2335 = vmatprep.mubr.bf16.mxu0 %v605
    %2336 = vmatmul.mubr.bf16.gmra.mrb[0].mxu0 %v604
    %v2337 = vpop.f32.mrb[0].mxu0
    %v2338 = vadd.f32 %v384, %v2337
    %v2339 = vpop.f32.mrb[0].mxu0
    %v2340 = vadd.f32 %v388, %v2339
    %v2341 = vpop.f32.mrb[0].mxu0
    %v2342 = vadd.f32 %v384, %v2341
    %v2343 = vpop.f32.mrb[0].mxu0
    %v2344 = vadd.f32 %v388, %v2343
    %2345 = vmatprep.mubr.bf16.mxu0 %v612
    %2346 = vmatmul.mubr.bf16.gmra.mrb[0].mxu0 %v611
    %v2347 = vpop.f32.mrb[0].mxu0
    %v2348 = vadd.f32 %v384, %v2347
    %v2349 = vpop.f32.mrb[0].mxu0
    %v2350 = vadd.f32 %v388, %v2349
    %v2351 = vpop.f32.mrb[0].mxu0
    %v2352 = vadd.f32 %v384, %v2351
    %v2353 = vpop.f32.mrb[0].mxu0
    %v2354 = vadd.f32 %v388, %v2353
    %2355 = vmatprep.mubr.bf16.mxu0 %v619
    %2356 = vmatmul.mubr.bf16.gmra.mrb[0].mxu0 %v618
    %v2357 = vpop.f32.mrb[0].mxu0
    %v2358 = vadd.f32 %v384, %v2357
    %v2359 = vpop.f32.mrb[0].mxu0
    %v2360 = vadd.f32 %v388, %v2359
    %v2361 = vpop.f32.mrb[0].mxu0
    %v2362 = vadd.f32 %v384, %v2361
    %v2363 = vpop.f32.mrb[0].mxu0
    %v2364 = vadd.f32 %v388, %v2363
    %2365 = vdwg.mxu0
    %2366 = vmatprep.subr.bf16.mxu0 %v1420
    %2367 = vmatpush1.bf16.msra.mxu0 %v1419
    %2368 = vmatprep.subr.bf16.mxu0 %v1424
    %2369 = vmatpush1.bf16.msra.mxu0 %v1423
    %2370 = vmatprep.subr.bf16.mxu0 %v1428
    %2371 = vmatpush1.bf16.msra.mxu0 %v1427
    %2372 = vmatprep.subr.bf16.mxu0 %v1432
    %2373 = vmatpush1.bf16.msra.mxu0 %v1431
    %2374 = vmatprep.subr.bf16.mxu0 %v1436
    %2375 = vmatpush1.bf16.msra.mxu0 %v1435
    %2376 = vmatprep.subr.bf16.mxu0 %v1440
    %2377 = vmatpush1.bf16.msra.mxu0 %v1439
    %2378 = vmatprep.subr.bf16.mxu0 %v1444
    %2379 = vmatpush1.bf16.msra.mxu0 %v1443
    %2380 = vmatprep.subr.bf16.mxu0 %v1448
    %2381 = vmatpush1.bf16.msra.mxu0 %v1447
    %2382 = vmatprep.subr.bf16.mxu0 %v1452
    %2383 = vmatpush1.bf16.msra.mxu0 %v1451
    %2384 = vmatprep.subr.bf16.mxu0 %v1456
    %2385 = vmatpush1.bf16.msra.mxu0 %v1455
    %2386 = vmatprep.subr.bf16.mxu0 %v1460
    %2387 = vmatpush1.bf16.msra.mxu0 %v1459
    %2388 = vmatprep.subr.bf16.mxu0 %v1464
    %2389 = vmatpush1.bf16.msra.mxu0 %v1463
    %2390 = vmatprep.subr.bf16.mxu0 %v1468
    %2391 = vmatpush1.bf16.msra.mxu0 %v1467
    %2392 = vmatprep.subr.bf16.mxu0 %v1472
    %2393 = vmatpush1.bf16.msra.mxu0 %v1471
    %2394 = vmatprep.subr.bf16.mxu0 %v1476
    %2395 = vmatpush1.bf16.msra.mxu0 %v1475
    %2396 = vmatprep.subr.bf16.mxu0 %v1480
    %2397 = vmatpush1.bf16.msra.mxu0 %v1479
    %2398 = vmatprep.mubr.bf16.mxu0 %v572
    %2399 = vmatmul.mubr.bf16.gmra.mrb[0].mxu0 %v571
    %v2400 = vpop.f32.mrb[0].mxu0
    %v2401 = vadd.f32 %v2288, %v2400
    %v2402 = vpop.f32.mrb[0].mxu0
    %v2403 = vadd.f32 %v2290, %v2402
    %v2404 = vpop.f32.mrb[0].mxu0
    %v2405 = vadd.f32 %v2292, %v2404
    %v2406 = vpop.f32.mrb[0].mxu0
    %v2407 = vadd.f32 %v2294, %v2406
    %2408 = vmatprep.mubr.bf16.mxu0 %v579
    %2409 = vmatmul.mubr.bf16.gmra.mrb[0].mxu0 %v578
    %v2410 = vpop.f32.mrb[0].mxu0
    %v2411 = vadd.f32 %v2298, %v2410
    %v2412 = vpop.f32.mrb[0].mxu0
    %v2413 = vadd.f32 %v2300, %v2412
    %v2414 = vpop.f32.mrb[0].mxu0
    %v2415 = vadd.f32 %v2302, %v2414
    %v2416 = vpop.f32.mrb[0].mxu0
    %v2417 = vadd.f32 %v2304, %v2416
    %2418 = vmatprep.mubr.bf16.mxu0 %v586
    %2419 = vmatmul.mubr.bf16.gmra.mrb[0].mxu0 %v585
    %v2420 = vpop.f32.mrb[0].mxu0
    %v2421 = vadd.f32 %v2308, %v2420
    %v2422 = vpop.f32.mrb[0].mxu0
    %v2423 = vadd.f32 %v2310, %v2422
    %v2424 = vpop.f32.mrb[0].mxu0
    %v2425 = vadd.f32 %v2312, %v2424
    %v2426 = vpop.f32.mrb[0].mxu0
    %v2427 = vadd.f32 %v2314, %v2426
    %2428 = vmatprep.mubr.bf16.mxu0 %v593
    %2429 = vmatmul.mubr.bf16.gmra.mrb[0].mxu0 %v592
    %v2430 = vpop.f32.mrb[0].mxu0
    %v2431 = vadd.f32 %v2318, %v2430
    %v2432 = vpop.f32.mrb[0].mxu0
    %v2433 = vadd.f32 %v2320, %v2432
    %v2434 = vpop.f32.mrb[0].mxu0
    %v2435 = vadd.f32 %v2322, %v2434
    %v2436 = vpop.f32.mrb[0].mxu0
    %v2437 = vadd.f32 %v2324, %v2436
    %2438 = vmatprep.mubr.bf16.mxu0 %v600
    %2439 = vmatmul.mubr.bf16.gmra.mrb[0].mxu0 %v599
    %v2440 = vpop.f32.mrb[0].mxu0
    %v2441 = vadd.f32 %v2328, %v2440
    %v2442 = vpop.f32.mrb[0].mxu0
    %v2443 = vadd.f32 %v2330, %v2442
    %v2444 = vpop.f32.mrb[0].mxu0
    %v2445 = vadd.f32 %v2332, %v2444
    %v2446 = vpop.f32.mrb[0].mxu0
    %v2447 = vadd.f32 %v2334, %v2446
    %2448 = vmatprep.mubr.bf16.mxu0 %v607
    %2449 = vmatmul.mubr.bf16.gmra.mrb[0].mxu0 %v606
    %v2450 = vpop.f32.mrb[0].mxu0
    %v2451 = vadd.f32 %v2338, %v2450
    %v2452 = vpop.f32.mrb[0].mxu0
    %v2453 = vadd.f32 %v2340, %v2452
    %v2454 = vpop.f32.mrb[0].mxu0
    %v2455 = vadd.f32 %v2342, %v2454
    %v2456 = vpop.f32.mrb[0].mxu0
    %v2457 = vadd.f32 %v2344, %v2456
    %2458 = vmatprep.mubr.bf16.mxu0 %v614
    %2459 = vmatmul.mubr.bf16.gmra.mrb[0].mxu0 %v613
    %v2460 = vpop.f32.mrb[0].mxu0
    %v2461 = vadd.f32 %v2348, %v2460
    %v2462 = vpop.f32.mrb[0].mxu0
    %v2463 = vadd.f32 %v2350, %v2462
    %v2464 = vpop.f32.mrb[0].mxu0
    %v2465 = vadd.f32 %v2352, %v2464
    %v2466 = vpop.f32.mrb[0].mxu0
    %v2467 = vadd.f32 %v2354, %v2466
    %2468 = vmatprep.mubr.bf16.mxu0 %v621
    %2469 = vmatmul.mubr.bf16.gmra.mrb[0].mxu0 %v620
    %v2470 = vpop.f32.mrb[0].mxu0
    %v2471 = vadd.f32 %v2358, %v2470
    %v2472 = vpop.f32.mrb[0].mxu0
    %v2473 = vadd.f32 %v2360, %v2472
    %v2474 = vpop.f32.mrb[0].mxu0
    %v2475 = vadd.f32 %v2362, %v2474
    %v2476 = vpop.f32.mrb[0].mxu0
    %v2477 = vadd.f32 %v2364, %v2476
    %2478 = vdwg.mxu0
    %2479 = vmatprep.subr.bf16.mxu0 %v1484
    %2480 = vmatpush1.bf16.msra.mxu0 %v1483
    %2481 = vmatprep.subr.bf16.mxu0 %v1488
    %2482 = vmatpush1.bf16.msra.mxu0 %v1487
    %2483 = vmatprep.subr.bf16.mxu0 %v1492
    %2484 = vmatpush1.bf16.msra.mxu0 %v1491
    %2485 = vmatprep.subr.bf16.mxu0 %v1496
    %2486 = vmatpush1.bf16.msra.mxu0 %v1495
    %2487 = vmatprep.subr.bf16.mxu0 %v1500
    %2488 = vmatpush1.bf16.msra.mxu0 %v1499
    %2489 = vmatprep.subr.bf16.mxu0 %v1504
    %2490 = vmatpush1.bf16.msra.mxu0 %v1503
    %2491 = vmatprep.subr.bf16.mxu0 %v1508
    %2492 = vmatpush1.bf16.msra.mxu0 %v1507
    %2493 = vmatprep.subr.bf16.mxu0 %v1512
    %2494 = vmatpush1.bf16.msra.mxu0 %v1511
    %2495 = vmatprep.subr.bf16.mxu0 %v1516
    %2496 = vmatpush1.bf16.msra.mxu0 %v1515
    %2497 = vmatprep.subr.bf16.mxu0 %v1520
    %2498 = vmatpush1.bf16.msra.mxu0 %v1519
    %2499 = vmatprep.subr.bf16.mxu0 %v1524
    %2500 = vmatpush1.bf16.msra.mxu0 %v1523
    %2501 = vmatprep.subr.bf16.mxu0 %v1528
    %2502 = vmatpush1.bf16.msra.mxu0 %v1527
    %2503 = vmatprep.subr.bf16.mxu0 %v1532
    %2504 = vmatpush1.bf16.msra.mxu0 %v1531
    %2505 = vmatprep.subr.bf16.mxu0 %v1536
    %2506 = vmatpush1.bf16.msra.mxu0 %v1535
    %2507 = vmatprep.subr.bf16.mxu0 %v1540
    %2508 = vmatpush1.bf16.msra.mxu0 %v1539
    %2509 = vmatprep.subr.bf16.mxu0 %v1544
    %2510 = vmatpush1.bf16.msra.mxu0 %v1543
    %2511 = vmatprep.mubr.bf16.mxu0 %v574
    %2512 = vmatmul.mubr.bf16.gmra.mrb[0].mxu0 %v573
    %v2513 = vpop.f32.mrb[0].mxu0
    %v2514 = vadd.f32 %v2401, %v2513
    %v2515 = vpop.f32.mrb[0].mxu0
    %v2516 = vadd.f32 %v2403, %v2515
    %v2517 = vpop.f32.mrb[0].mxu0
    %v2518 = vadd.f32 %v2405, %v2517
    %v2519 = vpop.f32.mrb[0].mxu0
    %v2520 = vadd.f32 %v2407, %v2519
    %2521 = vmatprep.mubr.bf16.mxu0 %v581
    %2522 = vmatmul.mubr.bf16.gmra.mrb[0].mxu0 %v580
    %v2523 = vpop.f32.mrb[0].mxu0
    %v2524 = vadd.f32 %v2411, %v2523
    %v2525 = vpop.f32.mrb[0].mxu0
    %v2526 = vadd.f32 %v2413, %v2525
    %v2527 = vpop.f32.mrb[0].mxu0
    %v2528 = vadd.f32 %v2415, %v2527
    %v2529 = vpop.f32.mrb[0].mxu0
    %v2530 = vadd.f32 %v2417, %v2529
    %2531 = vmatprep.mubr.bf16.mxu0 %v588
    %2532 = vmatmul.mubr.bf16.gmra.mrb[0].mxu0 %v587
    %v2533 = vpop.f32.mrb[0].mxu0
    %v2534 = vadd.f32 %v2421, %v2533
    %v2535 = vpop.f32.mrb[0].mxu0
    %v2536 = vadd.f32 %v2423, %v2535
    %v2537 = vpop.f32.mrb[0].mxu0
    %v2538 = vadd.f32 %v2425, %v2537
    %v2539 = vpop.f32.mrb[0].mxu0
    %v2540 = vadd.f32 %v2427, %v2539
    %2541 = vmatprep.mubr.bf16.mxu0 %v595
    %2542 = vmatmul.mubr.bf16.gmra.mrb[0].mxu0 %v594
    %v2543 = vpop.f32.mrb[0].mxu0
    %v2544 = vadd.f32 %v2431, %v2543
    %v2545 = vpop.f32.mrb[0].mxu0
    %v2546 = vadd.f32 %v2433, %v2545
    %v2547 = vpop.f32.mrb[0].mxu0
    %v2548 = vadd.f32 %v2435, %v2547
    %v2549 = vpop.f32.mrb[0].mxu0
    %v2550 = vadd.f32 %v2437, %v2549
    %2551 = vmatprep.mubr.bf16.mxu0 %v602
    %2552 = vmatmul.mubr.bf16.gmra.mrb[0].mxu0 %v601
    %v2553 = vpop.f32.mrb[0].mxu0
    %v2554 = vadd.f32 %v2441, %v2553
    %v2555 = vpop.f32.mrb[0].mxu0
    %v2556 = vadd.f32 %v2443, %v2555
    %v2557 = vpop.f32.mrb[0].mxu0
    %v2558 = vadd.f32 %v2445, %v2557
    %v2559 = vpop.f32.mrb[0].mxu0
    %v2560 = vadd.f32 %v2447, %v2559
    %2561 = vmatprep.mubr.bf16.mxu0 %v609
    %2562 = vmatmul.mubr.bf16.gmra.mrb[0].mxu0 %v608
    %v2563 = vpop.f32.mrb[0].mxu0
    %v2564 = vadd.f32 %v2451, %v2563
    %v2565 = vpop.f32.mrb[0].mxu0
    %v2566 = vadd.f32 %v2453, %v2565
    %v2567 = vpop.f32.mrb[0].mxu0
    %v2568 = vadd.f32 %v2455, %v2567
    %v2569 = vpop.f32.mrb[0].mxu0
    %v2570 = vadd.f32 %v2457, %v2569
    %2571 = vmatprep.mubr.bf16.mxu0 %v616
    %2572 = vmatmul.mubr.bf16.gmra.mrb[0].mxu0 %v615
    %v2573 = vpop.f32.mrb[0].mxu0
    %v2574 = vadd.f32 %v2461, %v2573
    %v2575 = vpop.f32.mrb[0].mxu0
    %v2576 = vadd.f32 %v2463, %v2575
    %v2577 = vpop.f32.mrb[0].mxu0
    %v2578 = vadd.f32 %v2465, %v2577
    %v2579 = vpop.f32.mrb[0].mxu0
    %v2580 = vadd.f32 %v2467, %v2579
    %2581 = vmatprep.mubr.bf16.mxu0 %v623
    %2582 = vmatmul.mubr.bf16.gmra.mrb[0].mxu0 %v622
    %v2583 = vpop.f32.mrb[0].mxu0
    %v2584 = vadd.f32 %v2471, %v2583
    %v2585 = vpop.f32.mrb[0].mxu0
    %v2586 = vadd.f32 %v2473, %v2585
    %v2587 = vpop.f32.mrb[0].mxu0
    %v2588 = vadd.f32 %v2475, %v2587
    %v2589 = vpop.f32.mrb[0].mxu0
    %v2590 = vadd.f32 %v2477, %v2589
    %2591 = vdwg.mxu0
    %2592 = vmatprep.subr.bf16.mxu0 %v1548
    %2593 = vmatpush1.bf16.msra.mxu0 %v1547
    %2594 = vmatprep.subr.bf16.mxu0 %v1552
    %2595 = vmatpush1.bf16.msra.mxu0 %v1551
    %2596 = vmatprep.subr.bf16.mxu0 %v1556
    %2597 = vmatpush1.bf16.msra.mxu0 %v1555
    %2598 = vmatprep.subr.bf16.mxu0 %v1560
    %2599 = vmatpush1.bf16.msra.mxu0 %v1559
    %2600 = vmatprep.subr.bf16.mxu0 %v1564
    %2601 = vmatpush1.bf16.msra.mxu0 %v1563
    %2602 = vmatprep.subr.bf16.mxu0 %v1568
    %2603 = vmatpush1.bf16.msra.mxu0 %v1567
    %2604 = vmatprep.subr.bf16.mxu0 %v1572
    %2605 = vmatpush1.bf16.msra.mxu0 %v1571
    %2606 = vmatprep.subr.bf16.mxu0 %v1576
    %2607 = vmatpush1.bf16.msra.mxu0 %v1575
    %2608 = vmatprep.subr.bf16.mxu0 0
    %2609 = vmatpush1.bf16.msra.mxu0 0
    %2610 = vmatprep.subr.bf16.mxu0 0
    %2611 = vmatpush1.bf16.msra.mxu0 0
    %2612 = vmatprep.subr.bf16.mxu0 0
    %2613 = vmatpush1.bf16.msra.mxu0 0
    %2614 = vmatprep.subr.bf16.mxu0 0
    %2615 = vmatpush1.bf16.msra.mxu0 0
    %2616 = vmatprep.subr.bf16.mxu0 0
    %2617 = vmatpush1.bf16.msra.mxu0 0
    %2618 = vmatprep.subr.bf16.mxu0 0
    %2619 = vmatpush1.bf16.msra.mxu0 0
    %2620 = vmatprep.subr.bf16.mxu0 0
    %2621 = vmatpush1.bf16.msra.mxu0 0
    %2622 = vmatprep.subr.bf16.mxu0 0
    %2623 = vmatpush1.bf16.msra.mxu0 0
    %2624 = vmatprep.mubr.bf16.mxu0 0
    %2625 = vmatmul.mubr.bf16.gmra.mrb[0].mxu0 %v575
    %v2626 = vpop.f32.mrb[0].mxu0
    %v2627 = vadd.f32 %v2514, %v2626
    %v2628 = vpop.f32.mrb[0].mxu0
    %v2629 = vadd.f32 %v2516, %v2628
    %v2630 = vpop.f32.mrb[0].mxu0
    %v2631 = vadd.f32 %v2518, %v2630
    %v2632 = vpop.f32.mrb[0].mxu0
    %v2633 = vadd.f32 %v2520, %v2632
    %2634 = vmatprep.mubr.bf16.mxu0 0
    %2635 = vmatmul.mubr.bf16.gmra.mrb[0].mxu0 %v582
    %v2636 = vpop.f32.mrb[0].mxu0
    %v2637 = vadd.f32 %v2524, %v2636
    %v2638 = vpop.f32.mrb[0].mxu0
    %v2639 = vadd.f32 %v2526, %v2638
    %v2640 = vpop.f32.mrb[0].mxu0
    %v2641 = vadd.f32 %v2528, %v2640
    %v2642 = vpop.f32.mrb[0].mxu0
    %v2643 = vadd.f32 %v2530, %v2642
    %2644 = vmatprep.mubr.bf16.mxu0 0
    %2645 = vmatmul.mubr.bf16.gmra.mrb[0].mxu0 %v589
    %v2646 = vpop.f32.mrb[0].mxu0
    %v2647 = vadd.f32 %v2534, %v2646
    %v2648 = vpop.f32.mrb[0].mxu0
    %v2649 = vadd.f32 %v2536, %v2648
    %v2650 = vpop.f32.mrb[0].mxu0
    %v2651 = vadd.f32 %v2538, %v2650
    %v2652 = vpop.f32.mrb[0].mxu0
    %v2653 = vadd.f32 %v2540, %v2652
    %2654 = vmatprep.mubr.bf16.mxu0 0
    %2655 = vmatmul.mubr.bf16.gmra.mrb[0].mxu0 %v596
    %v2656 = vpop.f32.mrb[0].mxu0
    %v2657 = vadd.f32 %v2544, %v2656
    %v2658 = vpop.f32.mrb[0].mxu0
    %v2659 = vadd.f32 %v2546, %v2658
    %v2660 = vpop.f32.mrb[0].mxu0
    %v2661 = vadd.f32 %v2548, %v2660
    %v2662 = vpop.f32.mrb[0].mxu0
    %v2663 = vadd.f32 %v2550, %v2662
    %2664 = vmatprep.mubr.bf16.mxu0 0
    %2665 = vmatmul.mubr.bf16.gmra.mrb[0].mxu0 %v603
    %v2666 = vpop.f32.mrb[0].mxu0
    %v2667 = vadd.f32 %v2554, %v2666
    %v2668 = vpop.f32.mrb[0].mxu0
    %v2669 = vadd.f32 %v2556, %v2668
    %v2670 = vpop.f32.mrb[0].mxu0
    %v2671 = vadd.f32 %v2558, %v2670
    %v2672 = vpop.f32.mrb[0].mxu0
    %v2673 = vadd.f32 %v2560, %v2672
    %2674 = vmatprep.mubr.bf16.mxu0 0
    %2675 = vmatmul.mubr.bf16.gmra.mrb[0].mxu0 %v610
    %v2676 = vpop.f32.mrb[0].mxu0
    %v2677 = vadd.f32 %v2564, %v2676
    %v2678 = vpop.f32.mrb[0].mxu0
    %v2679 = vadd.f32 %v2566, %v2678
    %v2680 = vpop.f32.mrb[0].mxu0
    %v2681 = vadd.f32 %v2568, %v2680
    %v2682 = vpop.f32.mrb[0].mxu0
    %v2683 = vadd.f32 %v2570, %v2682
    %2684 = vmatprep.mubr.bf16.mxu0 0
    %2685 = vmatmul.mubr.bf16.gmra.mrb[0].mxu0 %v617
    %v2686 = vpop.f32.mrb[0].mxu0
    %v2687 = vadd.f32 %v2574, %v2686
    %v2688 = vpop.f32.mrb[0].mxu0
    %v2689 = vadd.f32 %v2576, %v2688
    %v2690 = vpop.f32.mrb[0].mxu0
    %v2691 = vadd.f32 %v2578, %v2690
    %v2692 = vpop.f32.mrb[0].mxu0
    %v2693 = vadd.f32 %v2580, %v2692
    %2694 = vmatprep.mubr.bf16.mxu0 0
    %2695 = vmatmul.mubr.bf16.gmra.mrb[0].mxu0 %v624
    %v2696 = vpop.f32.mrb[0].mxu0
    %v2697 = vadd.f32 %v2584, %v2696
    %v2698 = vpop.f32.mrb[0].mxu0
    %v2699 = vadd.f32 %v2586, %v2698
    %v2700 = vpop.f32.mrb[0].mxu0
    %v2701 = vadd.f32 %v2588, %v2700
    %v2702 = vpop.f32.mrb[0].mxu0
    %v2703 = vadd.f32 %v2590, %v2702
    %2704 = vdwg.mxu0
    %v2705 = vmax.f32 %v2175, 0.0
    %v2706 = vmax.f32 %v2177, 0.0
    %v2707 = vmax.f32 %v2627, 0.0
    %v2708 = vmax.f32 %v2629, 0.0
    %v2709 = vmax.f32 %v2179, 0.0
    %v2710 = vmax.f32 %v2181, 0.0
    %v2711 = vmax.f32 %v2631, 0.0
    %v2712 = vmax.f32 %v2633, 0.0
    %v2713 = vmax.f32 %v2185, 0.0
    %v2714 = vmax.f32 %v2187, 0.0
    %v2715 = vmax.f32 %v2637, 0.0
    %v2716 = vmax.f32 %v2639, 0.0
    %v2717 = vmax.f32 %v2189, 0.0
    %v2718 = vmax.f32 %v2191, 0.0
    %v2719 = vmax.f32 %v2641, 0.0
    %v2720 = vmax.f32 %v2643, 0.0
    %v2721 = vmax.f32 %v2195, 0.0
    %v2722 = vmax.f32 %v2197, 0.0
    %v2723 = vmax.f32 %v2647, 0.0
    %v2724 = vmax.f32 %v2649, 0.0
    %v2725 = vmax.f32 %v2199, 0.0
    %v2726 = vmax.f32 %v2201, 0.0
    %v2727 = vmax.f32 %v2651, 0.0
    %v2728 = vmax.f32 %v2653, 0.0
    %v2729 = vmax.f32 %v2205, 0.0
    %v2730 = vmax.f32 %v2207, 0.0
    %v2731 = vmax.f32 %v2657, 0.0
    %v2732 = vmax.f32 %v2659, 0.0
    %v2733 = vmax.f32 %v2209, 0.0
    %v2734 = vmax.f32 %v2211, 0.0
    %v2735 = vmax.f32 %v2661, 0.0
    %v2736 = vmax.f32 %v2663, 0.0
    %v2737 = vmax.f32 %v2215, 0.0
    %v2738 = vmax.f32 %v2217, 0.0
    %v2739 = vmax.f32 %v2667, 0.0
    %v2740 = vmax.f32 %v2669, 0.0
    %v2741 = vmax.f32 %v2219, 0.0
    %v2742 = vmax.f32 %v2221, 0.0
    %v2743 = vmax.f32 %v2671, 0.0
    %v2744 = vmax.f32 %v2673, 0.0
    %v2745 = vmax.f32 %v2225, 0.0
    %v2746 = vmax.f32 %v2227, 0.0
    %v2747 = vmax.f32 %v2677, 0.0
    %v2748 = vmax.f32 %v2679, 0.0
    %v2749 = vmax.f32 %v2229, 0.0
    %v2750 = vmax.f32 %v2231, 0.0
    %v2751 = vmax.f32 %v2681, 0.0
    %v2752 = vmax.f32 %v2683, 0.0
    %v2753 = vmax.f32 %v2235, 0.0
    %v2754 = vmax.f32 %v2237, 0.0
    %v2755 = vmax.f32 %v2687, 0.0
    %v2756 = vmax.f32 %v2689, 0.0
    %v2757 = vmax.f32 %v2239, 0.0
    %v2758 = vmax.f32 %v2241, 0.0
    %v2759 = vmax.f32 %v2691, 0.0
    %v2760 = vmax.f32 %v2693, 0.0
    %v2761 = vmax.f32 %v2245, 0.0
    %v2762 = vmax.f32 %v2247, 0.0
    %v2763 = vmax.f32 %v2697, 0.0
    %v2764 = vmax.f32 %v2699, 0.0
    %v2765 = vmax.f32 %v2249, 0.0
    %v2766 = vmax.f32 %v2251, 0.0
    %v2767 = vmax.f32 %v2701, 0.0
    %v2768 = vmax.f32 %v2703, 0.0
    %v2769 = vpack.c.bf16 %v2709, %v2705
    %v2770 = vpack.c.bf16 %v2710, %v2706
    %v2771 = vpack.c.bf16 %v2711, %v2707
    %v2772 = vpack.c.bf16 %v2712, %v2708
    %v2773 = vpack.c.bf16 %v2717, %v2713
    %v2774 = vpack.c.bf16 %v2718, %v2714
    %v2775 = vpack.c.bf16 %v2719, %v2715
    %v2776 = vpack.c.bf16 %v2720, %v2716
    %v2777 = vpack.c.bf16 %v2725, %v2721
    %v2778 = vpack.c.bf16 %v2726, %v2722
    %v2779 = vpack.c.bf16 %v2727, %v2723
    %v2780 = vpack.c.bf16 %v2728, %v2724
    %v2781 = vpack.c.bf16 %v2733, %v2729
    %v2782 = vpack.c.bf16 %v2734, %v2730
    %v2783 = vpack.c.bf16 %v2735, %v2731
    %v2784 = vpack.c.bf16 %v2736, %v2732
    %v2785 = vpack.c.bf16 %v2741, %v2737
    %v2786 = vpack.c.bf16 %v2742, %v2738
    %v2787 = vpack.c.bf16 %v2743, %v2739
    %v2788 = vpack.c.bf16 %v2744, %v2740
    %v2789 = vpack.c.bf16 %v2749, %v2745
    %v2790 = vpack.c.bf16 %v2750, %v2746
    %v2791 = vpack.c.bf16 %v2751, %v2747
    %v2792 = vpack.c.bf16 %v2752, %v2748
    %v2793 = vpack.c.bf16 %v2757, %v2753
    %v2794 = vpack.c.bf16 %v2758, %v2754
    %v2795 = vpack.c.bf16 %v2759, %v2755
    %v2796 = vpack.c.bf16 %v2760, %v2756
    %v2797 = vpack.c.bf16 %v2765, %v2761
    %v2798 = vpack.c.bf16 %v2766, %v2762
    %v2799 = vpack.c.bf16 %v2767, %v2763
    %v2800 = vpack.c.bf16 %v2768, %v2764
    %v2801 = vld [vmem:[#allocation7] sm:$0xff]
    %v2802 = vld [vmem:[#allocation7 + $0x8] sm:$0xff]
    %v2803 = vld [vmem:[#allocation7 + $0x10] sm:$0xff]
    %v2804 = vld [vmem:[#allocation7 + $0x18] sm:$0xff]
    %v2805 = vld [vmem:[#allocation7 + $0x20] sm:$0xff]
    %v2806 = vld [vmem:[#allocation7 + $0x28] sm:$0xff]
    %v2807 = vld [vmem:[#allocation7 + $0x30] sm:$0xff]
    %v2808 = vld [vmem:[#allocation7 + $0x38] sm:$0xff]
    %v2809 = vld [vmem:[#allocation7 + $0x40] sm:$0xff]
    %v2810 = vld [vmem:[#allocation7 + $0x48] sm:$0xff]
    %v2811 = vld [vmem:[#allocation7 + $0x50] sm:$0xff]
    %v2812 = vld [vmem:[#allocation7 + $0x58] sm:$0xff]
    %v2813 = vld [vmem:[#allocation7 + $0x60] sm:$0xff]
    %v2814 = vld [vmem:[#allocation7 + $0x68] sm:$0xff]
    %v2815 = vld [vmem:[#allocation7 + $0x70] sm:$0xff]
    %v2816 = vld [vmem:[#allocation7 + $0x78] sm:$0xff]
    %v2817 = vld [vmem:[#allocation7 + $0x80] sm:$0xff]
    %v2818 = vld [vmem:[#allocation7 + $0x88] sm:$0xff]
    %v2819 = vld [vmem:[#allocation7 + $0x90] sm:$0xff]
    %v2820 = vld [vmem:[#allocation7 + $0x98] sm:$0xff]
    %v2821 = vld [vmem:[#allocation7 + $0xa0] sm:$0xff]
    %v2822 = vld [vmem:[#allocation7 + $0xa8] sm:$0xff]
    %v2823 = vld [vmem:[#allocation7 + $0xb0] sm:$0xff]
    %v2824 = vld [vmem:[#allocation7 + $0xb8] sm:$0xff]
    %v2825 = vld [vmem:[#allocation7 + $0xc0] sm:$0xff]
    %v2826 = vld [vmem:[#allocation7 + $0xc8] sm:$0xff]
    %v2827 = vld [vmem:[#allocation7 + $0xd0] sm:$0xff]
    %v2828 = vld [vmem:[#allocation7 + $0xd8] sm:$0xff]
    %v2829 = vld [vmem:[#allocation7 + $0xe0] sm:$0xff]
    %v2830 = vld [vmem:[#allocation7 + $0xe8] sm:$0xff]
    %v2831 = vld [vmem:[#allocation7 + $0xf0] sm:$0xff]
    %v2832 = vld [vmem:[#allocation7 + $0xf8] sm:$0xff]
    %v2833 = vld [vmem:[#allocation7 + $0x100] sm:$0xff]
    %v2834 = vld [vmem:[#allocation7 + $0x108] sm:$0xff]
    %v2835 = vld [vmem:[#allocation7 + $0x110] sm:$0xff]
    %v2836 = vld [vmem:[#allocation7 + $0x118] sm:$0xff]
    %v2837 = vld [vmem:[#allocation7 + $0x120] sm:$0xff]
    %v2838 = vld [vmem:[#allocation7 + $0x128] sm:$0xff]
    %v2839 = vld [vmem:[#allocation7 + $0x130] sm:$0xff]
    %v2840 = vld [vmem:[#allocation7 + $0x138] sm:$0xff]
    %v2841 = vld [vmem:[#allocation7 + $0x140] sm:$0xff]
    %v2842 = vld [vmem:[#allocation7 + $0x148] sm:$0xff]
    %v2843 = vld [vmem:[#allocation7 + $0x150] sm:$0xff]
    %v2844 = vld [vmem:[#allocation7 + $0x158] sm:$0xff]
    %v2845 = vld [vmem:[#allocation7 + $0x160] sm:$0xff]
    %v2846 = vld [vmem:[#allocation7 + $0x168] sm:$0xff]
    %v2847 = vld [vmem:[#allocation7 + $0x170] sm:$0xff]
    %v2848 = vld [vmem:[#allocation7 + $0x178] sm:$0xff]
    %v2849 = vld [vmem:[#allocation7 + $0x180] sm:$0xff]
    %v2850 = vld [vmem:[#allocation7 + $0x188] sm:$0xff]
    %v2851 = vld [vmem:[#allocation7 + $0x190] sm:$0xff]
    %v2852 = vld [vmem:[#allocation7 + $0x198] sm:$0xff]
    %v2853 = vld [vmem:[#allocation7 + $0x1a0] sm:$0xff]
    %v2854 = vld [vmem:[#allocation7 + $0x1a8] sm:$0xff]
    %v2855 = vld [vmem:[#allocation7 + $0x1b0] sm:$0xff]
    %v2856 = vld [vmem:[#allocation7 + $0x1b8] sm:$0xff]
    %v2857 = vld [vmem:[#allocation7 + $0x1c0] sm:$0xff]
    %v2858 = vld [vmem:[#allocation7 + $0x1c8] sm:$0xff]
    %v2859 = vld [vmem:[#allocation7 + $0x1d0] sm:$0xff]
    %v2860 = vld [vmem:[#allocation7 + $0x1d8] sm:$0xff]
    %v2861 = vld [vmem:[#allocation7 + $0x1e0] sm:$0xff]
    %v2862 = vld [vmem:[#allocation7 + $0x1e8] sm:$0xff]
    %v2863 = vld [vmem:[#allocation7 + $0x1f0] sm:$0xff]
    %v2864 = vld [vmem:[#allocation7 + $0x1f8] sm:$0xff]
    %v2865 = vld [vmem:[#allocation7 + $0x200] sm:$0xff]
    %v2866 = vld [vmem:[#allocation7 + $0x208] sm:$0xff]
    %v2867 = vld [vmem:[#allocation7 + $0x210] sm:$0xff]
    %v2868 = vld [vmem:[#allocation7 + $0x218] sm:$0xff]
    %v2869 = vld [vmem:[#allocation7 + $0x220] sm:$0xff]
    %v2870 = vld [vmem:[#allocation7 + $0x228] sm:$0xff]
    %v2871 = vld [vmem:[#allocation7 + $0x230] sm:$0xff]
    %v2872 = vld [vmem:[#allocation7 + $0x238] sm:$0xff]
    %v2873 = vld [vmem:[#allocation7 + $0x240] sm:$0xff]
    %v2874 = vld [vmem:[#allocation7 + $0x248] sm:$0xff]
    %v2875 = vld [vmem:[#allocation7 + $0x250] sm:$0xff]
    %v2876 = vld [vmem:[#allocation7 + $0x258] sm:$0xff]
    %v2877 = vld [vmem:[#allocation7 + $0x260] sm:$0xff]
    %v2878 = vld [vmem:[#allocation7 + $0x268] sm:$0xff]
    %v2879 = vld [vmem:[#allocation7 + $0x270] sm:$0xff]
    %v2880 = vld [vmem:[#allocation7 + $0x278] sm:$0xff]
    %v2881 = vld [vmem:[#allocation7 + $0x280] sm:$0xff]
    %v2882 = vld [vmem:[#allocation7 + $0x288] sm:$0xff]
    %v2883 = vld [vmem:[#allocation7 + $0x290] sm:$0xff]
    %v2884 = vld [vmem:[#allocation7 + $0x298] sm:$0xff]
    %v2885 = vld [vmem:[#allocation7 + $0x2a0] sm:$0xff]
    %v2886 = vld [vmem:[#allocation7 + $0x2a8] sm:$0xff]
    %v2887 = vld [vmem:[#allocation7 + $0x2b0] sm:$0xff]
    %v2888 = vld [vmem:[#allocation7 + $0x2b8] sm:$0xff]
    %v2889 = vld [vmem:[#allocation7 + $0x2c0] sm:$0xff]
    %v2890 = vld [vmem:[#allocation7 + $0x2c8] sm:$0xff]
    %v2891 = vld [vmem:[#allocation7 + $0x2d0] sm:$0xff]
    %v2892 = vld [vmem:[#allocation7 + $0x2d8] sm:$0xff]
    %v2893 = vld [vmem:[#allocation7 + $0x2e0] sm:$0xff]
    %v2894 = vld [vmem:[#allocation7 + $0x2e8] sm:$0xff]
    %v2895 = vld [vmem:[#allocation7 + $0x2f0] sm:$0xff]
    %v2896 = vld [vmem:[#allocation7 + $0x2f8] sm:$0xff]
    %v2897 = vld [vmem:[#allocation7 + $0x300] sm:$0xff]
    %v2898 = vld [vmem:[#allocation7 + $0x308] sm:$0xff]
    %v2899 = vld [vmem:[#allocation7 + $0x310] sm:$0xff]
    %v2900 = vld [vmem:[#allocation7 + $0x318] sm:$0xff]
    %v2901 = vld [vmem:[#allocation7 + $0x320] sm:$0xff]
    %v2902 = vld [vmem:[#allocation7 + $0x328] sm:$0xff]
    %v2903 = vld [vmem:[#allocation7 + $0x330] sm:$0xff]
    %v2904 = vld [vmem:[#allocation7 + $0x338] sm:$0xff]
    %v2905 = vld [vmem:[#allocation7 + $0x340] sm:$0xff]
    %v2906 = vld [vmem:[#allocation7 + $0x348] sm:$0xff]
    %v2907 = vld [vmem:[#allocation7 + $0x350] sm:$0xff]
    %v2908 = vld [vmem:[#allocation7 + $0x358] sm:$0xff]
    %v2909 = vld [vmem:[#allocation7 + $0x360] sm:$0xff]
    %v2910 = vld [vmem:[#allocation7 + $0x368] sm:$0xff]
    %v2911 = vld [vmem:[#allocation7 + $0x370] sm:$0xff]
    %v2912 = vld [vmem:[#allocation7 + $0x378] sm:$0xff]
    %v2913 = vld [vmem:[#allocation7 + $0x380] sm:$0xff]
    %v2914 = vld [vmem:[#allocation7 + $0x388] sm:$0xff]
    %v2915 = vld [vmem:[#allocation7 + $0x390] sm:$0xff]
    %v2916 = vld [vmem:[#allocation7 + $0x398] sm:$0xff]
    %v2917 = vld [vmem:[#allocation7 + $0x3a0] sm:$0xff]
    %v2918 = vld [vmem:[#allocation7 + $0x3a8] sm:$0xff]
    %v2919 = vld [vmem:[#allocation7 + $0x3b0] sm:$0xff]
    %v2920 = vld [vmem:[#allocation7 + $0x3b8] sm:$0xff]
    %v2921 = vld [vmem:[#allocation7 + $0x3c0] sm:$0xff]
    %v2922 = vld [vmem:[#allocation7 + $0x3c8] sm:$0xff]
    %v2923 = vld [vmem:[#allocation7 + $0x3d0] sm:$0xff]
    %v2924 = vld [vmem:[#allocation7 + $0x3d8] sm:$0xff]
    %v2925 = vld [vmem:[#allocation7 + $0x3e0] sm:$0xff]
    %v2926 = vld [vmem:[#allocation7 + $0x3e8] sm:$0xff]
    %v2927 = vld [vmem:[#allocation7 + $0x3f0] sm:$0xff]
    %v2928 = vld [vmem:[#allocation7 + $0x3f8] sm:$0xff]
    %v2929 = vld [vmem:[%s4] sm:$0xf]
    %v2931 = vlaneseq
    %v2932 = vshrl.u32 %v2931, 7
    %v2933 = vsub.s32 0, %v2932
    %v2934 = vrot.slane %v2929, %v2933
    %v2935 = vlaneseq
    %v2936 = vshrl.u32 %v2935, 7
    %v2937 = vsub.s32 1, %v2936
    %v2938 = vrot.slane %v2929, %v2937
    %v2939 = vlaneseq
    %v2940 = vshrl.u32 %v2939, 7
    %v2941 = vsub.s32 2, %v2940
    %v2942 = vrot.slane %v2929, %v2941
    %v2943 = vlaneseq
    %v2944 = vshrl.u32 %v2943, 7
    %v2945 = vsub.s32 3, %v2944
    %v2946 = vrot.slane %v2929, %v2945
    %v3079 = vunpack.c.l.b16 %v2801
    %v3080 = vunpack.c.h.b16 %v2801
    %v3081 = vunpack.c.l.b16 %v2802
    %v3082 = vunpack.c.h.b16 %v2802
    %v3083 = vunpack.c.l.b16 %v2803
    %v3084 = vunpack.c.h.b16 %v2803
    %v3085 = vunpack.c.l.b16 %v2804
    %v3086 = vunpack.c.h.b16 %v2804
    %v3087 = vunpack.c.l.b16 %v2805
    %v3088 = vunpack.c.h.b16 %v2805
    %v3089 = vunpack.c.l.b16 %v2806
    %v3090 = vunpack.c.h.b16 %v2806
    %v3091 = vunpack.c.l.b16 %v2807
    %v3092 = vunpack.c.h.b16 %v2807
    %v3093 = vunpack.c.l.b16 %v2808
    %v3094 = vunpack.c.h.b16 %v2808
    %v3095 = vunpack.c.l.b16 %v2809
    %v3096 = vunpack.c.h.b16 %v2809
    %v3097 = vunpack.c.l.b16 %v2810
    %v3098 = vunpack.c.h.b16 %v2810
    %v3099 = vunpack.c.l.b16 %v2811
    %v3100 = vunpack.c.h.b16 %v2811
    %v3101 = vunpack.c.l.b16 %v2812
    %v3102 = vunpack.c.h.b16 %v2812
    %v3103 = vunpack.c.l.b16 %v2813
    %v3104 = vunpack.c.h.b16 %v2813
    %v3105 = vunpack.c.l.b16 %v2814
    %v3106 = vunpack.c.h.b16 %v2814
    %v3107 = vunpack.c.l.b16 %v2815
    %v3108 = vunpack.c.h.b16 %v2815
    %v3109 = vunpack.c.l.b16 %v2816
    %v3110 = vunpack.c.h.b16 %v2816
    %v3111 = vunpack.c.l.b16 %v2817
    %v3112 = vunpack.c.h.b16 %v2817
    %v3113 = vunpack.c.l.b16 %v2818
    %v3114 = vunpack.c.h.b16 %v2818
    %v3115 = vunpack.c.l.b16 %v2819
    %v3116 = vunpack.c.h.b16 %v2819
    %v3117 = vunpack.c.l.b16 %v2820
    %v3118 = vunpack.c.h.b16 %v2820
    %v3119 = vunpack.c.l.b16 %v2821
    %v3120 = vunpack.c.h.b16 %v2821
    %v3121 = vunpack.c.l.b16 %v2822
    %v3122 = vunpack.c.h.b16 %v2822
    %v3123 = vunpack.c.l.b16 %v2823
    %v3124 = vunpack.c.h.b16 %v2823
    %v3125 = vunpack.c.l.b16 %v2824
    %v3126 = vunpack.c.h.b16 %v2824
    %v3127 = vunpack.c.l.b16 %v2825
    %v3128 = vunpack.c.h.b16 %v2825
    %v3129 = vunpack.c.l.b16 %v2826
    %v3130 = vunpack.c.h.b16 %v2826
    %v3131 = vunpack.c.l.b16 %v2827
    %v3132 = vunpack.c.h.b16 %v2827
    %v3133 = vunpack.c.l.b16 %v2828
    %v3134 = vunpack.c.h.b16 %v2828
    %v3135 = vunpack.c.l.b16 %v2829
    %v3136 = vunpack.c.h.b16 %v2829
    %v3137 = vunpack.c.l.b16 %v2830
    %v3138 = vunpack.c.h.b16 %v2830
    %v3139 = vunpack.c.l.b16 %v2831
    %v3140 = vunpack.c.h.b16 %v2831
    %v3141 = vunpack.c.l.b16 %v2832
    %v3142 = vunpack.c.h.b16 %v2832
    %v3143 = vunpack.c.l.b16 %v2833
    %v3144 = vunpack.c.h.b16 %v2833
    %v3145 = vunpack.c.l.b16 %v2834
    %v3146 = vunpack.c.h.b16 %v2834
    %v3147 = vunpack.c.l.b16 %v2835
    %v3148 = vunpack.c.h.b16 %v2835
    %v3149 = vunpack.c.l.b16 %v2836
    %v3150 = vunpack.c.h.b16 %v2836
    %v3151 = vunpack.c.l.b16 %v2837
    %v3152 = vunpack.c.h.b16 %v2837
    %v3153 = vunpack.c.l.b16 %v2838
    %v3154 = vunpack.c.h.b16 %v2838
    %v3155 = vunpack.c.l.b16 %v2839
    %v3156 = vunpack.c.h.b16 %v2839
    %v3157 = vunpack.c.l.b16 %v2840
    %v3158 = vunpack.c.h.b16 %v2840
    %v3159 = vunpack.c.l.b16 %v2841
    %v3160 = vunpack.c.h.b16 %v2841
    %v3161 = vunpack.c.l.b16 %v2842
    %v3162 = vunpack.c.h.b16 %v2842
    %v3163 = vunpack.c.l.b16 %v2843
    %v3164 = vunpack.c.h.b16 %v2843
    %v3165 = vunpack.c.l.b16 %v2844
    %v3166 = vunpack.c.h.b16 %v2844
    %v3167 = vunpack.c.l.b16 %v2845
    %v3168 = vunpack.c.h.b16 %v2845
    %v3169 = vunpack.c.l.b16 %v2846
    %v3170 = vunpack.c.h.b16 %v2846
    %v3171 = vunpack.c.l.b16 %v2847
    %v3172 = vunpack.c.h.b16 %v2847
    %v3173 = vunpack.c.l.b16 %v2848
    %v3174 = vunpack.c.h.b16 %v2848
    %v3175 = vunpack.c.l.b16 %v2849
    %v3176 = vunpack.c.h.b16 %v2849
    %v3177 = vunpack.c.l.b16 %v2850
    %v3178 = vunpack.c.h.b16 %v2850
    %v3179 = vunpack.c.l.b16 %v2851
    %v3180 = vunpack.c.h.b16 %v2851
    %v3181 = vunpack.c.l.b16 %v2852
    %v3182 = vunpack.c.h.b16 %v2852
    %v3183 = vunpack.c.l.b16 %v2853
    %v3184 = vunpack.c.h.b16 %v2853
    %v3185 = vunpack.c.l.b16 %v2854
    %v3186 = vunpack.c.h.b16 %v2854
    %v3187 = vunpack.c.l.b16 %v2855
    %v3188 = vunpack.c.h.b16 %v2855
    %v3189 = vunpack.c.l.b16 %v2856
    %v3190 = vunpack.c.h.b16 %v2856
    %v3191 = vunpack.c.l.b16 %v2857
    %v3192 = vunpack.c.h.b16 %v2857
    %v3193 = vunpack.c.l.b16 %v2858
    %v3194 = vunpack.c.h.b16 %v2858
    %v3195 = vunpack.c.l.b16 %v2859
    %v3196 = vunpack.c.h.b16 %v2859
    %v3197 = vunpack.c.l.b16 %v2860
    %v3198 = vunpack.c.h.b16 %v2860
    %v3199 = vunpack.c.l.b16 %v2861
    %v3200 = vunpack.c.h.b16 %v2861
    %v3201 = vunpack.c.l.b16 %v2862
    %v3202 = vunpack.c.h.b16 %v2862
    %v3203 = vunpack.c.l.b16 %v2863
    %v3204 = vunpack.c.h.b16 %v2863
    %v3205 = vunpack.c.l.b16 %v2864
    %v3206 = vunpack.c.h.b16 %v2864
    %v3207 = vunpack.c.l.b16 %v2865
    %v3208 = vunpack.c.h.b16 %v2865
    %v3209 = vunpack.c.l.b16 %v2866
    %v3210 = vunpack.c.h.b16 %v2866
    %v3211 = vunpack.c.l.b16 %v2867
    %v3212 = vunpack.c.h.b16 %v2867
    %v3213 = vunpack.c.l.b16 %v2868
    %v3214 = vunpack.c.h.b16 %v2868
    %v3215 = vunpack.c.l.b16 %v2869
    %v3216 = vunpack.c.h.b16 %v2869
    %v3217 = vunpack.c.l.b16 %v2870
    %v3218 = vunpack.c.h.b16 %v2870
    %v3219 = vunpack.c.l.b16 %v2871
    %v3220 = vunpack.c.h.b16 %v2871
    %v3221 = vunpack.c.l.b16 %v2872
    %v3222 = vunpack.c.h.b16 %v2872
    %v3223 = vunpack.c.l.b16 %v2873
    %v3224 = vunpack.c.h.b16 %v2873
    %v3225 = vunpack.c.l.b16 %v2874
    %v3226 = vunpack.c.h.b16 %v2874
    %v3227 = vunpack.c.l.b16 %v2875
    %v3228 = vunpack.c.h.b16 %v2875
    %v3229 = vunpack.c.l.b16 %v2876
    %v3230 = vunpack.c.h.b16 %v2876
    %v3231 = vunpack.c.l.b16 %v2877
    %v3232 = vunpack.c.h.b16 %v2877
    %v3233 = vunpack.c.l.b16 %v2878
    %v3234 = vunpack.c.h.b16 %v2878
    %v3235 = vunpack.c.l.b16 %v2879
    %v3236 = vunpack.c.h.b16 %v2879
    %v3237 = vunpack.c.l.b16 %v2880
    %v3238 = vunpack.c.h.b16 %v2880
    %v3239 = vunpack.c.l.b16 %v2881
    %v3240 = vunpack.c.h.b16 %v2881
    %v3241 = vunpack.c.l.b16 %v2882
    %v3242 = vunpack.c.h.b16 %v2882
    %v3243 = vunpack.c.l.b16 %v2883
    %v3244 = vunpack.c.h.b16 %v2883
    %v3245 = vunpack.c.l.b16 %v2884
    %v3246 = vunpack.c.h.b16 %v2884
    %v3247 = vunpack.c.l.b16 %v2885
    %v3248 = vunpack.c.h.b16 %v2885
    %v3249 = vunpack.c.l.b16 %v2886
    %v3250 = vunpack.c.h.b16 %v2886
    %v3251 = vunpack.c.l.b16 %v2887
    %v3252 = vunpack.c.h.b16 %v2887
    %v3253 = vunpack.c.l.b16 %v2888
    %v3254 = vunpack.c.h.b16 %v2888
    %v3255 = vunpack.c.l.b16 %v2889
    %v3256 = vunpack.c.h.b16 %v2889
    %v3257 = vunpack.c.l.b16 %v2890
    %v3258 = vunpack.c.h.b16 %v2890
    %v3259 = vunpack.c.l.b16 %v2891
    %v3260 = vunpack.c.h.b16 %v2891
    %v3261 = vunpack.c.l.b16 %v2892
    %v3262 = vunpack.c.h.b16 %v2892
    %v3263 = vunpack.c.l.b16 %v2893
    %v3264 = vunpack.c.h.b16 %v2893
    %v3265 = vunpack.c.l.b16 %v2894
    %v3266 = vunpack.c.h.b16 %v2894
    %v3267 = vunpack.c.l.b16 %v2895
    %v3268 = vunpack.c.h.b16 %v2895
    %v3269 = vunpack.c.l.b16 %v2896
    %v3270 = vunpack.c.h.b16 %v2896
    %v3271 = vunpack.c.l.b16 %v2897
    %v3272 = vunpack.c.h.b16 %v2897
    %v3273 = vunpack.c.l.b16 %v2898
    %v3274 = vunpack.c.h.b16 %v2898
    %v3275 = vunpack.c.l.b16 %v2899
    %v3276 = vunpack.c.h.b16 %v2899
    %v3277 = vunpack.c.l.b16 %v2900
    %v3278 = vunpack.c.h.b16 %v2900
    %v3279 = vunpack.c.l.b16 %v2901
    %v3280 = vunpack.c.h.b16 %v2901
    %v3281 = vunpack.c.l.b16 %v2902
    %v3282 = vunpack.c.h.b16 %v2902
    %v3283 = vunpack.c.l.b16 %v2903
    %v3284 = vunpack.c.h.b16 %v2903
    %v3285 = vunpack.c.l.b16 %v2904
    %v3286 = vunpack.c.h.b16 %v2904
    %v3287 = vunpack.c.l.b16 %v2905
    %v3288 = vunpack.c.h.b16 %v2905
    %v3289 = vunpack.c.l.b16 %v2906
    %v3290 = vunpack.c.h.b16 %v2906
    %v3291 = vunpack.c.l.b16 %v2907
    %v3292 = vunpack.c.h.b16 %v2907
    %v3293 = vunpack.c.l.b16 %v2908
    %v3294 = vunpack.c.h.b16 %v2908
    %v3295 = vunpack.c.l.b16 %v2909
    %v3296 = vunpack.c.h.b16 %v2909
    %v3297 = vunpack.c.l.b16 %v2910
    %v3298 = vunpack.c.h.b16 %v2910
    %v3299 = vunpack.c.l.b16 %v2911
    %v3300 = vunpack.c.h.b16 %v2911
    %v3301 = vunpack.c.l.b16 %v2912
    %v3302 = vunpack.c.h.b16 %v2912
    %v3303 = vunpack.c.l.b16 %v2913
    %v3304 = vunpack.c.h.b16 %v2913
    %v3305 = vunpack.c.l.b16 %v2914
    %v3306 = vunpack.c.h.b16 %v2914
    %v3307 = vunpack.c.l.b16 %v2915
    %v3308 = vunpack.c.h.b16 %v2915
    %v3309 = vunpack.c.l.b16 %v2916
    %v3310 = vunpack.c.h.b16 %v2916
    %v3311 = vunpack.c.l.b16 %v2917
    %v3312 = vunpack.c.h.b16 %v2917
    %v3313 = vunpack.c.l.b16 %v2918
    %v3314 = vunpack.c.h.b16 %v2918
    %v3315 = vunpack.c.l.b16 %v2919
    %v3316 = vunpack.c.h.b16 %v2919
    %v3317 = vunpack.c.l.b16 %v2920
    %v3318 = vunpack.c.h.b16 %v2920
    %v3319 = vunpack.c.l.b16 %v2921
    %v3320 = vunpack.c.h.b16 %v2921
    %v3321 = vunpack.c.l.b16 %v2922
    %v3322 = vunpack.c.h.b16 %v2922
    %v3323 = vunpack.c.l.b16 %v2923
    %v3324 = vunpack.c.h.b16 %v2923
    %v3325 = vunpack.c.l.b16 %v2924
    %v3326 = vunpack.c.h.b16 %v2924
    %v3327 = vunpack.c.l.b16 %v2925
    %v3328 = vunpack.c.h.b16 %v2925
    %v3329 = vunpack.c.l.b16 %v2926
    %v3330 = vunpack.c.h.b16 %v2926
    %v3331 = vunpack.c.l.b16 %v2927
    %v3332 = vunpack.c.h.b16 %v2927
    %v3333 = vunpack.c.l.b16 %v2928
    %v3334 = vunpack.c.h.b16 %v2928
    %v3335 = vpack.c.b16 %v3083, %v3079
    %v3336 = vpack.c.b16 %v3084, %v3080
    %v3337 = vpack.c.b16 %v3085, %v3081
    %v3338 = vpack.c.b16 %v3086, %v3082
    %v3339 = vpack.c.b16 %v3091, %v3087
    %v3340 = vpack.c.b16 %v3092, %v3088
    %v3341 = vpack.c.b16 %v3093, %v3089
    %v3342 = vpack.c.b16 %v3094, %v3090
    %v3343 = vpack.c.b16 %v3099, %v3095
    %v3344 = vpack.c.b16 %v3100, %v3096
    %v3345 = vpack.c.b16 %v3101, %v3097
    %v3346 = vpack.c.b16 %v3102, %v3098
    %v3347 = vpack.c.b16 %v3107, %v3103
    %v3348 = vpack.c.b16 %v3108, %v3104
    %v3349 = vpack.c.b16 %v3109, %v3105
    %v3350 = vpack.c.b16 %v3110, %v3106
    %v3351 = vpack.c.b16 %v3115, %v3111
    %v3352 = vpack.c.b16 %v3116, %v3112
    %v3353 = vpack.c.b16 %v3117, %v3113
    %v3354 = vpack.c.b16 %v3118, %v3114
    %v3355 = vpack.c.b16 %v3123, %v3119
    %v3356 = vpack.c.b16 %v3124, %v3120
    %v3357 = vpack.c.b16 %v3125, %v3121
    %v3358 = vpack.c.b16 %v3126, %v3122
    %v3359 = vpack.c.b16 %v3131, %v3127
    %v3360 = vpack.c.b16 %v3132, %v3128
    %v3361 = vpack.c.b16 %v3133, %v3129
    %v3362 = vpack.c.b16 %v3134, %v3130
    %v3363 = vpack.c.b16 %v3139, %v3135
    %v3364 = vpack.c.b16 %v3140, %v3136
    %v3365 = vpack.c.b16 %v3141, %v3137
    %v3366 = vpack.c.b16 %v3142, %v3138
    %v3367 = vpack.c.b16 %v3147, %v3143
    %v3368 = vpack.c.b16 %v3148, %v3144
    %v3369 = vpack.c.b16 %v3149, %v3145
    %v3370 = vpack.c.b16 %v3150, %v3146
    %v3371 = vpack.c.b16 %v3155, %v3151
    %v3372 = vpack.c.b16 %v3156, %v3152
    %v3373 = vpack.c.b16 %v3157, %v3153
    %v3374 = vpack.c.b16 %v3158, %v3154
    %v3375 = vpack.c.b16 %v3163, %v3159
    %v3376 = vpack.c.b16 %v3164, %v3160
    %v3377 = vpack.c.b16 %v3165, %v3161
    %v3378 = vpack.c.b16 %v3166, %v3162
    %v3379 = vpack.c.b16 %v3171, %v3167
    %v3380 = vpack.c.b16 %v3172, %v3168
    %v3381 = vpack.c.b16 %v3173, %v3169
    %v3382 = vpack.c.b16 %v3174, %v3170
    %v3383 = vpack.c.b16 %v3179, %v3175
    %v3384 = vpack.c.b16 %v3180, %v3176
    %v3385 = vpack.c.b16 %v3181, %v3177
    %v3386 = vpack.c.b16 %v3182, %v3178
    %v3387 = vpack.c.b16 %v3187, %v3183
    %v3388 = vpack.c.b16 %v3188, %v3184
    %v3389 = vpack.c.b16 %v3189, %v3185
    %v3390 = vpack.c.b16 %v3190, %v3186
    %v3391 = vpack.c.b16 %v3195, %v3191
    %v3392 = vpack.c.b16 %v3196, %v3192
    %v3393 = vpack.c.b16 %v3197, %v3193
    %v3394 = vpack.c.b16 %v3198, %v3194
    %v3395 = vpack.c.b16 %v3203, %v3199
    %v3396 = vpack.c.b16 %v3204, %v3200
    %v3397 = vpack.c.b16 %v3205, %v3201
    %v3398 = vpack.c.b16 %v3206, %v3202
    %v3399 = vpack.c.b16 %v3211, %v3207
    %v3400 = vpack.c.b16 %v3212, %v3208
    %v3401 = vpack.c.b16 %v3213, %v3209
    %v3402 = vpack.c.b16 %v3214, %v3210
    %v3403 = vpack.c.b16 %v3219, %v3215
    %v3404 = vpack.c.b16 %v3220, %v3216
    %v3405 = vpack.c.b16 %v3221, %v3217
    %v3406 = vpack.c.b16 %v3222, %v3218
    %v3407 = vpack.c.b16 %v3227, %v3223
    %v3408 = vpack.c.b16 %v3228, %v3224
    %v3409 = vpack.c.b16 %v3229, %v3225
    %v3410 = vpack.c.b16 %v3230, %v3226
    %v3411 = vpack.c.b16 %v3235, %v3231
    %v3412 = vpack.c.b16 %v3236, %v3232
    %v3413 = vpack.c.b16 %v3237, %v3233
    %v3414 = vpack.c.b16 %v3238, %v3234
    %v3415 = vpack.c.b16 %v3243, %v3239
    %v3416 = vpack.c.b16 %v3244, %v3240
    %v3417 = vpack.c.b16 %v3245, %v3241
    %v3418 = vpack.c.b16 %v3246, %v3242
    %v3419 = vpack.c.b16 %v3251, %v3247
    %v3420 = vpack.c.b16 %v3252, %v3248
    %v3421 = vpack.c.b16 %v3253, %v3249
    %v3422 = vpack.c.b16 %v3254, %v3250
    %v3423 = vpack.c.b16 %v3259, %v3255
    %v3424 = vpack.c.b16 %v3260, %v3256
    %v3425 = vpack.c.b16 %v3261, %v3257
    %v3426 = vpack.c.b16 %v3262, %v3258
    %v3427 = vpack.c.b16 %v3267, %v3263
    %v3428 = vpack.c.b16 %v3268, %v3264
    %v3429 = vpack.c.b16 %v3269, %v3265
    %v3430 = vpack.c.b16 %v3270, %v3266
    %v3431 = vpack.c.b16 %v3275, %v3271
    %v3432 = vpack.c.b16 %v3276, %v3272
    %v3433 = vpack.c.b16 %v3277, %v3273
    %v3434 = vpack.c.b16 %v3278, %v3274
    %v3435 = vpack.c.b16 %v3283, %v3279
    %v3436 = vpack.c.b16 %v3284, %v3280
    %v3437 = vpack.c.b16 %v3285, %v3281
    %v3438 = vpack.c.b16 %v3286, %v3282
    %v3439 = vpack.c.b16 %v3291, %v3287
    %v3440 = vpack.c.b16 %v3292, %v3288
    %v3441 = vpack.c.b16 %v3293, %v3289
    %v3442 = vpack.c.b16 %v3294, %v3290
    %v3443 = vpack.c.b16 %v3299, %v3295
    %v3444 = vpack.c.b16 %v3300, %v3296
    %v3445 = vpack.c.b16 %v3301, %v3297
    %v3446 = vpack.c.b16 %v3302, %v3298
    %v3447 = vpack.c.b16 %v3307, %v3303
    %v3448 = vpack.c.b16 %v3308, %v3304
    %v3449 = vpack.c.b16 %v3309, %v3305
    %v3450 = vpack.c.b16 %v3310, %v3306
    %v3451 = vpack.c.b16 %v3315, %v3311
    %v3452 = vpack.c.b16 %v3316, %v3312
    %v3453 = vpack.c.b16 %v3317, %v3313
    %v3454 = vpack.c.b16 %v3318, %v3314
    %v3455 = vpack.c.b16 %v3323, %v3319
    %v3456 = vpack.c.b16 %v3324, %v3320
    %v3457 = vpack.c.b16 %v3325, %v3321
    %v3458 = vpack.c.b16 %v3326, %v3322
    %v3459 = vpack.c.b16 %v3331, %v3327
    %v3460 = vpack.c.b16 %v3332, %v3328
    %v3461 = vpack.c.b16 %v3333, %v3329
    %v3462 = vpack.c.b16 %v3334, %v3330
    %3591 = vmatprep.subr.bf16.mxu0 %v3336
    %3592 = vmatpush1.bf16.msra.mxu0 %v3335
    %3593 = vmatprep.subr.bf16.mxu0 %v3340
    %3594 = vmatpush1.bf16.msra.mxu0 %v3339
    %3595 = vmatprep.subr.bf16.mxu0 %v3344
    %3596 = vmatpush1.bf16.msra.mxu0 %v3343
    %3597 = vmatprep.subr.bf16.mxu0 %v3348
    %3598 = vmatpush1.bf16.msra.mxu0 %v3347
    %3599 = vmatprep.subr.bf16.mxu0 %v3352
    %3600 = vmatpush1.bf16.msra.mxu0 %v3351
    %3601 = vmatprep.subr.bf16.mxu0 %v3356
    %3602 = vmatpush1.bf16.msra.mxu0 %v3355
    %3603 = vmatprep.subr.bf16.mxu0 %v3360
    %3604 = vmatpush1.bf16.msra.mxu0 %v3359
    %3605 = vmatprep.subr.bf16.mxu0 %v3364
    %3606 = vmatpush1.bf16.msra.mxu0 %v3363
    %3607 = vmatprep.subr.bf16.mxu0 %v3368
    %3608 = vmatpush1.bf16.msra.mxu0 %v3367
    %3609 = vmatprep.subr.bf16.mxu0 %v3372
    %3610 = vmatpush1.bf16.msra.mxu0 %v3371
    %3611 = vmatprep.subr.bf16.mxu0 %v3376
    %3612 = vmatpush1.bf16.msra.mxu0 %v3375
    %3613 = vmatprep.subr.bf16.mxu0 %v3380
    %3614 = vmatpush1.bf16.msra.mxu0 %v3379
    %3615 = vmatprep.subr.bf16.mxu0 %v3384
    %3616 = vmatpush1.bf16.msra.mxu0 %v3383
    %3617 = vmatprep.subr.bf16.mxu0 %v3388
    %3618 = vmatpush1.bf16.msra.mxu0 %v3387
    %3619 = vmatprep.subr.bf16.mxu0 %v3392
    %3620 = vmatpush1.bf16.msra.mxu0 %v3391
    %3621 = vmatprep.subr.bf16.mxu0 %v3396
    %3622 = vmatpush1.bf16.msra.mxu0 %v3395
    %3623 = vmatprep.mubr.bf16.mxu0 %v2770
    %3624 = vmatmul.mubr.bf16.gmra.mrb[0].mxu0 %v2769
    %v3625 = vpop.f32.mrb[0].mxu0
    %v3626 = vadd.f32 %v2934, %v3625
    %v3627 = vpop.f32.mrb[0].mxu0
    %v3628 = vadd.f32 %v2938, %v3627
    %v3629 = vpop.f32.mrb[0].mxu0
    %v3630 = vadd.f32 %v2934, %v3629
    %v3631 = vpop.f32.mrb[0].mxu0
    %v3632 = vadd.f32 %v2938, %v3631
    %3633 = vmatprep.mubr.bf16.mxu0 %v2774
    %3634 = vmatmul.mubr.bf16.gmra.mrb[0].mxu0 %v2773
    %v3635 = vpop.f32.mrb[0].mxu0
    %v3636 = vadd.f32 %v2934, %v3635
    %v3637 = vpop.f32.mrb[0].mxu0
    %v3638 = vadd.f32 %v2938, %v3637
    %v3639 = vpop.f32.mrb[0].mxu0
    %v3640 = vadd.f32 %v2934, %v3639
    %v3641 = vpop.f32.mrb[0].mxu0
    %v3642 = vadd.f32 %v2938, %v3641
    %3643 = vmatprep.mubr.bf16.mxu0 %v2778
    %3644 = vmatmul.mubr.bf16.gmra.mrb[0].mxu0 %v2777
    %v3645 = vpop.f32.mrb[0].mxu0
    %v3646 = vadd.f32 %v2934, %v3645
    %v3647 = vpop.f32.mrb[0].mxu0
    %v3648 = vadd.f32 %v2938, %v3647
    %v3649 = vpop.f32.mrb[0].mxu0
    %v3650 = vadd.f32 %v2934, %v3649
    %v3651 = vpop.f32.mrb[0].mxu0
    %v3652 = vadd.f32 %v2938, %v3651
    %3653 = vmatprep.mubr.bf16.mxu0 %v2782
    %3654 = vmatmul.mubr.bf16.gmra.mrb[0].mxu0 %v2781
    %v3655 = vpop.f32.mrb[0].mxu0
    %v3656 = vadd.f32 %v2934, %v3655
    %v3657 = vpop.f32.mrb[0].mxu0
    %v3658 = vadd.f32 %v2938, %v3657
    %v3659 = vpop.f32.mrb[0].mxu0
    %v3660 = vadd.f32 %v2934, %v3659
    %v3661 = vpop.f32.mrb[0].mxu0
    %v3662 = vadd.f32 %v2938, %v3661
    %3663 = vmatprep.mubr.bf16.mxu0 %v2786
    %3664 = vmatmul.mubr.bf16.gmra.mrb[0].mxu0 %v2785
    %v3665 = vpop.f32.mrb[0].mxu0
    %v3666 = vadd.f32 %v2934, %v3665
    %v3667 = vpop.f32.mrb[0].mxu0
    %v3668 = vadd.f32 %v2938, %v3667
    %v3669 = vpop.f32.mrb[0].mxu0
    %v3670 = vadd.f32 %v2934, %v3669
    %v3671 = vpop.f32.mrb[0].mxu0
    %v3672 = vadd.f32 %v2938, %v3671
    %3673 = vmatprep.mubr.bf16.mxu0 %v2790
    %3674 = vmatmul.mubr.bf16.gmra.mrb[0].mxu0 %v2789
    %v3675 = vpop.f32.mrb[0].mxu0
    %v3676 = vadd.f32 %v2934, %v3675
    %v3677 = vpop.f32.mrb[0].mxu0
    %v3678 = vadd.f32 %v2938, %v3677
    %v3679 = vpop.f32.mrb[0].mxu0
    %v3680 = vadd.f32 %v2934, %v3679
    %v3681 = vpop.f32.mrb[0].mxu0
    %v3682 = vadd.f32 %v2938, %v3681
    %3683 = vmatprep.mubr.bf16.mxu0 %v2794
    %3684 = vmatmul.mubr.bf16.gmra.mrb[0].mxu0 %v2793
    %v3685 = vpop.f32.mrb[0].mxu0
    %v3686 = vadd.f32 %v2934, %v3685
    %v3687 = vpop.f32.mrb[0].mxu0
    %v3688 = vadd.f32 %v2938, %v3687
    %v3689 = vpop.f32.mrb[0].mxu0
    %v3690 = vadd.f32 %v2934, %v3689
    %v3691 = vpop.f32.mrb[0].mxu0
    %v3692 = vadd.f32 %v2938, %v3691
    %3693 = vmatprep.mubr.bf16.mxu0 %v2798
    %3694 = vmatmul.mubr.bf16.gmra.mrb[0].mxu0 %v2797
    %v3695 = vpop.f32.mrb[0].mxu0
    %v3696 = vadd.f32 %v2934, %v3695
    %v3697 = vpop.f32.mrb[0].mxu0
    %v3698 = vadd.f32 %v2938, %v3697
    %v3699 = vpop.f32.mrb[0].mxu0
    %v3700 = vadd.f32 %v2934, %v3699
    %v3701 = vpop.f32.mrb[0].mxu0
    %v3702 = vadd.f32 %v2938, %v3701
    %3703 = vdwg.mxu0
    %3704 = vmatprep.subr.bf16.mxu0 %v3400
    %3705 = vmatpush1.bf16.msra.mxu0 %v3399
    %3706 = vmatprep.subr.bf16.mxu0 %v3404
    %3707 = vmatpush1.bf16.msra.mxu0 %v3403
    %3708 = vmatprep.subr.bf16.mxu0 %v3408
    %3709 = vmatpush1.bf16.msra.mxu0 %v3407
    %3710 = vmatprep.subr.bf16.mxu0 %v3412
    %3711 = vmatpush1.bf16.msra.mxu0 %v3411
    %3712 = vmatprep.subr.bf16.mxu0 %v3416
    %3713 = vmatpush1.bf16.msra.mxu0 %v3415
    %3714 = vmatprep.subr.bf16.mxu0 %v3420
    %3715 = vmatpush1.bf16.msra.mxu0 %v3419
    %3716 = vmatprep.subr.bf16.mxu0 %v3424
    %3717 = vmatpush1.bf16.msra.mxu0 %v3423
    %3718 = vmatprep.subr.bf16.mxu0 %v3428
    %3719 = vmatpush1.bf16.msra.mxu0 %v3427
    %3720 = vmatprep.subr.bf16.mxu0 %v3432
    %3721 = vmatpush1.bf16.msra.mxu0 %v3431
    %3722 = vmatprep.subr.bf16.mxu0 %v3436
    %3723 = vmatpush1.bf16.msra.mxu0 %v3435
    %3724 = vmatprep.subr.bf16.mxu0 %v3440
    %3725 = vmatpush1.bf16.msra.mxu0 %v3439
    %3726 = vmatprep.subr.bf16.mxu0 %v3444
    %3727 = vmatpush1.bf16.msra.mxu0 %v3443
    %3728 = vmatprep.subr.bf16.mxu0 %v3448
    %3729 = vmatpush1.bf16.msra.mxu0 %v3447
    %3730 = vmatprep.subr.bf16.mxu0 %v3452
    %3731 = vmatpush1.bf16.msra.mxu0 %v3451
    %3732 = vmatprep.subr.bf16.mxu0 %v3456
    %3733 = vmatpush1.bf16.msra.mxu0 %v3455
    %3734 = vmatprep.subr.bf16.mxu0 %v3460
    %3735 = vmatpush1.bf16.msra.mxu0 %v3459
    %3736 = vmatprep.mubr.bf16.mxu0 %v2772
    %3737 = vmatmul.mubr.bf16.gmra.mrb[0].mxu0 %v2771
    %v3738 = vpop.f32.mrb[0].mxu0
    %v3739 = vadd.f32 %v3626, %v3738
    %v3740 = vpop.f32.mrb[0].mxu0
    %v3741 = vadd.f32 %v3628, %v3740
    %v3742 = vpop.f32.mrb[0].mxu0
    %v3743 = vadd.f32 %v3630, %v3742
    %v3744 = vpop.f32.mrb[0].mxu0
    %v3745 = vadd.f32 %v3632, %v3744
    %3746 = vmatprep.mubr.bf16.mxu0 %v2776
    %3747 = vmatmul.mubr.bf16.gmra.mrb[0].mxu0 %v2775
    %v3748 = vpop.f32.mrb[0].mxu0
    %v3749 = vadd.f32 %v3636, %v3748
    %v3750 = vpop.f32.mrb[0].mxu0
    %v3751 = vadd.f32 %v3638, %v3750
    %v3752 = vpop.f32.mrb[0].mxu0
    %v3753 = vadd.f32 %v3640, %v3752
    %v3754 = vpop.f32.mrb[0].mxu0
    %v3755 = vadd.f32 %v3642, %v3754
    %3756 = vmatprep.mubr.bf16.mxu0 %v2780
    %3757 = vmatmul.mubr.bf16.gmra.mrb[0].mxu0 %v2779
    %v3758 = vpop.f32.mrb[0].mxu0
    %v3759 = vadd.f32 %v3646, %v3758
    %v3760 = vpop.f32.mrb[0].mxu0
    %v3761 = vadd.f32 %v3648, %v3760
    %v3762 = vpop.f32.mrb[0].mxu0
    %v3763 = vadd.f32 %v3650, %v3762
    %v3764 = vpop.f32.mrb[0].mxu0
    %v3765 = vadd.f32 %v3652, %v3764
    %3766 = vmatprep.mubr.bf16.mxu0 %v2784
    %3767 = vmatmul.mubr.bf16.gmra.mrb[0].mxu0 %v2783
    %v3768 = vpop.f32.mrb[0].mxu0
    %v3769 = vadd.f32 %v3656, %v3768
    %v3770 = vpop.f32.mrb[0].mxu0
    %v3771 = vadd.f32 %v3658, %v3770
    %v3772 = vpop.f32.mrb[0].mxu0
    %v3773 = vadd.f32 %v3660, %v3772
    %v3774 = vpop.f32.mrb[0].mxu0
    %v3775 = vadd.f32 %v3662, %v3774
    %3776 = vmatprep.mubr.bf16.mxu0 %v2788
    %3777 = vmatmul.mubr.bf16.gmra.mrb[0].mxu0 %v2787
    %v3778 = vpop.f32.mrb[0].mxu0
    %v3779 = vadd.f32 %v3666, %v3778
    %v3780 = vpop.f32.mrb[0].mxu0
    %v3781 = vadd.f32 %v3668, %v3780
    %v3782 = vpop.f32.mrb[0].mxu0
    %v3783 = vadd.f32 %v3670, %v3782
    %v3784 = vpop.f32.mrb[0].mxu0
    %v3785 = vadd.f32 %v3672, %v3784
    %3786 = vmatprep.mubr.bf16.mxu0 %v2792
    %3787 = vmatmul.mubr.bf16.gmra.mrb[0].mxu0 %v2791
    %v3788 = vpop.f32.mrb[0].mxu0
    %v3789 = vadd.f32 %v3676, %v3788
    %v3790 = vpop.f32.mrb[0].mxu0
    %v3791 = vadd.f32 %v3678, %v3790
    %v3792 = vpop.f32.mrb[0].mxu0
    %v3793 = vadd.f32 %v3680, %v3792
    %v3794 = vpop.f32.mrb[0].mxu0
    %v3795 = vadd.f32 %v3682, %v3794
    %3796 = vmatprep.mubr.bf16.mxu0 %v2796
    %3797 = vmatmul.mubr.bf16.gmra.mrb[0].mxu0 %v2795
    %v3798 = vpop.f32.mrb[0].mxu0
    %v3799 = vadd.f32 %v3686, %v3798
    %v3800 = vpop.f32.mrb[0].mxu0
    %v3801 = vadd.f32 %v3688, %v3800
    %v3802 = vpop.f32.mrb[0].mxu0
    %v3803 = vadd.f32 %v3690, %v3802
    %v3804 = vpop.f32.mrb[0].mxu0
    %v3805 = vadd.f32 %v3692, %v3804
    %3806 = vmatprep.mubr.bf16.mxu0 %v2800
    %3807 = vmatmul.mubr.bf16.gmra.mrb[0].mxu0 %v2799
    %v3808 = vpop.f32.mrb[0].mxu0
    %v3809 = vadd.f32 %v3696, %v3808
    %v3810 = vpop.f32.mrb[0].mxu0
    %v3811 = vadd.f32 %v3698, %v3810
    %v3812 = vpop.f32.mrb[0].mxu0
    %v3813 = vadd.f32 %v3700, %v3812
    %v3814 = vpop.f32.mrb[0].mxu0
    %v3815 = vadd.f32 %v3702, %v3814
    %3816 = vdwg.mxu0
    %3817 = vmatprep.subr.bf16.mxu0 %v3338
    %3818 = vmatpush1.bf16.msra.mxu0 %v3337
    %3819 = vmatprep.subr.bf16.mxu0 %v3342
    %3820 = vmatpush1.bf16.msra.mxu0 %v3341
    %3821 = vmatprep.subr.bf16.mxu0 %v3346
    %3822 = vmatpush1.bf16.msra.mxu0 %v3345
    %3823 = vmatprep.subr.bf16.mxu0 %v3350
    %3824 = vmatpush1.bf16.msra.mxu0 %v3349
    %3825 = vmatprep.subr.bf16.mxu0 %v3354
    %3826 = vmatpush1.bf16.msra.mxu0 %v3353
    %3827 = vmatprep.subr.bf16.mxu0 %v3358
    %3828 = vmatpush1.bf16.msra.mxu0 %v3357
    %3829 = vmatprep.subr.bf16.mxu0 %v3362
    %3830 = vmatpush1.bf16.msra.mxu0 %v3361
    %3831 = vmatprep.subr.bf16.mxu0 %v3366
    %3832 = vmatpush1.bf16.msra.mxu0 %v3365
    %3833 = vmatprep.subr.bf16.mxu0 %v3370
    %3834 = vmatpush1.bf16.msra.mxu0 %v3369
    %3835 = vmatprep.subr.bf16.mxu0 %v3374
    %3836 = vmatpush1.bf16.msra.mxu0 %v3373
    %3837 = vmatprep.subr.bf16.mxu0 %v3378
    %3838 = vmatpush1.bf16.msra.mxu0 %v3377
    %3839 = vmatprep.subr.bf16.mxu0 %v3382
    %3840 = vmatpush1.bf16.msra.mxu0 %v3381
    %3841 = vmatprep.subr.bf16.mxu0 %v3386
    %3842 = vmatpush1.bf16.msra.mxu0 %v3385
    %3843 = vmatprep.subr.bf16.mxu0 %v3390
    %3844 = vmatpush1.bf16.msra.mxu0 %v3389
    %3845 = vmatprep.subr.bf16.mxu0 %v3394
    %3846 = vmatpush1.bf16.msra.mxu0 %v3393
    %3847 = vmatprep.subr.bf16.mxu0 %v3398
    %3848 = vmatpush1.bf16.msra.mxu0 %v3397
    %3849 = vmatprep.mubr.bf16.mxu0 %v2770
    %3850 = vmatmul.mubr.bf16.gmra.mrb[0].mxu0 %v2769
    %v3851 = vpop.f32.mrb[0].mxu0
    %v3852 = vadd.f32 %v2942, %v3851
    %v3853 = vpop.f32.mrb[0].mxu0
    %v3854 = vadd.f32 %v2946, %v3853
    %v3855 = vpop.f32.mrb[0].mxu0
    %v3856 = vadd.f32 %v2942, %v3855
    %v3857 = vpop.f32.mrb[0].mxu0
    %v3858 = vadd.f32 %v2946, %v3857
    %3859 = vmatprep.mubr.bf16.mxu0 %v2774
    %3860 = vmatmul.mubr.bf16.gmra.mrb[0].mxu0 %v2773
    %v3861 = vpop.f32.mrb[0].mxu0
    %v3862 = vadd.f32 %v2942, %v3861
    %v3863 = vpop.f32.mrb[0].mxu0
    %v3864 = vadd.f32 %v2946, %v3863
    %v3865 = vpop.f32.mrb[0].mxu0
    %v3866 = vadd.f32 %v2942, %v3865
    %v3867 = vpop.f32.mrb[0].mxu0
    %v3868 = vadd.f32 %v2946, %v3867
    %3869 = vmatprep.mubr.bf16.mxu0 %v2778
    %3870 = vmatmul.mubr.bf16.gmra.mrb[0].mxu0 %v2777
    %v3871 = vpop.f32.mrb[0].mxu0
    %v3872 = vadd.f32 %v2942, %v3871
    %v3873 = vpop.f32.mrb[0].mxu0
    %v3874 = vadd.f32 %v2946, %v3873
    %v3875 = vpop.f32.mrb[0].mxu0
    %v3876 = vadd.f32 %v2942, %v3875
    %v3877 = vpop.f32.mrb[0].mxu0
    %v3878 = vadd.f32 %v2946, %v3877
    %3879 = vmatprep.mubr.bf16.mxu0 %v2782
    %3880 = vmatmul.mubr.bf16.gmra.mrb[0].mxu0 %v2781
    %v3881 = vpop.f32.mrb[0].mxu0
    %v3882 = vadd.f32 %v2942, %v3881
    %v3883 = vpop.f32.mrb[0].mxu0
    %v3884 = vadd.f32 %v2946, %v3883
    %v3885 = vpop.f32.mrb[0].mxu0
    %v3886 = vadd.f32 %v2942, %v3885
    %v3887 = vpop.f32.mrb[0].mxu0
    %v3888 = vadd.f32 %v2946, %v3887
    %3889 = vmatprep.mubr.bf16.mxu0 %v2786
    %3890 = vmatmul.mubr.bf16.gmra.mrb[0].mxu0 %v2785
    %v3891 = vpop.f32.mrb[0].mxu0
    %v3892 = vadd.f32 %v2942, %v3891
    %v3893 = vpop.f32.mrb[0].mxu0
    %v3894 = vadd.f32 %v2946, %v3893
    %v3895 = vpop.f32.mrb[0].mxu0
    %v3896 = vadd.f32 %v2942, %v3895
    %v3897 = vpop.f32.mrb[0].mxu0
    %v3898 = vadd.f32 %v2946, %v3897
    %3899 = vmatprep.mubr.bf16.mxu0 %v2790
    %3900 = vmatmul.mubr.bf16.gmra.mrb[0].mxu0 %v2789
    %v3901 = vpop.f32.mrb[0].mxu0
    %v3902 = vadd.f32 %v2942, %v3901
    %v3903 = vpop.f32.mrb[0].mxu0
    %v3904 = vadd.f32 %v2946, %v3903
    %v3905 = vpop.f32.mrb[0].mxu0
    %v3906 = vadd.f32 %v2942, %v3905
    %v3907 = vpop.f32.mrb[0].mxu0
    %v3908 = vadd.f32 %v2946, %v3907
    %3909 = vmatprep.mubr.bf16.mxu0 %v2794
    %3910 = vmatmul.mubr.bf16.gmra.mrb[0].mxu0 %v2793
    %v3911 = vpop.f32.mrb[0].mxu0
    %v3912 = vadd.f32 %v2942, %v3911
    %v3913 = vpop.f32.mrb[0].mxu0
    %v3914 = vadd.f32 %v2946, %v3913
    %v3915 = vpop.f32.mrb[0].mxu0
    %v3916 = vadd.f32 %v2942, %v3915
    %v3917 = vpop.f32.mrb[0].mxu0
    %v3918 = vadd.f32 %v2946, %v3917
    %3919 = vmatprep.mubr.bf16.mxu0 %v2798
    %3920 = vmatmul.mubr.bf16.gmra.mrb[0].mxu0 %v2797
    %v3921 = vpop.f32.mrb[0].mxu0
    %v3922 = vadd.f32 %v2942, %v3921
    %v3923 = vpop.f32.mrb[0].mxu0
    %v3924 = vadd.f32 %v2946, %v3923
    %v3925 = vpop.f32.mrb[0].mxu0
    %v3926 = vadd.f32 %v2942, %v3925
    %v3927 = vpop.f32.mrb[0].mxu0
    %v3928 = vadd.f32 %v2946, %v3927
    %3929 = vdwg.mxu0
    %3930 = vmatprep.subr.bf16.mxu0 %v3402
    %3931 = vmatpush1.bf16.msra.mxu0 %v3401
    %3932 = vmatprep.subr.bf16.mxu0 %v3406
    %3933 = vmatpush1.bf16.msra.mxu0 %v3405
    %3934 = vmatprep.subr.bf16.mxu0 %v3410
    %3935 = vmatpush1.bf16.msra.mxu0 %v3409
    %3936 = vmatprep.subr.bf16.mxu0 %v3414
    %3937 = vmatpush1.bf16.msra.mxu0 %v3413
    %3938 = vmatprep.subr.bf16.mxu0 %v3418
    %3939 = vmatpush1.bf16.msra.mxu0 %v3417
    %3940 = vmatprep.subr.bf16.mxu0 %v3422
    %3941 = vmatpush1.bf16.msra.mxu0 %v3421
    %3942 = vmatprep.subr.bf16.mxu0 %v3426
    %3943 = vmatpush1.bf16.msra.mxu0 %v3425
    %3944 = vmatprep.subr.bf16.mxu0 %v3430
    %3945 = vmatpush1.bf16.msra.mxu0 %v3429
    %3946 = vmatprep.subr.bf16.mxu0 %v3434
    %3947 = vmatpush1.bf16.msra.mxu0 %v3433
    %3948 = vmatprep.subr.bf16.mxu0 %v3438
    %3949 = vmatpush1.bf16.msra.mxu0 %v3437
    %3950 = vmatprep.subr.bf16.mxu0 %v3442
    %3951 = vmatpush1.bf16.msra.mxu0 %v3441
    %3952 = vmatprep.subr.bf16.mxu0 %v3446
    %3953 = vmatpush1.bf16.msra.mxu0 %v3445
    %3954 = vmatprep.subr.bf16.mxu0 %v3450
    %3955 = vmatpush1.bf16.msra.mxu0 %v3449
    %3956 = vmatprep.subr.bf16.mxu0 %v3454
    %3957 = vmatpush1.bf16.msra.mxu0 %v3453
    %3958 = vmatprep.subr.bf16.mxu0 %v3458
    %3959 = vmatpush1.bf16.msra.mxu0 %v3457
    %3960 = vmatprep.subr.bf16.mxu0 %v3462
    %3961 = vmatpush1.bf16.msra.mxu0 %v3461
    %3962 = vmatprep.mubr.bf16.mxu0 %v2772
    %3963 = vmatmul.mubr.bf16.gmra.mrb[0].mxu0 %v2771
    %v3964 = vpop.f32.mrb[0].mxu0
    %v3965 = vadd.f32 %v3852, %v3964
    %v3966 = vpop.f32.mrb[0].mxu0
    %v3967 = vadd.f32 %v3854, %v3966
    %v3968 = vpop.f32.mrb[0].mxu0
    %v3969 = vadd.f32 %v3856, %v3968
    %v3970 = vpop.f32.mrb[0].mxu0
    %v3971 = vadd.f32 %v3858, %v3970
    %3972 = vmatprep.mubr.bf16.mxu0 %v2776
    %3973 = vmatmul.mubr.bf16.gmra.mrb[0].mxu0 %v2775
    %v3974 = vpop.f32.mrb[0].mxu0
    %v3975 = vadd.f32 %v3862, %v3974
    %v3976 = vpop.f32.mrb[0].mxu0
    %v3977 = vadd.f32 %v3864, %v3976
    %v3978 = vpop.f32.mrb[0].mxu0
    %v3979 = vadd.f32 %v3866, %v3978
    %v3980 = vpop.f32.mrb[0].mxu0
    %v3981 = vadd.f32 %v3868, %v3980
    %3982 = vmatprep.mubr.bf16.mxu0 %v2780
    %3983 = vmatmul.mubr.bf16.gmra.mrb[0].mxu0 %v2779
    %v3984 = vpop.f32.mrb[0].mxu0
    %v3985 = vadd.f32 %v3872, %v3984
    %v3986 = vpop.f32.mrb[0].mxu0
    %v3987 = vadd.f32 %v3874, %v3986
    %v3988 = vpop.f32.mrb[0].mxu0
    %v3989 = vadd.f32 %v3876, %v3988
    %v3990 = vpop.f32.mrb[0].mxu0
    %v3991 = vadd.f32 %v3878, %v3990
    %3992 = vmatprep.mubr.bf16.mxu0 %v2784
    %3993 = vmatmul.mubr.bf16.gmra.mrb[0].mxu0 %v2783
    %v3994 = vpop.f32.mrb[0].mxu0
    %v3995 = vadd.f32 %v3882, %v3994
    %v3996 = vpop.f32.mrb[0].mxu0
    %v3997 = vadd.f32 %v3884, %v3996
    %v3998 = vpop.f32.mrb[0].mxu0
    %v3999 = vadd.f32 %v3886, %v3998
    %v4000 = vpop.f32.mrb[0].mxu0
    %v4001 = vadd.f32 %v3888, %v4000
    %4002 = vmatprep.mubr.bf16.mxu0 %v2788
    %4003 = vmatmul.mubr.bf16.gmra.mrb[0].mxu0 %v2787
    %v4004 = vpop.f32.mrb[0].mxu0
    %v4005 = vadd.f32 %v3892, %v4004
    %v4006 = vpop.f32.mrb[0].mxu0
    %v4007 = vadd.f32 %v3894, %v4006
    %v4008 = vpop.f32.mrb[0].mxu0
    %v4009 = vadd.f32 %v3896, %v4008
    %v4010 = vpop.f32.mrb[0].mxu0
    %v4011 = vadd.f32 %v3898, %v4010
    %4012 = vmatprep.mubr.bf16.mxu0 %v2792
    %4013 = vmatmul.mubr.bf16.gmra.mrb[0].mxu0 %v2791
    %v4014 = vpop.f32.mrb[0].mxu0
    %v4015 = vadd.f32 %v3902, %v4014
    %v4016 = vpop.f32.mrb[0].mxu0
    %v4017 = vadd.f32 %v3904, %v4016
    %v4018 = vpop.f32.mrb[0].mxu0
    %v4019 = vadd.f32 %v3906, %v4018
    %v4020 = vpop.f32.mrb[0].mxu0
    %v4021 = vadd.f32 %v3908, %v4020
    %4022 = vmatprep.mubr.bf16.mxu0 %v2796
    %4023 = vmatmul.mubr.bf16.gmra.mrb[0].mxu0 %v2795
    %v4024 = vpop.f32.mrb[0].mxu0
    %v4025 = vadd.f32 %v3912, %v4024
    %v4026 = vpop.f32.mrb[0].mxu0
    %v4027 = vadd.f32 %v3914, %v4026
    %v4028 = vpop.f32.mrb[0].mxu0
    %v4029 = vadd.f32 %v3916, %v4028
    %v4030 = vpop.f32.mrb[0].mxu0
    %v4031 = vadd.f32 %v3918, %v4030
    %4032 = vmatprep.mubr.bf16.mxu0 %v2800
    %4033 = vmatmul.mubr.bf16.gmra.mrb[0].mxu0 %v2799
    %v4034 = vpop.f32.mrb[0].mxu0
    %v4035 = vadd.f32 %v3922, %v4034
    %v4036 = vpop.f32.mrb[0].mxu0
    %v4037 = vadd.f32 %v3924, %v4036
    %v4038 = vpop.f32.mrb[0].mxu0
    %v4039 = vadd.f32 %v3926, %v4038
    %v4040 = vpop.f32.mrb[0].mxu0
    %v4041 = vadd.f32 %v3928, %v4040
    %4042 = vdwg.mxu0
    %v4043 = vmax.f32 %v3739, 0.0
    %v4044 = vmax.f32 %v3741, 0.0
    %v4045 = vmax.f32 %v3965, 0.0
    %v4046 = vmax.f32 %v3967, 0.0
    %v4047 = vmax.f32 %v3743, 0.0
    %v4048 = vmax.f32 %v3745, 0.0
    %v4049 = vmax.f32 %v3969, 0.0
    %v4050 = vmax.f32 %v3971, 0.0
    %v4051 = vmax.f32 %v3749, 0.0
    %v4052 = vmax.f32 %v3751, 0.0
    %v4053 = vmax.f32 %v3975, 0.0
    %v4054 = vmax.f32 %v3977, 0.0
    %v4055 = vmax.f32 %v3753, 0.0
    %v4056 = vmax.f32 %v3755, 0.0
    %v4057 = vmax.f32 %v3979, 0.0
    %v4058 = vmax.f32 %v3981, 0.0
    %v4059 = vmax.f32 %v3759, 0.0
    %v4060 = vmax.f32 %v3761, 0.0
    %v4061 = vmax.f32 %v3985, 0.0
    %v4062 = vmax.f32 %v3987, 0.0
    %v4063 = vmax.f32 %v3763, 0.0
    %v4064 = vmax.f32 %v3765, 0.0
    %v4065 = vmax.f32 %v3989, 0.0
    %v4066 = vmax.f32 %v3991, 0.0
    %v4067 = vmax.f32 %v3769, 0.0
    %v4068 = vmax.f32 %v3771, 0.0
    %v4069 = vmax.f32 %v3995, 0.0
    %v4070 = vmax.f32 %v3997, 0.0
    %v4071 = vmax.f32 %v3773, 0.0
    %v4072 = vmax.f32 %v3775, 0.0
    %v4073 = vmax.f32 %v3999, 0.0
    %v4074 = vmax.f32 %v4001, 0.0
    %v4075 = vmax.f32 %v3779, 0.0
    %v4076 = vmax.f32 %v3781, 0.0
    %v4077 = vmax.f32 %v4005, 0.0
    %v4078 = vmax.f32 %v4007, 0.0
    %v4079 = vmax.f32 %v3783, 0.0
    %v4080 = vmax.f32 %v3785, 0.0
    %v4081 = vmax.f32 %v4009, 0.0
    %v4082 = vmax.f32 %v4011, 0.0
    %v4083 = vmax.f32 %v3789, 0.0
    %v4084 = vmax.f32 %v3791, 0.0
    %v4085 = vmax.f32 %v4015, 0.0
    %v4086 = vmax.f32 %v4017, 0.0
    %v4087 = vmax.f32 %v3793, 0.0
    %v4088 = vmax.f32 %v3795, 0.0
    %v4089 = vmax.f32 %v4019, 0.0
    %v4090 = vmax.f32 %v4021, 0.0
    %v4091 = vmax.f32 %v3799, 0.0
    %v4092 = vmax.f32 %v3801, 0.0
    %v4093 = vmax.f32 %v4025, 0.0
    %v4094 = vmax.f32 %v4027, 0.0
    %v4095 = vmax.f32 %v3803, 0.0
    %v4096 = vmax.f32 %v3805, 0.0
    %v4097 = vmax.f32 %v4029, 0.0
    %v4098 = vmax.f32 %v4031, 0.0
    %v4099 = vmax.f32 %v3809, 0.0
    %v4100 = vmax.f32 %v3811, 0.0
    %v4101 = vmax.f32 %v4035, 0.0
    %v4102 = vmax.f32 %v4037, 0.0
    %v4103 = vmax.f32 %v3813, 0.0
    %v4104 = vmax.f32 %v3815, 0.0
    %v4105 = vmax.f32 %v4039, 0.0
    %v4106 = vmax.f32 %v4041, 0.0
    %v4107 = vpack.c.bf16 %v4047, %v4043
    %v4108 = vpack.c.bf16 %v4048, %v4044
    %v4109 = vpack.c.bf16 %v4049, %v4045
    %v4110 = vpack.c.bf16 %v4050, %v4046
    %v4111 = vpack.c.bf16 %v4055, %v4051
    %v4112 = vpack.c.bf16 %v4056, %v4052
    %v4113 = vpack.c.bf16 %v4057, %v4053
    %v4114 = vpack.c.bf16 %v4058, %v4054
    %v4115 = vpack.c.bf16 %v4063, %v4059
    %v4116 = vpack.c.bf16 %v4064, %v4060
    %v4117 = vpack.c.bf16 %v4065, %v4061
    %v4118 = vpack.c.bf16 %v4066, %v4062
    %v4119 = vpack.c.bf16 %v4071, %v4067
    %v4120 = vpack.c.bf16 %v4072, %v4068
    %v4121 = vpack.c.bf16 %v4073, %v4069
    %v4122 = vpack.c.bf16 %v4074, %v4070
    %v4123 = vpack.c.bf16 %v4079, %v4075
    %v4124 = vpack.c.bf16 %v4080, %v4076
    %v4125 = vpack.c.bf16 %v4081, %v4077
    %v4126 = vpack.c.bf16 %v4082, %v4078
    %v4127 = vpack.c.bf16 %v4087, %v4083
    %v4128 = vpack.c.bf16 %v4088, %v4084
    %v4129 = vpack.c.bf16 %v4089, %v4085
    %v4130 = vpack.c.bf16 %v4090, %v4086
    %v4131 = vpack.c.bf16 %v4095, %v4091
    %v4132 = vpack.c.bf16 %v4096, %v4092
    %v4133 = vpack.c.bf16 %v4097, %v4093
    %v4134 = vpack.c.bf16 %v4098, %v4094
    %v4135 = vpack.c.bf16 %v4103, %v4099
    %v4136 = vpack.c.bf16 %v4104, %v4100
    %v4137 = vpack.c.bf16 %v4105, %v4101
    %v4138 = vpack.c.bf16 %v4106, %v4102
    %v4139 = vld [vmem:[#allocation8] sm:$0xf]
    %v4140 = vld [vmem:[#allocation8 + $0x4] sm:$0xf]
    %v4141 = vld [vmem:[#allocation8 + $0x8] sm:$0xf]
    %v4142 = vld [vmem:[#allocation8 + $0xc] sm:$0xf]
    %v4143 = vld [vmem:[#allocation8 + $0x10] sm:$0xf]
    %v4144 = vld [vmem:[#allocation8 + $0x14] sm:$0xf]
    %v4145 = vld [vmem:[#allocation8 + $0x18] sm:$0xf]
    %v4146 = vld [vmem:[#allocation8 + $0x1c] sm:$0xf]
    %v4147 = vld [vmem:[#allocation8 + $0x20] sm:$0xf]
    %v4148 = vld [vmem:[#allocation8 + $0x24] sm:$0xf]
    %v4149 = vld [vmem:[#allocation8 + $0x28] sm:$0xf]
    %v4150 = vld [vmem:[#allocation8 + $0x2c] sm:$0xf]
    %v4151 = vld [vmem:[#allocation8 + $0x30] sm:$0xf]
    %v4152 = vld [vmem:[#allocation8 + $0x34] sm:$0xf]
    %v4153 = vld [vmem:[#allocation8 + $0x38] sm:$0xf]
    %v4154 = vld [vmem:[#allocation8 + $0x3c] sm:$0xf]
    %v4155 = vld [vmem:[#allocation8 + $0x40] sm:$0xf]
    %v4156 = vld [vmem:[#allocation8 + $0x44] sm:$0xf]
    %v4157 = vld [vmem:[#allocation8 + $0x48] sm:$0xf]
    %v4158 = vld [vmem:[#allocation8 + $0x4c] sm:$0xf]
    %v4159 = vld [vmem:[#allocation8 + $0x50] sm:$0xf]
    %v4160 = vld [vmem:[#allocation8 + $0x54] sm:$0xf]
    %v4161 = vld [vmem:[#allocation8 + $0x58] sm:$0xf]
    %v4162 = vld [vmem:[#allocation8 + $0x5c] sm:$0xf]
    %v4163 = vld [vmem:[#allocation8 + $0x60] sm:$0xf]
    %v4164 = vld [vmem:[#allocation8 + $0x64] sm:$0xf]
    %v4165 = vld [vmem:[#allocation8 + $0x68] sm:$0xf]
    %v4166 = vld [vmem:[#allocation8 + $0x6c] sm:$0xf]
    %v4167 = vld [vmem:[#allocation8 + $0x70] sm:$0xf]
    %v4168 = vld [vmem:[#allocation8 + $0x74] sm:$0xf]
    %v4169 = vld [vmem:[#allocation8 + $0x78] sm:$0xf]
    %v4170 = vld [vmem:[#allocation8 + $0x7c] sm:$0xf]
    %v4171 = vld [vmem:[#allocation8 + $0x80] sm:$0xf]
    %v4172 = vld [vmem:[#allocation8 + $0x84] sm:$0xf]
    %v4173 = vld [vmem:[#allocation8 + $0x88] sm:$0xf]
    %v4174 = vld [vmem:[#allocation8 + $0x8c] sm:$0xf]
    %v4175 = vld [vmem:[#allocation8 + $0x90] sm:$0xf]
    %v4176 = vld [vmem:[#allocation8 + $0x94] sm:$0xf]
    %v4177 = vld [vmem:[#allocation8 + $0x98] sm:$0xf]
    %v4178 = vld [vmem:[#allocation8 + $0x9c] sm:$0xf]
    %v4179 = vld [vmem:[#allocation8 + $0xa0] sm:$0xf]
    %v4180 = vld [vmem:[#allocation8 + $0xa4] sm:$0xf]
    %v4181 = vld [vmem:[#allocation8 + $0xa8] sm:$0xf]
    %v4182 = vld [vmem:[#allocation8 + $0xac] sm:$0xf]
    %v4183 = vld [vmem:[#allocation8 + $0xb0] sm:$0xf]
    %v4184 = vld [vmem:[#allocation8 + $0xb4] sm:$0xf]
    %v4185 = vld [vmem:[#allocation8 + $0xb8] sm:$0xf]
    %v4186 = vld [vmem:[#allocation8 + $0xbc] sm:$0xf]
    %v4187 = vld [vmem:[#allocation8 + $0xc0] sm:$0xf]
    %v4188 = vld [vmem:[#allocation8 + $0xc4] sm:$0xf]
    %v4189 = vld [vmem:[#allocation8 + $0xc8] sm:$0xf]
    %v4190 = vld [vmem:[#allocation8 + $0xcc] sm:$0xf]
    %v4191 = vld [vmem:[#allocation8 + $0xd0] sm:$0xf]
    %v4192 = vld [vmem:[#allocation8 + $0xd4] sm:$0xf]
    %v4193 = vld [vmem:[#allocation8 + $0xd8] sm:$0xf]
    %v4194 = vld [vmem:[#allocation8 + $0xdc] sm:$0xf]
    %v4195 = vld [vmem:[#allocation8 + $0xe0] sm:$0xf]
    %v4196 = vld [vmem:[#allocation8 + $0xe4] sm:$0xf]
    %v4197 = vld [vmem:[#allocation8 + $0xe8] sm:$0xf]
    %v4198 = vld [vmem:[#allocation8 + $0xec] sm:$0xf]
    %v4199 = vld [vmem:[#allocation8 + $0xf0] sm:$0xf]
    %v4200 = vld [vmem:[#allocation8 + $0xf4] sm:$0xf]
    %v4201 = vld [vmem:[#allocation8 + $0xf8] sm:$0xf]
    %v4202 = vld [vmem:[#allocation8 + $0xfc] sm:$0xf]
    %v4203 = vld [vmem:[%s6] sm:$0x1]
    %v4205 = vlaneseq
    %v4206 = vshrl.u32 %v4205, 7
    %v4207 = vsub.s32 0, %v4206
    %v4208 = vrot.slane %v4203, %v4207
    %v4274 = vunpack.c.l.b16 %v4139
    %v4275 = vunpack.c.l.b16 %v4140
    %v4276 = vunpack.c.l.b16 %v4141
    %v4277 = vunpack.c.l.b16 %v4142
    %v4278 = vunpack.c.l.b16 %v4143
    %v4279 = vunpack.c.l.b16 %v4144
    %v4280 = vunpack.c.l.b16 %v4145
    %v4281 = vunpack.c.l.b16 %v4146
    %v4282 = vunpack.c.l.b16 %v4147
    %v4283 = vunpack.c.l.b16 %v4148
    %v4284 = vunpack.c.l.b16 %v4149
    %v4285 = vunpack.c.l.b16 %v4150
    %v4286 = vunpack.c.l.b16 %v4151
    %v4287 = vunpack.c.l.b16 %v4152
    %v4288 = vunpack.c.l.b16 %v4153
    %v4289 = vunpack.c.l.b16 %v4154
    %v4290 = vunpack.c.l.b16 %v4155
    %v4291 = vunpack.c.l.b16 %v4156
    %v4292 = vunpack.c.l.b16 %v4157
    %v4293 = vunpack.c.l.b16 %v4158
    %v4294 = vunpack.c.l.b16 %v4159
    %v4295 = vunpack.c.l.b16 %v4160
    %v4296 = vunpack.c.l.b16 %v4161
    %v4297 = vunpack.c.l.b16 %v4162
    %v4298 = vunpack.c.l.b16 %v4163
    %v4299 = vunpack.c.l.b16 %v4164
    %v4300 = vunpack.c.l.b16 %v4165
    %v4301 = vunpack.c.l.b16 %v4166
    %v4302 = vunpack.c.l.b16 %v4167
    %v4303 = vunpack.c.l.b16 %v4168
    %v4304 = vunpack.c.l.b16 %v4169
    %v4305 = vunpack.c.l.b16 %v4170
    %v4306 = vunpack.c.l.b16 %v4171
    %v4307 = vunpack.c.l.b16 %v4172
    %v4308 = vunpack.c.l.b16 %v4173
    %v4309 = vunpack.c.l.b16 %v4174
    %v4310 = vunpack.c.l.b16 %v4175
    %v4311 = vunpack.c.l.b16 %v4176
    %v4312 = vunpack.c.l.b16 %v4177
    %v4313 = vunpack.c.l.b16 %v4178
    %v4314 = vunpack.c.l.b16 %v4179
    %v4315 = vunpack.c.l.b16 %v4180
    %v4316 = vunpack.c.l.b16 %v4181
    %v4317 = vunpack.c.l.b16 %v4182
    %v4318 = vunpack.c.l.b16 %v4183
    %v4319 = vunpack.c.l.b16 %v4184
    %v4320 = vunpack.c.l.b16 %v4185
    %v4321 = vunpack.c.l.b16 %v4186
    %v4322 = vunpack.c.l.b16 %v4187
    %v4323 = vunpack.c.l.b16 %v4188
    %v4324 = vunpack.c.l.b16 %v4189
    %v4325 = vunpack.c.l.b16 %v4190
    %v4326 = vunpack.c.l.b16 %v4191
    %v4327 = vunpack.c.l.b16 %v4192
    %v4328 = vunpack.c.l.b16 %v4193
    %v4329 = vunpack.c.l.b16 %v4194
    %v4330 = vunpack.c.l.b16 %v4195
    %v4331 = vunpack.c.l.b16 %v4196
    %v4332 = vunpack.c.l.b16 %v4197
    %v4333 = vunpack.c.l.b16 %v4198
    %v4334 = vunpack.c.l.b16 %v4199
    %v4335 = vunpack.c.l.b16 %v4200
    %v4336 = vunpack.c.l.b16 %v4201
    %v4337 = vunpack.c.l.b16 %v4202
    %v4338 = vpack.c.b16 %v4275, %v4274
    %v4339 = vpack.c.b16 %v4277, %v4276
    %v4340 = vpack.c.b16 %v4279, %v4278
    %v4341 = vpack.c.b16 %v4281, %v4280
    %v4342 = vpack.c.b16 %v4283, %v4282
    %v4343 = vpack.c.b16 %v4285, %v4284
    %v4344 = vpack.c.b16 %v4287, %v4286
    %v4345 = vpack.c.b16 %v4289, %v4288
    %v4346 = vpack.c.b16 %v4291, %v4290
    %v4347 = vpack.c.b16 %v4293, %v4292
    %v4348 = vpack.c.b16 %v4295, %v4294
    %v4349 = vpack.c.b16 %v4297, %v4296
    %v4350 = vpack.c.b16 %v4299, %v4298
    %v4351 = vpack.c.b16 %v4301, %v4300
    %v4352 = vpack.c.b16 %v4303, %v4302
    %v4353 = vpack.c.b16 %v4305, %v4304
    %v4354 = vpack.c.b16 %v4307, %v4306
    %v4355 = vpack.c.b16 %v4309, %v4308
    %v4356 = vpack.c.b16 %v4311, %v4310
    %v4357 = vpack.c.b16 %v4313, %v4312
    %v4358 = vpack.c.b16 %v4315, %v4314
    %v4359 = vpack.c.b16 %v4317, %v4316
    %v4360 = vpack.c.b16 %v4319, %v4318
    %v4361 = vpack.c.b16 %v4321, %v4320
    %v4362 = vpack.c.b16 %v4323, %v4322
    %v4363 = vpack.c.b16 %v4325, %v4324
    %v4364 = vpack.c.b16 %v4327, %v4326
    %v4365 = vpack.c.b16 %v4329, %v4328
    %v4366 = vpack.c.b16 %v4331, %v4330
    %v4367 = vpack.c.b16 %v4333, %v4332
    %v4368 = vpack.c.b16 %v4335, %v4334
    %v4369 = vpack.c.b16 %v4337, %v4336
    %4402 = vmatprep.subr.bf16.mxu0 0
    %4403 = vmatpush1.bf16.msra.mxu0 %v4338
    %4404 = vmatprep.subr.bf16.mxu0 0
    %4405 = vmatpush1.bf16.msra.mxu0 %v4339
    %4406 = vmatprep.subr.bf16.mxu0 0
    %4407 = vmatpush1.bf16.msra.mxu0 %v4340
    %4408 = vmatprep.subr.bf16.mxu0 0
    %4409 = vmatpush1.bf16.msra.mxu0 %v4341
    %4410 = vmatprep.subr.bf16.mxu0 0
    %4411 = vmatpush1.bf16.msra.mxu0 %v4342
    %4412 = vmatprep.subr.bf16.mxu0 0
    %4413 = vmatpush1.bf16.msra.mxu0 %v4343
    %4414 = vmatprep.subr.bf16.mxu0 0
    %4415 = vmatpush1.bf16.msra.mxu0 %v4344
    %4416 = vmatprep.subr.bf16.mxu0 0
    %4417 = vmatpush1.bf16.msra.mxu0 %v4345
    %4418 = vmatprep.subr.bf16.mxu0 0
    %4419 = vmatpush1.bf16.msra.mxu0 %v4346
    %4420 = vmatprep.subr.bf16.mxu0 0
    %4421 = vmatpush1.bf16.msra.mxu0 %v4347
    %4422 = vmatprep.subr.bf16.mxu0 0
    %4423 = vmatpush1.bf16.msra.mxu0 %v4348
    %4424 = vmatprep.subr.bf16.mxu0 0
    %4425 = vmatpush1.bf16.msra.mxu0 %v4349
    %4426 = vmatprep.subr.bf16.mxu0 0
    %4427 = vmatpush1.bf16.msra.mxu0 %v4350
    %4428 = vmatprep.subr.bf16.mxu0 0
    %4429 = vmatpush1.bf16.msra.mxu0 %v4351
    %4430 = vmatprep.subr.bf16.mxu0 0
    %4431 = vmatpush1.bf16.msra.mxu0 %v4352
    %4432 = vmatprep.subr.bf16.mxu0 0
    %4433 = vmatpush1.bf16.msra.mxu0 %v4353
    %4434 = vmatprep.mubr.bf16.mxu0 %v4108
    %4435 = vmatmul.mubr.bf16.gmra.mrb[0].mxu0 %v4107
    %v4436 = vpop.f32.mrb[0].mxu0
    %v4437 = vadd.f32 %v4208, %v4436
    %v4438 = vpop.f32.mrb[0].mxu0
    %v4439 = vpop.f32.mrb[0].mxu0
    %v4440 = vadd.f32 %v4208, %v4439
    %v4441 = vpop.f32.mrb[0].mxu0
    %4442 = vmatprep.mubr.bf16.mxu0 %v4112
    %4443 = vmatmul.mubr.bf16.gmra.mrb[0].mxu0 %v4111
    %v4444 = vpop.f32.mrb[0].mxu0
    %v4445 = vadd.f32 %v4208, %v4444
    %v4446 = vpop.f32.mrb[0].mxu0
    %v4447 = vpop.f32.mrb[0].mxu0
    %v4448 = vadd.f32 %v4208, %v4447
    %v4449 = vpop.f32.mrb[0].mxu0
    %4450 = vmatprep.mubr.bf16.mxu0 %v4116
    %4451 = vmatmul.mubr.bf16.gmra.mrb[0].mxu0 %v4115
    %v4452 = vpop.f32.mrb[0].mxu0
    %v4453 = vadd.f32 %v4208, %v4452
    %v4454 = vpop.f32.mrb[0].mxu0
    %v4455 = vpop.f32.mrb[0].mxu0
    %v4456 = vadd.f32 %v4208, %v4455
    %v4457 = vpop.f32.mrb[0].mxu0
    %4458 = vmatprep.mubr.bf16.mxu0 %v4120
    %4459 = vmatmul.mubr.bf16.gmra.mrb[0].mxu0 %v4119
    %v4460 = vpop.f32.mrb[0].mxu0
    %v4461 = vadd.f32 %v4208, %v4460
    %v4462 = vpop.f32.mrb[0].mxu0
    %v4463 = vpop.f32.mrb[0].mxu0
    %v4464 = vadd.f32 %v4208, %v4463
    %v4465 = vpop.f32.mrb[0].mxu0
    %4466 = vmatprep.mubr.bf16.mxu0 %v4124
    %4467 = vmatmul.mubr.bf16.gmra.mrb[0].mxu0 %v4123
    %v4468 = vpop.f32.mrb[0].mxu0
    %v4469 = vadd.f32 %v4208, %v4468
    %v4470 = vpop.f32.mrb[0].mxu0
    %v4471 = vpop.f32.mrb[0].mxu0
    %v4472 = vadd.f32 %v4208, %v4471
    %v4473 = vpop.f32.mrb[0].mxu0
    %4474 = vmatprep.mubr.bf16.mxu0 %v4128
    %4475 = vmatmul.mubr.bf16.gmra.mrb[0].mxu0 %v4127
    %v4476 = vpop.f32.mrb[0].mxu0
    %v4477 = vadd.f32 %v4208, %v4476
    %v4478 = vpop.f32.mrb[0].mxu0
    %v4479 = vpop.f32.mrb[0].mxu0
    %v4480 = vadd.f32 %v4208, %v4479
    %v4481 = vpop.f32.mrb[0].mxu0
    %4482 = vmatprep.mubr.bf16.mxu0 %v4132
    %4483 = vmatmul.mubr.bf16.gmra.mrb[0].mxu0 %v4131
    %v4484 = vpop.f32.mrb[0].mxu0
    %v4485 = vadd.f32 %v4208, %v4484
    %v4486 = vpop.f32.mrb[0].mxu0
    %v4487 = vpop.f32.mrb[0].mxu0
    %v4488 = vadd.f32 %v4208, %v4487
    %v4489 = vpop.f32.mrb[0].mxu0
    %4490 = vmatprep.mubr.bf16.mxu0 %v4136
    %4491 = vmatmul.mubr.bf16.gmra.mrb[0].mxu0 %v4135
    %v4492 = vpop.f32.mrb[0].mxu0
    %v4493 = vadd.f32 %v4208, %v4492
    %v4494 = vpop.f32.mrb[0].mxu0
    %v4495 = vpop.f32.mrb[0].mxu0
    %v4496 = vadd.f32 %v4208, %v4495
    %v4497 = vpop.f32.mrb[0].mxu0
    %4498 = vdwg.mxu0
    %4499 = vmatprep.subr.bf16.mxu0 0
    %4500 = vmatpush1.bf16.msra.mxu0 %v4354
    %4501 = vmatprep.subr.bf16.mxu0 0
    %4502 = vmatpush1.bf16.msra.mxu0 %v4355
    %4503 = vmatprep.subr.bf16.mxu0 0
    %4504 = vmatpush1.bf16.msra.mxu0 %v4356
    %4505 = vmatprep.subr.bf16.mxu0 0
    %4506 = vmatpush1.bf16.msra.mxu0 %v4357
    %4507 = vmatprep.subr.bf16.mxu0 0
    %4508 = vmatpush1.bf16.msra.mxu0 %v4358
    %4509 = vmatprep.subr.bf16.mxu0 0
    %4510 = vmatpush1.bf16.msra.mxu0 %v4359
    %4511 = vmatprep.subr.bf16.mxu0 0
    %4512 = vmatpush1.bf16.msra.mxu0 %v4360
    %4513 = vmatprep.subr.bf16.mxu0 0
    %4514 = vmatpush1.bf16.msra.mxu0 %v4361
    %4515 = vmatprep.subr.bf16.mxu0 0
    %4516 = vmatpush1.bf16.msra.mxu0 %v4362
    %4517 = vmatprep.subr.bf16.mxu0 0
    %4518 = vmatpush1.bf16.msra.mxu0 %v4363
    %4519 = vmatprep.subr.bf16.mxu0 0
    %4520 = vmatpush1.bf16.msra.mxu0 %v4364
    %4521 = vmatprep.subr.bf16.mxu0 0
    %4522 = vmatpush1.bf16.msra.mxu0 %v4365
    %4523 = vmatprep.subr.bf16.mxu0 0
    %4524 = vmatpush1.bf16.msra.mxu0 %v4366
    %4525 = vmatprep.subr.bf16.mxu0 0
    %4526 = vmatpush1.bf16.msra.mxu0 %v4367
    %4527 = vmatprep.subr.bf16.mxu0 0
    %4528 = vmatpush1.bf16.msra.mxu0 %v4368
    %4529 = vmatprep.subr.bf16.mxu0 0
    %4530 = vmatpush1.bf16.msra.mxu0 %v4369
    %4531 = vmatprep.mubr.bf16.mxu0 %v4110
    %4532 = vmatmul.mubr.bf16.gmra.mrb[0].mxu0 %v4109
    %v4533 = vpop.f32.mrb[0].mxu0
    %v4534 = vadd.f32 %v4437, %v4533
    %v4535 = vpop.f32.mrb[0].mxu0
    %v4536 = vpop.f32.mrb[0].mxu0
    %v4537 = vadd.f32 %v4440, %v4536
    %v4538 = vpop.f32.mrb[0].mxu0
    %4539 = vmatprep.mubr.bf16.mxu0 %v4114
    %4540 = vmatmul.mubr.bf16.gmra.mrb[0].mxu0 %v4113
    %v4541 = vpop.f32.mrb[0].mxu0
    %v4542 = vadd.f32 %v4445, %v4541
    %v4543 = vpop.f32.mrb[0].mxu0
    %v4544 = vpop.f32.mrb[0].mxu0
    %v4545 = vadd.f32 %v4448, %v4544
    %v4546 = vpop.f32.mrb[0].mxu0
    %4547 = vmatprep.mubr.bf16.mxu0 %v4118
    %4548 = vmatmul.mubr.bf16.gmra.mrb[0].mxu0 %v4117
    %v4549 = vpop.f32.mrb[0].mxu0
    %v4550 = vadd.f32 %v4453, %v4549
    %v4551 = vpop.f32.mrb[0].mxu0
    %v4552 = vpop.f32.mrb[0].mxu0
    %v4553 = vadd.f32 %v4456, %v4552
    %v4554 = vpop.f32.mrb[0].mxu0
    %4555 = vmatprep.mubr.bf16.mxu0 %v4122
    %4556 = vmatmul.mubr.bf16.gmra.mrb[0].mxu0 %v4121
    %v4557 = vpop.f32.mrb[0].mxu0
    %v4558 = vadd.f32 %v4461, %v4557
    %v4559 = vpop.f32.mrb[0].mxu0
    %v4560 = vpop.f32.mrb[0].mxu0
    %v4561 = vadd.f32 %v4464, %v4560
    %v4562 = vpop.f32.mrb[0].mxu0
    %4563 = vmatprep.mubr.bf16.mxu0 %v4126
    %4564 = vmatmul.mubr.bf16.gmra.mrb[0].mxu0 %v4125
    %v4565 = vpop.f32.mrb[0].mxu0
    %v4566 = vadd.f32 %v4469, %v4565
    %v4567 = vpop.f32.mrb[0].mxu0
    %v4568 = vpop.f32.mrb[0].mxu0
    %v4569 = vadd.f32 %v4472, %v4568
    %v4570 = vpop.f32.mrb[0].mxu0
    %4571 = vmatprep.mubr.bf16.mxu0 %v4130
    %4572 = vmatmul.mubr.bf16.gmra.mrb[0].mxu0 %v4129
    %v4573 = vpop.f32.mrb[0].mxu0
    %v4574 = vadd.f32 %v4477, %v4573
    %v4575 = vpop.f32.mrb[0].mxu0
    %v4576 = vpop.f32.mrb[0].mxu0
    %v4577 = vadd.f32 %v4480, %v4576
    %v4578 = vpop.f32.mrb[0].mxu0
    %4579 = vmatprep.mubr.bf16.mxu0 %v4134
    %4580 = vmatmul.mubr.bf16.gmra.mrb[0].mxu0 %v4133
    %v4581 = vpop.f32.mrb[0].mxu0
    %v4582 = vadd.f32 %v4485, %v4581
    %v4583 = vpop.f32.mrb[0].mxu0
    %v4584 = vpop.f32.mrb[0].mxu0
    %v4585 = vadd.f32 %v4488, %v4584
    %v4586 = vpop.f32.mrb[0].mxu0
    %4587 = vmatprep.mubr.bf16.mxu0 %v4138
    %4588 = vmatmul.mubr.bf16.gmra.mrb[0].mxu0 %v4137
    %v4589 = vpop.f32.mrb[0].mxu0
    %v4590 = vadd.f32 %v4493, %v4589
    %v4591 = vpop.f32.mrb[0].mxu0
    %v4592 = vpop.f32.mrb[0].mxu0
    %v4593 = vadd.f32 %v4496, %v4592
    %v4594 = vpop.f32.mrb[0].mxu0
    %4595 = vdwg.mxu0
    %4596 = vst [vmem:[#allocation10] sm:$0xff] %v4534
    %4597 = vst [vmem:[#allocation10 + $0x8] sm:$0xff] %v4537
    %4598 = vst [vmem:[#allocation10 + $0x10] sm:$0xff] %v4542
    %4599 = vst [vmem:[#allocation10 + $0x18] sm:$0xff] %v4545
    %4600 = vst [vmem:[#allocation10 + $0x20] sm:$0xff] %v4550
    %4601 = vst [vmem:[#allocation10 + $0x28] sm:$0xff] %v4553
    %4602 = vst [vmem:[#allocation10 + $0x30] sm:$0xff] %v4558
    %4603 = vst [vmem:[#allocation10 + $0x38] sm:$0xff] %v4561
    %4604 = vst [vmem:[#allocation10 + $0x40] sm:$0xff] %v4566
    %4605 = vst [vmem:[#allocation10 + $0x48] sm:$0xff] %v4569
    %4606 = vst [vmem:[#allocation10 + $0x50] sm:$0xff] %v4574
    %4607 = vst [vmem:[#allocation10 + $0x58] sm:$0xff] %v4577
    %4608 = vst [vmem:[#allocation10 + $0x60] sm:$0xff] %v4582
    %4609 = vst [vmem:[#allocation10 + $0x68] sm:$0xff] %v4585
    %4610 = vst [vmem:[#allocation10 + $0x70] sm:$0xff] %v4590
    %4611 = vst [vmem:[#allocation10 + $0x78] sm:$0xff] %v4593
    // Predicated region
    $region46: #{tpu_custom_call.1} parent=1 // pred_check
      _
    $region47: #{tpu_custom_call.1} parent=1 // pred_check_branch
      %4613 = sbr.rel (0) target = $region49
    $region48: #{tpu_custom_call.1} parent=1 // pred_region
      %s4615 = ssub.s32 2048, 2048
      %4616 = vsyncadd [#allocation4], %s4615
      %s4617 = sshll.u32 [#allocation10], 4
      %s4618 = int_to_ptr.vmem [resolvable:$true] %s4617
      %4623 = dma.vmem_to_hbm [thread:$0]  %s4618, 2048, %s7, [#allocation4], 128, 128, 8
    $region49: #{tpu_custom_call.1} parent=1 // pred_fallthru
      _
    // Predicated region
    $region50: #{tpu_custom_call.1} parent=1 // pred_check
      _
    $region51: #{tpu_custom_call.1} parent=1 // pred_check_branch
      %4625 = sbr.rel (0) target = $region53
    $region52: #{tpu_custom_call.1} parent=1 // pred_region
      %4626 = dma.done [#allocation4], 2048
    $region53: #{tpu_custom_call.1} parent=1 // pred_fallthru
      _
    %4627 = vsyncpa [#allocation3], 1
    %4628 = vsyncpa [#allocation6], 1
    %4629 = vsyncpa [#allocation9], 1
    %4630 = vsyncpa [#allocation4], 1

</llo_original>
